<compile_context>
chip_gen: v6e
topology: v6e:2x2x1
jax: 0.10.0
libtpu: 0.0.40
codegen_flags: <defaults>
</compile_context>

<pallas_src>
from functools import partial

import jax
import jax.numpy as jnp
from jax.experimental import pallas as pl
from jax.experimental.pallas import tpu as pltpu

_F32 = jnp.float32
_BF16 = jnp.bfloat16


def _erf(z):
    # Abramowitz & Stegun 7.1.26 polynomial erf; only basic VPU/EUP ops.
    p = 0.3275911
    a1, a2, a3, a4, a5 = (0.254829592, -0.284496736, 1.421413741,
                          -1.453152027, 1.061405429)
    az = jnp.abs(z)
    t = pl.reciprocal(1.0 + p * az, approx=True)          # EUP, not a VPU divide
    poly = ((((a5 * t + a4) * t + a3) * t + a2) * t + a1) * t
    r = 1.0 - poly * jnp.exp(-az * az)
    return jnp.where(z >= 0, r, -r)


def _block_kernel(x_ref,
                  ln1_w_ref, ln1_b_ref,
                  qkv_w_ref,
                  proj_w_ref, proj_b_ref,
                  ln2_w_ref, ln2_b_ref,
                  fc1_w_ref, fc1_b_ref,
                  fc2_w_ref, fc2_b_ref,
                  o_ref,
                  *, num_heads):
    bb, N, C = x_ref.shape
    hd = C // num_heads
    eps = _F32(1e-5)                                      # PyTorch LayerNorm default

    # Token-major f32 working set (LN / softmax / residual math stays f32).
    x = x_ref[...].astype(_F32).reshape(bb * N, C)

    def layernorm(v, w_ref, b_ref):
        mu = jnp.mean(v, axis=-1, keepdims=True)
        var = jnp.mean((v - mu) ** 2, axis=-1, keepdims=True)
        return ((v - mu) * jax.lax.rsqrt(var + eps)
                * w_ref[...].astype(_F32) + b_ref[...].astype(_F32))

    def mm(a, w_ref):
        # bf16 MXU operands, f32 accumulation.
        return jnp.dot(a.astype(_BF16), w_ref[...], preferred_element_type=_F32)

    # ---------------- attention branch ----------------
    h1 = layernorm(x, ln1_w_ref, ln1_b_ref)
    # softmax scale is pre-folded into the q output columns of qkv_w (host side).
    qkv = mm(h1, qkv_w_ref).astype(_BF16)                 # (bb*N, 3C), MXU-operand only

    head_out = []
    for h in range(num_heads):
        lo = h * hd
        q_h = qkv[:, lo:lo + hd].reshape(bb, N, hd)
        k_h = qkv[:, C + lo:C + lo + hd].reshape(bb, N, hd)
        v_h = qkv[:, 2 * C + lo:2 * C + lo + hd].reshape(bb, N, hd)

        s = jnp.einsum('bnd,bmd->bnm', q_h, k_h,
                       preferred_element_type=_F32)       # (bb, N, N) f32
        s = s - jnp.max(s, axis=-1, keepdims=True)
        prob = jnp.exp(s)
        denom = jnp.sum(prob, axis=-1, keepdims=True)     # (bb, N, 1) f32
        o_h = jnp.einsum('bnm,bmd->bnd', prob.astype(_BF16), v_h,
                         preferred_element_type=_F32)     # (bb, N, hd)
        # Deferred normalization: scale the (N, hd) context, not the (N, N) probs.
        head_out.append(o_h * pl.reciprocal(denom, approx=True))

    # Single lane-dim concat back to token-major: no masked scatter stores,
    # no VMEM scratch round trip; feeds the proj matmul directly.
    ctx = jnp.concatenate(head_out, axis=-1).reshape(bb * N, C)

    attn_out = mm(ctx, proj_w_ref) + proj_b_ref[...].astype(_F32)
    x1 = x + attn_out                                     # residual stays f32

    # ---------------- MLP branch (row-tiled, one N-token chunk per batch elem) ----------------
    inv_sqrt2 = _F32(0.7071067811865476)
    for b in range(bb):
        xc = x1[b * N:(b + 1) * N]
        h2 = layernorm(xc, ln2_w_ref, ln2_b_ref)
        hid = mm(h2, fc1_w_ref) + fc1_b_ref[...].astype(_F32)
        hid = 0.5 * hid * (1.0 + _erf(hid * inv_sqrt2))   # exact-GELU (erf poly)
        mlp = mm(hid, fc2_w_ref) + fc2_b_ref[...].astype(_F32)
        o_ref[b] = (xc + mlp).astype(o_ref.dtype)         # lane-dense (N, C) store


def _vmem_budget_and_bb(B, N, C, H, x_itemsize, single_buf_weights):
    try:
        physical = int(pltpu.get_tpu_info().vmem_capacity_bytes)
    except Exception:
        physical = 64 * 1024 * 1024                       # conservative default
    cap = (physical * 13) // 16                           # 64MiB->52MiB, 128MiB->104MiB

    def estimate(bb):
        bf16, f32 = 2, 4
        wbuf = 1 if single_buf_weights else 2
        weights = wbuf * (4 * C * C + 2 * C * H) * bf16   # qkv + proj + fc1 + fc2
        smalls = 2 * (6 * C + H) * f32                    # LN params + biases
        io = 2 * 2 * bb * N * C * x_itemsize              # double-buffered x in + out
        acts = bb * N * 6 * C * f32                       # x, qkv lanes, ctx, x1
        acts += bb * N * N * (f32 + bf16)                 # one head's scores + probs
        acts += N * H * f32 + 2 * N * C * f32             # MLP row chunk
        return weights + smalls + io + (3 * acts) // 2    # relayout margin

    # Prefer >=4 grid steps on small-VMEM chips (v7x: 2 steps per TensorCore),
    # otherwise >=2 steps; pick the largest bb whose estimate fits the cap.
    prefer = (4,) if physical <= 64 * 1024 * 1024 else ()
    chosen = 1
    for min_steps in prefer + (2,):
        for bb in (8, 4, 2):
            if B % bb == 0 and B // bb >= min_steps and estimate(bb) <= cap:
                chosen = bb
                break
        if chosen != 1:
            break
    budget = int(min(cap, max(estimate(chosen), 32 * 1024 * 1024)))
    return chosen, budget


def vit_block(x, params, num_heads):
    B, N, C = x.shape
    H = params["fc1_w"].shape[1]
    assert C % num_heads == 0, "dim must be divisible by num_heads"
    scale = float((C // num_heads) ** -0.5)

    # Fold softmax scale into the q columns of qkv_w in f32, then cast bf16.
    qkv_w = jnp.asarray(params["qkv_w"], jnp.float32)
    qkv_w = qkv_w.at[:, :C].multiply(scale).astype(_BF16)
    proj_w = params["proj_w"].astype(_BF16)
    fc1_w = params["fc1_w"].astype(_BF16)
    fc2_w = params["fc2_w"].astype(_BF16)

    args_tail = (
        params["ln1_w"].reshape(1, C), params["ln1_b"].reshape(1, C),
        qkv_w,
        proj_w, params["proj_b"].reshape(1, C),
        params["ln2_w"].reshape(1, C), params["ln2_b"].reshape(1, C),
        fc1_w, params["fc1_b"].reshape(1, H),
        fc2_w, params["fc2_b"].reshape(1, C),
    )
    const_shapes = [(1, C), (1, C), (C, 3 * C), (C, C), (1, C), (1, C), (1, C),
                    (C, H), (1, H), (H, C), (1, C)]

    kernel = partial(_block_kernel, num_heads=num_heads)

    def build(single_buf_weights):
        bb, budget = _vmem_budget_and_bb(B, N, C, H, x.dtype.itemsize,
                                         single_buf_weights)

        def const_spec(shape):
            nd = len(shape)
            idx = lambda b, _nd=nd: (0,) * _nd
            if single_buf_weights:
                # Constant block index -> the default double buffer is waste.
                return pl.BlockSpec(shape, idx, pipeline_mode=pl.Buffered(1))
            return pl.BlockSpec(shape, idx)

        in_specs = [pl.BlockSpec((bb, N, C), lambda b: (b, 0, 0))]
        in_specs += [const_spec(s) for s in const_shapes]
        out_spec = pl.BlockSpec((bb, N, C), lambda b: (b, 0, 0))

        return pl.pallas_call(
            kernel,
            out_shape=jax.ShapeDtypeStruct((B, N, C), x.dtype),
            grid=(B // bb,),
            in_specs=in_specs,
            out_specs=out_spec,
            compiler_params=pltpu.CompilerParams(
                dimension_semantics=("parallel",),
                vmem_limit_bytes=budget),
        )

    try:
        return build(True)(x, *args_tail)
    except Exception:
        # Fallback: default double-buffered weights if pl.Buffered(1) is not
        # supported by this jax/Mosaic build.
        return build(False)(x, *args_tail)


def ref_block(x, p, num_heads):
    """Pure-JAX (fp32) reference mirroring the PyTorch forward."""
    def ln(v, w, b):
        mu = v.mean(-1, keepdims=True)
        var = ((v - mu) ** 2).mean(-1, keepdims=True)
        return (v - mu) / jnp.sqrt(var + 1e-5) * w + b

    B, N, C = x.shape
    hd = C // num_heads
    h1 = ln(x, p["ln1_w"], p["ln1_b"])
    qkv = h1 @ p["qkv_w"]                                         # (B, N, 3C)
    qkv = qkv.reshape(B, N, 3, num_heads, hd).transpose(2, 0, 3, 1, 4)
    q, k, v = qkv[0], qkv[1], qkv[2]                              # (B, h, N, hd)
    attn = jnp.einsum("bhnd,bhmd->bhnm", q, k) * (hd ** -0.5)
    attn = jax.nn.softmax(attn, axis=-1)
    out = jnp.einsum("bhnm,bhmd->bhnd", attn, v)
    out = out.transpose(0, 2, 1, 3).reshape(B, N, C)
    out = out @ p["proj_w"] + p["proj_b"]
    x1 = x + out
    h2 = ln(x1, p["ln2_w"], p["ln2_b"])
    m = jax.nn.gelu(h2 @ p["fc1_w"] + p["fc1_b"], approximate=False)
    m = m @ p["fc2_w"] + p["fc2_b"]
    return x1 + m


if __name__ == "__main__":
    B, N, C, num_heads = 2, 8, 32, 4
    H = int(C * 4.0)

    key = jax.random.PRNGKey(0)
    ks = jax.random.split(key, 8)
    params = {
        # LayerNorm params use PyTorch defaults (ones / zeros)
        "ln1_w": jnp.ones((C,), jnp.float32),
        "ln1_b": jnp.zeros((C,), jnp.float32),
        "ln2_w": jnp.ones((C,), jnp.float32),
        "ln2_b": jnp.zeros((C,), jnp.float32),
        # Linear weights (in, out); qkv has no bias (qkv_bias=False)
        "qkv_w": 0.1 * jax.random.normal(ks[0], (C, 3 * C), jnp.float32),
        "proj_w": 0.1 * jax.random.normal(ks[1], (C, C), jnp.float32),
        "proj_b": 0.1 * jax.random.normal(ks[2], (C,), jnp.float32),
        "fc1_w": 0.1 * jax.random.normal(ks[3], (C, H), jnp.float32),
        "fc1_b": 0.1 * jax.random.normal(ks[4], (H,), jnp.float32),
        "fc2_w": 0.1 * jax.random.normal(ks[5], (H, C), jnp.float32),
        "fc2_b": 0.1 * jax.random.normal(ks[6], (C,), jnp.float32),
    }
    x = jax.random.normal(ks[7], (B, N, C), jnp.float32)

    out = vit_block(x, params, num_heads)
    jax.block_until_ready(out)

    ref = ref_block(x, params, num_heads)
    assert out.shape == (B, N, C)
    # Tolerance loosened for bf16 matmul operands (f32 accumulation) + approx recip.
    assert jnp.allclose(out, ref, atol=3e-2, rtol=3e-2), "mismatch vs reference"
    print("KERNEL_OK")
</pallas_src>

<mosaic_0001>
module attributes {stable_mosaic.version = 11 : i64} {
  func.func @_block_kernel(%arg0: i32, %arg1: memref<1x8x32xf32, #tpu.memory_space<vmem>>, %arg2: memref<1x32xf32, #tpu.memory_space<vmem>>, %arg3: memref<1x32xf32, #tpu.memory_space<vmem>>, %arg4: memref<32x96xbf16, #tpu.memory_space<vmem>>, %arg5: memref<32x32xbf16, #tpu.memory_space<vmem>>, %arg6: memref<1x32xf32, #tpu.memory_space<vmem>>, %arg7: memref<1x32xf32, #tpu.memory_space<vmem>>, %arg8: memref<1x32xf32, #tpu.memory_space<vmem>>, %arg9: memref<32x128xbf16, #tpu.memory_space<vmem>>, %arg10: memref<1x128xf32, #tpu.memory_space<vmem>>, %arg11: memref<128x32xbf16, #tpu.memory_space<vmem>>, %arg12: memref<1x32xf32, #tpu.memory_space<vmem>>, %arg13: memref<1x8x32xf32, #tpu.memory_space<vmem>>) attributes {dimension_semantics = [#tpu.dimension_semantics<parallel>], iteration_bounds = array<i64: 2>, scalar_prefetch = 0 : i64, scratch_operands = 0 : i64, tpu.core_type = #tpu.core_type<tc>, window_params = [{transform_indices = @transform_0, window_bounds = array<i64: 1, 8, 32>}, {pipeline_mode = #tpu.pipeline_mode<synchronous>, transform_indices = @transform_1, window_bounds = array<i64: 1, 32>}, {pipeline_mode = #tpu.pipeline_mode<synchronous>, transform_indices = @transform_2, window_bounds = array<i64: 1, 32>}, {pipeline_mode = #tpu.pipeline_mode<synchronous>, transform_indices = @transform_3, window_bounds = array<i64: 32, 96>}, {pipeline_mode = #tpu.pipeline_mode<synchronous>, transform_indices = @transform_4, window_bounds = array<i64: 32, 32>}, {pipeline_mode = #tpu.pipeline_mode<synchronous>, transform_indices = @transform_5, window_bounds = array<i64: 1, 32>}, {pipeline_mode = #tpu.pipeline_mode<synchronous>, transform_indices = @transform_6, window_bounds = array<i64: 1, 32>}, {pipeline_mode = #tpu.pipeline_mode<synchronous>, transform_indices = @transform_7, window_bounds = array<i64: 1, 32>}, {pipeline_mode = #tpu.pipeline_mode<synchronous>, transform_indices = @transform_8, window_bounds = array<i64: 32, 128>}, {pipeline_mode = #tpu.pipeline_mode<synchronous>, transform_indices = @transform_9, window_bounds = array<i64: 1, 128>}, {pipeline_mode = #tpu.pipeline_mode<synchronous>, transform_indices = @transform_10, window_bounds = array<i64: 128, 32>}, {pipeline_mode = #tpu.pipeline_mode<synchronous>, transform_indices = @transform_11, window_bounds = array<i64: 1, 32>}, {transform_indices = @transform_12, window_bounds = array<i64: 1, 8, 32>}]} {
    %c0 = arith.constant 0 : index
    %c0_0 = arith.constant 0 : index
    %c0_1 = arith.constant 0 : index
    %0 = vector.load %arg1[%c0, %c0_0, %c0_1] : memref<1x8x32xf32, #tpu.memory_space<vmem>>, vector<1x8x32xf32>
    %1 = vector.shape_cast %0 : vector<1x8x32xf32> to vector<8x32xf32>
    %cst = arith.constant dense<0.000000e+00> : vector<8xf32>
    %2 = vector.multi_reduction <add>, %1, %cst [1] : vector<8x32xf32> to vector<8xf32>
    %3 = vector.shape_cast %2 : vector<8xf32> to vector<8x1xf32>
    %cst_2 = arith.constant 3.200000e+01 : f32
    %4 = vector.broadcast %cst_2 : f32 to vector<8x1xf32>
    %5 = arith.divf %3, %4 : vector<8x1xf32>
    %6 = vector.broadcast %5 : vector<8x1xf32> to vector<8x32xf32>
    %7 = arith.subf %1, %6 : vector<8x32xf32>
    %8 = arith.mulf %7, %7 : vector<8x32xf32>
    %cst_3 = arith.constant dense<0.000000e+00> : vector<8xf32>
    %9 = vector.multi_reduction <add>, %8, %cst_3 [1] : vector<8x32xf32> to vector<8xf32>
    %10 = vector.shape_cast %9 : vector<8xf32> to vector<8x1xf32>
    %cst_4 = arith.constant 3.200000e+01 : f32
    %11 = vector.broadcast %cst_4 : f32 to vector<8x1xf32>
    %12 = arith.divf %10, %11 : vector<8x1xf32>
    %13 = vector.broadcast %5 : vector<8x1xf32> to vector<8x32xf32>
    %14 = arith.subf %1, %13 : vector<8x32xf32>
    %cst_5 = arith.constant 9.99999974E-6 : f32
    %15 = vector.broadcast %cst_5 : f32 to vector<8x1xf32>
    %16 = arith.addf %12, %15 : vector<8x1xf32>
    %17 = math.rsqrt %16 : vector<8x1xf32>
    %18 = vector.broadcast %17 : vector<8x1xf32> to vector<8x32xf32>
    %19 = arith.mulf %14, %18 : vector<8x32xf32>
    %c0_6 = arith.constant 0 : index
    %c0_7 = arith.constant 0 : index
    %20 = vector.load %arg2[%c0_6, %c0_7] : memref<1x32xf32, #tpu.memory_space<vmem>>, vector<1x32xf32>
    %21 = vector.broadcast %20 : vector<1x32xf32> to vector<8x32xf32>
    %22 = arith.mulf %19, %21 : vector<8x32xf32>
    %c0_8 = arith.constant 0 : index
    %c0_9 = arith.constant 0 : index
    %23 = vector.load %arg3[%c0_8, %c0_9] : memref<1x32xf32, #tpu.memory_space<vmem>>, vector<1x32xf32>
    %24 = vector.broadcast %23 : vector<1x32xf32> to vector<8x32xf32>
    %25 = arith.addf %22, %24 : vector<8x32xf32>
    %26 = arith.truncf %25 : vector<8x32xf32> to vector<8x32xbf16>
    %c0_10 = arith.constant 0 : index
    %c0_11 = arith.constant 0 : index
    %27 = vector.load %arg4[%c0_10, %c0_11] : memref<32x96xbf16, #tpu.memory_space<vmem>>, vector<32x96xbf16>
    %cst_12 = arith.constant dense<0.000000e+00> : vector<8x96xf32>
    %28 = tpu.matmul %26, %27, %cst_12 {dimension_numbers = #tpu.dot_dimension_numbers<[1], [0], [0], [1], [0, 0, 1, 1], [], []>} : vector<8x32xbf16>, vector<32x96xbf16>, vector<8x96xf32> -> vector<8x96xf32>
    %29 = arith.truncf %28 : vector<8x96xf32> to vector<8x96xbf16>
    %30 = vector.extract_strided_slice %29 {offsets = [0, 0], sizes = [8, 8], strides = [1, 1]} : vector<8x96xbf16> to vector<8x8xbf16>
    %31 = vector.shape_cast %30 : vector<8x8xbf16> to vector<1x8x8xbf16>
    %32 = vector.extract_strided_slice %29 {offsets = [0, 32], sizes = [8, 8], strides = [1, 1]} : vector<8x96xbf16> to vector<8x8xbf16>
    %33 = vector.shape_cast %32 : vector<8x8xbf16> to vector<1x8x8xbf16>
    %34 = vector.extract_strided_slice %29 {offsets = [0, 64], sizes = [8, 8], strides = [1, 1]} : vector<8x96xbf16> to vector<8x8xbf16>
    %35 = vector.shape_cast %34 : vector<8x8xbf16> to vector<1x8x8xbf16>
    "tpu.trace_start"() <{level = 10 : i32, message = "bnd,bmd->bnm"}> : () -> ()
    %cst_13 = arith.constant dense<0.000000e+00> : vector<1x8x8xf32>
    %36 = tpu.matmul %31, %33, %cst_13 {dimension_numbers = #tpu.dot_dimension_numbers<[2], [2], [1], [1], [0, 0, 0, 1, 1, 1], [0], [0]>} : vector<1x8x8xbf16>, vector<1x8x8xbf16>, vector<1x8x8xf32> -> vector<1x8x8xf32>
    "tpu.trace_stop"() : () -> ()
    %cst_14 = arith.constant dense<0xFF800000> : vector<1x8xf32>
    %37 = vector.multi_reduction <maximumf>, %36, %cst_14 [2] : vector<1x8x8xf32> to vector<1x8xf32>
    %38 = vector.shape_cast %37 : vector<1x8xf32> to vector<1x8x1xf32>
    %39 = vector.broadcast %38 : vector<1x8x1xf32> to vector<1x8x8xf32>
    %40 = arith.subf %36, %39 : vector<1x8x8xf32>
    %41 = math.exp %40 : vector<1x8x8xf32>
    %cst_15 = arith.constant dense<0.000000e+00> : vector<1x8xf32>
    %42 = vector.multi_reduction <add>, %41, %cst_15 [2] : vector<1x8x8xf32> to vector<1x8xf32>
    %43 = vector.shape_cast %42 : vector<1x8xf32> to vector<1x8x1xf32>
    %44 = arith.truncf %41 : vector<1x8x8xf32> to vector<1x8x8xbf16>
    "tpu.trace_start"() <{level = 10 : i32, message = "bnm,bmd->bnd"}> : () -> ()
    %cst_16 = arith.constant dense<0.000000e+00> : vector<1x8x8xf32>
    %45 = tpu.matmul %44, %35, %cst_16 {dimension_numbers = #tpu.dot_dimension_numbers<[2], [1], [1], [2], [0, 0, 0, 1, 1, 2], [0], [0]>} : vector<1x8x8xbf16>, vector<1x8x8xbf16>, vector<1x8x8xf32> -> vector<1x8x8xf32>
    "tpu.trace_stop"() : () -> ()
    %46 = tpu.reciprocal %43 {approx = true} : vector<1x8x1xf32> -> vector<1x8x1xf32>
    %47 = vector.broadcast %46 : vector<1x8x1xf32> to vector<1x8x8xf32>
    %48 = arith.mulf %45, %47 : vector<1x8x8xf32>
    %49 = vector.extract_strided_slice %29 {offsets = [0, 8], sizes = [8, 8], strides = [1, 1]} : vector<8x96xbf16> to vector<8x8xbf16>
    %50 = vector.shape_cast %49 : vector<8x8xbf16> to vector<1x8x8xbf16>
    %51 = vector.extract_strided_slice %29 {offsets = [0, 40], sizes = [8, 8], strides = [1, 1]} : vector<8x96xbf16> to vector<8x8xbf16>
    %52 = vector.shape_cast %51 : vector<8x8xbf16> to vector<1x8x8xbf16>
    %53 = vector.extract_strided_slice %29 {offsets = [0, 72], sizes = [8, 8], strides = [1, 1]} : vector<8x96xbf16> to vector<8x8xbf16>
    %54 = vector.shape_cast %53 : vector<8x8xbf16> to vector<1x8x8xbf16>
    "tpu.trace_start"() <{level = 10 : i32, message = "bnd,bmd->bnm"}> : () -> ()
    %cst_17 = arith.constant dense<0.000000e+00> : vector<1x8x8xf32>
    %55 = tpu.matmul %50, %52, %cst_17 {dimension_numbers = #tpu.dot_dimension_numbers<[2], [2], [1], [1], [0, 0, 0, 1, 1, 1], [0], [0]>} : vector<1x8x8xbf16>, vector<1x8x8xbf16>, vector<1x8x8xf32> -> vector<1x8x8xf32>
    "tpu.trace_stop"() : () -> ()
    %cst_18 = arith.constant dense<0xFF800000> : vector<1x8xf32>
    %56 = vector.multi_reduction <maximumf>, %55, %cst_18 [2] : vector<1x8x8xf32> to vector<1x8xf32>
    %57 = vector.shape_cast %56 : vector<1x8xf32> to vector<1x8x1xf32>
    %58 = vector.broadcast %57 : vector<1x8x1xf32> to vector<1x8x8xf32>
    %59 = arith.subf %55, %58 : vector<1x8x8xf32>
    %60 = math.exp %59 : vector<1x8x8xf32>
    %cst_19 = arith.constant dense<0.000000e+00> : vector<1x8xf32>
    %61 = vector.multi_reduction <add>, %60, %cst_19 [2] : vector<1x8x8xf32> to vector<1x8xf32>
    %62 = vector.shape_cast %61 : vector<1x8xf32> to vector<1x8x1xf32>
    %63 = arith.truncf %60 : vector<1x8x8xf32> to vector<1x8x8xbf16>
    "tpu.trace_start"() <{level = 10 : i32, message = "bnm,bmd->bnd"}> : () -> ()
    %cst_20 = arith.constant dense<0.000000e+00> : vector<1x8x8xf32>
    %64 = tpu.matmul %63, %54, %cst_20 {dimension_numbers = #tpu.dot_dimension_numbers<[2], [1], [1], [2], [0, 0, 0, 1, 1, 2], [0], [0]>} : vector<1x8x8xbf16>, vector<1x8x8xbf16>, vector<1x8x8xf32> -> vector<1x8x8xf32>
    "tpu.trace_stop"() : () -> ()
    %65 = tpu.reciprocal %62 {approx = true} : vector<1x8x1xf32> -> vector<1x8x1xf32>
    %66 = vector.broadcast %65 : vector<1x8x1xf32> to vector<1x8x8xf32>
    %67 = arith.mulf %64, %66 : vector<1x8x8xf32>
    %68 = vector.extract_strided_slice %29 {offsets = [0, 16], sizes = [8, 8], strides = [1, 1]} : vector<8x96xbf16> to vector<8x8xbf16>
    %69 = vector.shape_cast %68 : vector<8x8xbf16> to vector<1x8x8xbf16>
    %70 = vector.extract_strided_slice %29 {offsets = [0, 48], sizes = [8, 8], strides = [1, 1]} : vector<8x96xbf16> to vector<8x8xbf16>
    %71 = vector.shape_cast %70 : vector<8x8xbf16> to vector<1x8x8xbf16>
    %72 = vector.extract_strided_slice %29 {offsets = [0, 80], sizes = [8, 8], strides = [1, 1]} : vector<8x96xbf16> to vector<8x8xbf16>
    %73 = vector.shape_cast %72 : vector<8x8xbf16> to vector<1x8x8xbf16>
    "tpu.trace_start"() <{level = 10 : i32, message = "bnd,bmd->bnm"}> : () -> ()
    %cst_21 = arith.constant dense<0.000000e+00> : vector<1x8x8xf32>
    %74 = tpu.matmul %69, %71, %cst_21 {dimension_numbers = #tpu.dot_dimension_numbers<[2], [2], [1], [1], [0, 0, 0, 1, 1, 1], [0], [0]>} : vector<1x8x8xbf16>, vector<1x8x8xbf16>, vector<1x8x8xf32> -> vector<1x8x8xf32>
    "tpu.trace_stop"() : () -> ()
    %cst_22 = arith.constant dense<0xFF800000> : vector<1x8xf32>
    %75 = vector.multi_reduction <maximumf>, %74, %cst_22 [2] : vector<1x8x8xf32> to vector<1x8xf32>
    %76 = vector.shape_cast %75 : vector<1x8xf32> to vector<1x8x1xf32>
    %77 = vector.broadcast %76 : vector<1x8x1xf32> to vector<1x8x8xf32>
    %78 = arith.subf %74, %77 : vector<1x8x8xf32>
    %79 = math.exp %78 : vector<1x8x8xf32>
    %cst_23 = arith.constant dense<0.000000e+00> : vector<1x8xf32>
    %80 = vector.multi_reduction <add>, %79, %cst_23 [2] : vector<1x8x8xf32> to vector<1x8xf32>
    %81 = vector.shape_cast %80 : vector<1x8xf32> to vector<1x8x1xf32>
    %82 = arith.truncf %79 : vector<1x8x8xf32> to vector<1x8x8xbf16>
    "tpu.trace_start"() <{level = 10 : i32, message = "bnm,bmd->bnd"}> : () -> ()
    %cst_24 = arith.constant dense<0.000000e+00> : vector<1x8x8xf32>
    %83 = tpu.matmul %82, %73, %cst_24 {dimension_numbers = #tpu.dot_dimension_numbers<[2], [1], [1], [2], [0, 0, 0, 1, 1, 2], [0], [0]>} : vector<1x8x8xbf16>, vector<1x8x8xbf16>, vector<1x8x8xf32> -> vector<1x8x8xf32>
    "tpu.trace_stop"() : () -> ()
    %84 = tpu.reciprocal %81 {approx = true} : vector<1x8x1xf32> -> vector<1x8x1xf32>
    %85 = vector.broadcast %84 : vector<1x8x1xf32> to vector<1x8x8xf32>
    %86 = arith.mulf %83, %85 : vector<1x8x8xf32>
    %87 = vector.extract_strided_slice %29 {offsets = [0, 24], sizes = [8, 8], strides = [1, 1]} : vector<8x96xbf16> to vector<8x8xbf16>
    %88 = vector.shape_cast %87 : vector<8x8xbf16> to vector<1x8x8xbf16>
    %89 = vector.extract_strided_slice %29 {offsets = [0, 56], sizes = [8, 8], strides = [1, 1]} : vector<8x96xbf16> to vector<8x8xbf16>
    %90 = vector.shape_cast %89 : vector<8x8xbf16> to vector<1x8x8xbf16>
    %91 = vector.extract_strided_slice %29 {offsets = [0, 88], sizes = [8, 8], strides = [1, 1]} : vector<8x96xbf16> to vector<8x8xbf16>
    %92 = vector.shape_cast %91 : vector<8x8xbf16> to vector<1x8x8xbf16>
    "tpu.trace_start"() <{level = 10 : i32, message = "bnd,bmd->bnm"}> : () -> ()
    %cst_25 = arith.constant dense<0.000000e+00> : vector<1x8x8xf32>
    %93 = tpu.matmul %88, %90, %cst_25 {dimension_numbers = #tpu.dot_dimension_numbers<[2], [2], [1], [1], [0, 0, 0, 1, 1, 1], [0], [0]>} : vector<1x8x8xbf16>, vector<1x8x8xbf16>, vector<1x8x8xf32> -> vector<1x8x8xf32>
    "tpu.trace_stop"() : () -> ()
    %cst_26 = arith.constant dense<0xFF800000> : vector<1x8xf32>
    %94 = vector.multi_reduction <maximumf>, %93, %cst_26 [2] : vector<1x8x8xf32> to vector<1x8xf32>
    %95 = vector.shape_cast %94 : vector<1x8xf32> to vector<1x8x1xf32>
    %96 = vector.broadcast %95 : vector<1x8x1xf32> to vector<1x8x8xf32>
    %97 = arith.subf %93, %96 : vector<1x8x8xf32>
    %98 = math.exp %97 : vector<1x8x8xf32>
    %cst_27 = arith.constant dense<0.000000e+00> : vector<1x8xf32>
    %99 = vector.multi_reduction <add>, %98, %cst_27 [2] : vector<1x8x8xf32> to vector<1x8xf32>
    %100 = vector.shape_cast %99 : vector<1x8xf32> to vector<1x8x1xf32>
    %101 = arith.truncf %98 : vector<1x8x8xf32> to vector<1x8x8xbf16>
    "tpu.trace_start"() <{level = 10 : i32, message = "bnm,bmd->bnd"}> : () -> ()
    %cst_28 = arith.constant dense<0.000000e+00> : vector<1x8x8xf32>
    %102 = tpu.matmul %101, %92, %cst_28 {dimension_numbers = #tpu.dot_dimension_numbers<[2], [1], [1], [2], [0, 0, 0, 1, 1, 2], [0], [0]>} : vector<1x8x8xbf16>, vector<1x8x8xbf16>, vector<1x8x8xf32> -> vector<1x8x8xf32>
    "tpu.trace_stop"() : () -> ()
    %103 = tpu.reciprocal %100 {approx = true} : vector<1x8x1xf32> -> vector<1x8x1xf32>
    %104 = vector.broadcast %103 : vector<1x8x1xf32> to vector<1x8x8xf32>
    %105 = arith.mulf %102, %104 : vector<1x8x8xf32>
    %106 = tpu.concatenate %48, %67, %86, %105 in 2 : vector<1x8x8xf32>, vector<1x8x8xf32>, vector<1x8x8xf32>, vector<1x8x8xf32> -> vector<1x8x32xf32>
    %107 = vector.shape_cast %106 : vector<1x8x32xf32> to vector<8x32xf32>
    %108 = arith.truncf %107 : vector<8x32xf32> to vector<8x32xbf16>
    %c0_29 = arith.constant 0 : index
    %c0_30 = arith.constant 0 : index
    %109 = vector.load %arg5[%c0_29, %c0_30] : memref<32x32xbf16, #tpu.memory_space<vmem>>, vector<32x32xbf16>
    %cst_31 = arith.constant dense<0.000000e+00> : vector<8x32xf32>
    %110 = tpu.matmul %108, %109, %cst_31 {dimension_numbers = #tpu.dot_dimension_numbers<[1], [0], [0], [1], [0, 0, 1, 1], [], []>} : vector<8x32xbf16>, vector<32x32xbf16>, vector<8x32xf32> -> vector<8x32xf32>
    %c0_32 = arith.constant 0 : index
    %c0_33 = arith.constant 0 : index
    %111 = vector.load %arg6[%c0_32, %c0_33] : memref<1x32xf32, #tpu.memory_space<vmem>>, vector<1x32xf32>
    %112 = vector.broadcast %111 : vector<1x32xf32> to vector<8x32xf32>
    %113 = arith.addf %110, %112 : vector<8x32xf32>
    %114 = arith.addf %1, %113 : vector<8x32xf32>
    %cst_34 = arith.constant dense<0.000000e+00> : vector<8xf32>
    %115 = vector.multi_reduction <add>, %114, %cst_34 [1] : vector<8x32xf32> to vector<8xf32>
    %116 = vector.shape_cast %115 : vector<8xf32> to vector<8x1xf32>
    %cst_35 = arith.constant 3.200000e+01 : f32
    %117 = vector.broadcast %cst_35 : f32 to vector<8x1xf32>
    %118 = arith.divf %116, %117 : vector<8x1xf32>
    %119 = vector.broadcast %118 : vector<8x1xf32> to vector<8x32xf32>
    %120 = arith.subf %114, %119 : vector<8x32xf32>
    %121 = arith.mulf %120, %120 : vector<8x32xf32>
    %cst_36 = arith.constant dense<0.000000e+00> : vector<8xf32>
    %122 = vector.multi_reduction <add>, %121, %cst_36 [1] : vector<8x32xf32> to vector<8xf32>
    %123 = vector.shape_cast %122 : vector<8xf32> to vector<8x1xf32>
    %cst_37 = arith.constant 3.200000e+01 : f32
    %124 = vector.broadcast %cst_37 : f32 to vector<8x1xf32>
    %125 = arith.divf %123, %124 : vector<8x1xf32>
    %126 = vector.broadcast %118 : vector<8x1xf32> to vector<8x32xf32>
    %127 = arith.subf %114, %126 : vector<8x32xf32>
    %cst_38 = arith.constant 9.99999974E-6 : f32
    %128 = vector.broadcast %cst_38 : f32 to vector<8x1xf32>
    %129 = arith.addf %125, %128 : vector<8x1xf32>
    %130 = math.rsqrt %129 : vector<8x1xf32>
    %131 = vector.broadcast %130 : vector<8x1xf32> to vector<8x32xf32>
    %132 = arith.mulf %127, %131 : vector<8x32xf32>
    %c0_39 = arith.constant 0 : index
    %c0_40 = arith.constant 0 : index
    %133 = vector.load %arg7[%c0_39, %c0_40] : memref<1x32xf32, #tpu.memory_space<vmem>>, vector<1x32xf32>
    %134 = vector.broadcast %133 : vector<1x32xf32> to vector<8x32xf32>
    %135 = arith.mulf %132, %134 : vector<8x32xf32>
    %c0_41 = arith.constant 0 : index
    %c0_42 = arith.constant 0 : index
    %136 = vector.load %arg8[%c0_41, %c0_42] : memref<1x32xf32, #tpu.memory_space<vmem>>, vector<1x32xf32>
    %137 = vector.broadcast %136 : vector<1x32xf32> to vector<8x32xf32>
    %138 = arith.addf %135, %137 : vector<8x32xf32>
    %139 = arith.truncf %138 : vector<8x32xf32> to vector<8x32xbf16>
    %c0_43 = arith.constant 0 : index
    %c0_44 = arith.constant 0 : index
    %140 = vector.load %arg9[%c0_43, %c0_44] : memref<32x128xbf16, #tpu.memory_space<vmem>>, vector<32x128xbf16>
    %cst_45 = arith.constant dense<0.000000e+00> : vector<8x128xf32>
    %141 = tpu.matmul %139, %140, %cst_45 {dimension_numbers = #tpu.dot_dimension_numbers<[1], [0], [0], [1], [0, 0, 1, 1], [], []>} : vector<8x32xbf16>, vector<32x128xbf16>, vector<8x128xf32> -> vector<8x128xf32>
    %c0_46 = arith.constant 0 : index
    %c0_47 = arith.constant 0 : index
    %142 = vector.load %arg10[%c0_46, %c0_47] : memref<1x128xf32, #tpu.memory_space<vmem>>, vector<1x128xf32>
    %143 = vector.broadcast %142 : vector<1x128xf32> to vector<8x128xf32>
    %144 = arith.addf %141, %143 : vector<8x128xf32>
    %cst_48 = arith.constant 5.000000e-01 : f32
    %145 = vector.broadcast %cst_48 : f32 to vector<8x128xf32>
    %146 = arith.mulf %145, %144 : vector<8x128xf32>
    %cst_49 = arith.constant 0.707106769 : f32
    %147 = vector.broadcast %cst_49 : f32 to vector<8x128xf32>
    %148 = arith.mulf %144, %147 : vector<8x128xf32>
    %149 = math.absf %148 : vector<8x128xf32>
    %cst_50 = arith.constant 0.327591091 : f32
    %150 = vector.broadcast %cst_50 : f32 to vector<8x128xf32>
    %151 = arith.mulf %150, %149 : vector<8x128xf32>
    %cst_51 = arith.constant 1.000000e+00 : f32
    %152 = vector.broadcast %cst_51 : f32 to vector<8x128xf32>
    %153 = arith.addf %152, %151 : vector<8x128xf32>
    %154 = tpu.reciprocal %153 {approx = true} : vector<8x128xf32> -> vector<8x128xf32>
    %cst_52 = arith.constant 1.06140542 : f32
    %155 = vector.broadcast %cst_52 : f32 to vector<8x128xf32>
    %156 = arith.mulf %155, %154 : vector<8x128xf32>
    %cst_53 = arith.constant -1.45315206 : f32
    %157 = vector.broadcast %cst_53 : f32 to vector<8x128xf32>
    %158 = arith.addf %156, %157 : vector<8x128xf32>
    %159 = arith.mulf %158, %154 : vector<8x128xf32>
    %cst_54 = arith.constant 1.42141378 : f32
    %160 = vector.broadcast %cst_54 : f32 to vector<8x128xf32>
    %161 = arith.addf %159, %160 : vector<8x128xf32>
    %162 = arith.mulf %161, %154 : vector<8x128xf32>
    %cst_55 = arith.constant -0.284496725 : f32
    %163 = vector.broadcast %cst_55 : f32 to vector<8x128xf32>
    %164 = arith.addf %162, %163 : vector<8x128xf32>
    %165 = arith.mulf %164, %154 : vector<8x128xf32>
    %cst_56 = arith.constant 0.254829586 : f32
    %166 = vector.broadcast %cst_56 : f32 to vector<8x128xf32>
    %167 = arith.addf %165, %166 : vector<8x128xf32>
    %168 = arith.mulf %167, %154 : vector<8x128xf32>
    %cst_57 = arith.constant 0.000000e+00 : f32
    %169 = vector.broadcast %cst_57 : f32 to vector<8x128xf32>
    %170 = arith.subf %169, %149 : vector<8x128xf32>
    %171 = arith.mulf %170, %149 : vector<8x128xf32>
    %172 = math.exp %171 : vector<8x128xf32>
    %173 = arith.mulf %168, %172 : vector<8x128xf32>
    %cst_58 = arith.constant 1.000000e+00 : f32
    %174 = vector.broadcast %cst_58 : f32 to vector<8x128xf32>
    %175 = arith.subf %174, %173 : vector<8x128xf32>
    %cst_59 = arith.constant 0.000000e+00 : f32
    %176 = vector.broadcast %cst_59 : f32 to vector<8x128xf32>
    %177 = arith.cmpf oge, %148, %176 : vector<8x128xf32>
    %cst_60 = arith.constant 0.000000e+00 : f32
    %178 = vector.broadcast %cst_60 : f32 to vector<8x128xf32>
    %179 = arith.subf %178, %175 : vector<8x128xf32>
    %180 = arith.select %177, %175, %179 : vector<8x128xi1>, vector<8x128xf32>
    %cst_61 = arith.constant 1.000000e+00 : f32
    %181 = vector.broadcast %cst_61 : f32 to vector<8x128xf32>
    %182 = arith.addf %181, %180 : vector<8x128xf32>
    %183 = arith.mulf %146, %182 : vector<8x128xf32>
    %184 = arith.truncf %183 : vector<8x128xf32> to vector<8x128xbf16>
    %c0_62 = arith.constant 0 : index
    %c0_63 = arith.constant 0 : index
    %185 = vector.load %arg11[%c0_62, %c0_63] : memref<128x32xbf16, #tpu.memory_space<vmem>>, vector<128x32xbf16>
    %cst_64 = arith.constant dense<0.000000e+00> : vector<8x32xf32>
    %186 = tpu.matmul %184, %185, %cst_64 {dimension_numbers = #tpu.dot_dimension_numbers<[1], [0], [0], [1], [0, 0, 1, 1], [], []>} : vector<8x128xbf16>, vector<128x32xbf16>, vector<8x32xf32> -> vector<8x32xf32>
    %c0_65 = arith.constant 0 : index
    %c0_66 = arith.constant 0 : index
    %187 = vector.load %arg12[%c0_65, %c0_66] : memref<1x32xf32, #tpu.memory_space<vmem>>, vector<1x32xf32>
    %188 = vector.broadcast %187 : vector<1x32xf32> to vector<8x32xf32>
    %189 = arith.addf %186, %188 : vector<8x32xf32>
    %190 = arith.addf %114, %189 : vector<8x32xf32>
    %c0_67 = arith.constant 0 : index
    %c0_68 = arith.constant 0 : index
    %c0_69 = arith.constant 0 : index
    %191 = vector.load %arg13[%c0_67, %c0_68, %c0_69] : memref<1x8x32xf32, #tpu.memory_space<vmem>>, vector<1x8x32xf32>
    %192 = vector.shape_cast %191 : vector<1x8x32xf32> to vector<8x32xf32>
    %193 = vector.shape_cast %190 : vector<8x32xf32> to vector<1x8x32xf32>
    tpu.vector_store %arg13[%c0_67, %c0_68, %c0_69], %193 {strides = array<i32>} : memref<1x8x32xf32, #tpu.memory_space<vmem>>, vector<1x8x32xf32>,
    return
  }
  func.func @transform_0(%arg0: i32) -> (i32, i32, i32) {
    %c0_i32 = arith.constant 0 : i32
    %c0_i32_0 = arith.constant 0 : i32
    %c0_i32_1 = arith.constant 0 : i32
    return %arg0, %c0_i32, %c0_i32_0 : i32, i32, i32
  }
  func.func @transform_1(%arg0: i32) -> (i32, i32) {
    %c0_i32 = arith.constant 0 : i32
    %c0_i32_0 = arith.constant 0 : i32
    %c0_i32_1 = arith.constant 0 : i32
    return %c0_i32, %c0_i32_0 : i32, i32
  }
  func.func @transform_2(%arg0: i32) -> (i32, i32) {
    %c0_i32 = arith.constant 0 : i32
    %c0_i32_0 = arith.constant 0 : i32
    %c0_i32_1 = arith.constant 0 : i32
    return %c0_i32, %c0_i32_0 : i32, i32
  }
  func.func @transform_3(%arg0: i32) -> (i32, i32) {
    %c0_i32 = arith.constant 0 : i32
    %c0_i32_0 = arith.constant 0 : i32
    %c0_i32_1 = arith.constant 0 : i32
    return %c0_i32, %c0_i32_0 : i32, i32
  }
  func.func @transform_4(%arg0: i32) -> (i32, i32) {
    %c0_i32 = arith.constant 0 : i32
    %c0_i32_0 = arith.constant 0 : i32
    %c0_i32_1 = arith.constant 0 : i32
    return %c0_i32, %c0_i32_0 : i32, i32
  }
  func.func @transform_5(%arg0: i32) -> (i32, i32) {
    %c0_i32 = arith.constant 0 : i32
    %c0_i32_0 = arith.constant 0 : i32
    %c0_i32_1 = arith.constant 0 : i32
    return %c0_i32, %c0_i32_0 : i32, i32
  }
  func.func @transform_6(%arg0: i32) -> (i32, i32) {
    %c0_i32 = arith.constant 0 : i32
    %c0_i32_0 = arith.constant 0 : i32
    %c0_i32_1 = arith.constant 0 : i32
    return %c0_i32, %c0_i32_0 : i32, i32
  }
  func.func @transform_7(%arg0: i32) -> (i32, i32) {
    %c0_i32 = arith.constant 0 : i32
    %c0_i32_0 = arith.constant 0 : i32
    %c0_i32_1 = arith.constant 0 : i32
    return %c0_i32, %c0_i32_0 : i32, i32
  }
  func.func @transform_8(%arg0: i32) -> (i32, i32) {
    %c0_i32 = arith.constant 0 : i32
    %c0_i32_0 = arith.constant 0 : i32
    %c0_i32_1 = arith.constant 0 : i32
    return %c0_i32, %c0_i32_0 : i32, i32
  }
  func.func @transform_9(%arg0: i32) -> (i32, i32) {
    %c0_i32 = arith.constant 0 : i32
    %c0_i32_0 = arith.constant 0 : i32
    %c0_i32_1 = arith.constant 0 : i32
    return %c0_i32, %c0_i32_0 : i32, i32
  }
  func.func @transform_10(%arg0: i32) -> (i32, i32) {
    %c0_i32 = arith.constant 0 : i32
    %c0_i32_0 = arith.constant 0 : i32
    %c0_i32_1 = arith.constant 0 : i32
    return %c0_i32, %c0_i32_0 : i32, i32
  }
  func.func @transform_11(%arg0: i32) -> (i32, i32) {
    %c0_i32 = arith.constant 0 : i32
    %c0_i32_0 = arith.constant 0 : i32
    %c0_i32_1 = arith.constant 0 : i32
    return %c0_i32, %c0_i32_0 : i32, i32
  }
  func.func @transform_12(%arg0: i32) -> (i32, i32, i32) {
    %c0_i32 = arith.constant 0 : i32
    %c0_i32_0 = arith.constant 0 : i32
    %c0_i32_1 = arith.constant 0 : i32
    return %arg0, %c0_i32, %c0_i32_0 : i32, i32, i32
  }
}

module attributes {stable_mosaic.version = 11 : i64} {
  func.func @_block_kernel(%arg0: i32, %arg1: memref<1x8x32xf32, #tpu.memory_space<vmem>>, %arg2: memref<1x32xf32, #tpu.memory_space<vmem>>, %arg3: memref<1x32xf32, #tpu.memory_space<vmem>>, %arg4: memref<32x96xbf16, #tpu.memory_space<vmem>>, %arg5: memref<32x32xbf16, #tpu.memory_space<vmem>>, %arg6: memref<1x32xf32, #tpu.memory_space<vmem>>, %arg7: memref<1x32xf32, #tpu.memory_space<vmem>>, %arg8: memref<1x32xf32, #tpu.memory_space<vmem>>, %arg9: memref<32x128xbf16, #tpu.memory_space<vmem>>, %arg10: memref<1x128xf32, #tpu.memory_space<vmem>>, %arg11: memref<128x32xbf16, #tpu.memory_space<vmem>>, %arg12: memref<1x32xf32, #tpu.memory_space<vmem>>, %arg13: memref<1x8x32xf32, #tpu.memory_space<vmem>>) attributes {dimension_semantics = [#tpu.dimension_semantics<parallel>], iteration_bounds = array<i64: 2>, scalar_prefetch = 0 : i64, scratch_operands = 0 : i64, tpu.core_type = #tpu.core_type<tc>, window_params = [{transform_indices = @transform_0, window_bounds = array<i64: 1, 8, 32>}, {pipeline_mode = #tpu.pipeline_mode<synchronous>, transform_indices = @transform_1, window_bounds = array<i64: 1, 32>}, {pipeline_mode = #tpu.pipeline_mode<synchronous>, transform_indices = @transform_2, window_bounds = array<i64: 1, 32>}, {pipeline_mode = #tpu.pipeline_mode<synchronous>, transform_indices = @transform_3, window_bounds = array<i64: 32, 96>}, {pipeline_mode = #tpu.pipeline_mode<synchronous>, transform_indices = @transform_4, window_bounds = array<i64: 32, 32>}, {pipeline_mode = #tpu.pipeline_mode<synchronous>, transform_indices = @transform_5, window_bounds = array<i64: 1, 32>}, {pipeline_mode = #tpu.pipeline_mode<synchronous>, transform_indices = @transform_6, window_bounds = array<i64: 1, 32>}, {pipeline_mode = #tpu.pipeline_mode<synchronous>, transform_indices = @transform_7, window_bounds = array<i64: 1, 32>}, {pipeline_mode = #tpu.pipeline_mode<synchronous>, transform_indices = @transform_8, window_bounds = array<i64: 32, 128>}, {pipeline_mode = #tpu.pipeline_mode<synchronous>, transform_indices = @transform_9, window_bounds = array<i64: 1, 128>}, {pipeline_mode = #tpu.pipeline_mode<synchronous>, transform_indices = @transform_10, window_bounds = array<i64: 128, 32>}, {pipeline_mode = #tpu.pipeline_mode<synchronous>, transform_indices = @transform_11, window_bounds = array<i64: 1, 32>}, {transform_indices = @transform_12, window_bounds = array<i64: 1, 8, 32>}]} {
    %c0 = arith.constant 0 : index
    %c0_0 = arith.constant 0 : index
    %c0_1 = arith.constant 0 : index
    %0 = vector.load %arg1[%c0, %c0_0, %c0_1] : memref<1x8x32xf32, #tpu.memory_space<vmem>>, vector<1x8x32xf32>
    %1 = vector.shape_cast %0 : vector<1x8x32xf32> to vector<8x32xf32>
    %cst = arith.constant dense<0.000000e+00> : vector<8xf32>
    %2 = vector.multi_reduction <add>, %1, %cst [1] : vector<8x32xf32> to vector<8xf32>
    %3 = vector.shape_cast %2 : vector<8xf32> to vector<8x1xf32>
    %cst_2 = arith.constant 3.200000e+01 : f32
    %4 = vector.broadcast %cst_2 : f32 to vector<8x1xf32>
    %5 = arith.divf %3, %4 : vector<8x1xf32>
    %6 = vector.broadcast %5 : vector<8x1xf32> to vector<8x32xf32>
    %7 = arith.subf %1, %6 : vector<8x32xf32>
    %8 = arith.mulf %7, %7 : vector<8x32xf32>
    %cst_3 = arith.constant dense<0.000000e+00> : vector<8xf32>
    %9 = vector.multi_reduction <add>, %8, %cst_3 [1] : vector<8x32xf32> to vector<8xf32>
    %10 = vector.shape_cast %9 : vector<8xf32> to vector<8x1xf32>
    %cst_4 = arith.constant 3.200000e+01 : f32
    %11 = vector.broadcast %cst_4 : f32 to vector<8x1xf32>
    %12 = arith.divf %10, %11 : vector<8x1xf32>
    %13 = vector.broadcast %5 : vector<8x1xf32> to vector<8x32xf32>
    %14 = arith.subf %1, %13 : vector<8x32xf32>
    %cst_5 = arith.constant 9.99999974E-6 : f32
    %15 = vector.broadcast %cst_5 : f32 to vector<8x1xf32>
    %16 = arith.addf %12, %15 : vector<8x1xf32>
    %17 = math.rsqrt %16 : vector<8x1xf32>
    %18 = vector.broadcast %17 : vector<8x1xf32> to vector<8x32xf32>
    %19 = arith.mulf %14, %18 : vector<8x32xf32>
    %c0_6 = arith.constant 0 : index
    %c0_7 = arith.constant 0 : index
    %20 = vector.load %arg2[%c0_6, %c0_7] : memref<1x32xf32, #tpu.memory_space<vmem>>, vector<1x32xf32>
    %21 = vector.broadcast %20 : vector<1x32xf32> to vector<8x32xf32>
    %22 = arith.mulf %19, %21 : vector<8x32xf32>
    %c0_8 = arith.constant 0 : index
    %c0_9 = arith.constant 0 : index
    %23 = vector.load %arg3[%c0_8, %c0_9] : memref<1x32xf32, #tpu.memory_space<vmem>>, vector<1x32xf32>
    %24 = vector.broadcast %23 : vector<1x32xf32> to vector<8x32xf32>
    %25 = arith.addf %22, %24 : vector<8x32xf32>
    %26 = arith.truncf %25 : vector<8x32xf32> to vector<8x32xbf16>
    %c0_10 = arith.constant 0 : index
    %c0_11 = arith.constant 0 : index
    %27 = vector.load %arg4[%c0_10, %c0_11] : memref<32x96xbf16, #tpu.memory_space<vmem>>, vector<32x96xbf16>
    %cst_12 = arith.constant dense<0.000000e+00> : vector<8x96xf32>
    %28 = tpu.matmul %26, %27, %cst_12 {dimension_numbers = #tpu.dot_dimension_numbers<[1], [0], [0], [1], [0, 0, 1, 1], [], []>} : vector<8x32xbf16>, vector<32x96xbf16>, vector<8x96xf32> -> vector<8x96xf32>
    %29 = arith.truncf %28 : vector<8x96xf32> to vector<8x96xbf16>
    %30 = vector.extract_strided_slice %29 {offsets = [0, 0], sizes = [8, 8], strides = [1, 1]} : vector<8x96xbf16> to vector<8x8xbf16>
    %31 = vector.shape_cast %30 : vector<8x8xbf16> to vector<1x8x8xbf16>
    %32 = vector.extract_strided_slice %29 {offsets = [0, 32], sizes = [8, 8], strides = [1, 1]} : vector<8x96xbf16> to vector<8x8xbf16>
    %33 = vector.shape_cast %32 : vector<8x8xbf16> to vector<1x8x8xbf16>
    %34 = vector.extract_strided_slice %29 {offsets = [0, 64], sizes = [8, 8], strides = [1, 1]} : vector<8x96xbf16> to vector<8x8xbf16>
    %35 = vector.shape_cast %34 : vector<8x8xbf16> to vector<1x8x8xbf16>
    "tpu.trace_start"() <{level = 10 : i32, message = "bnd,bmd->bnm"}> : () -> ()
    %cst_13 = arith.constant dense<0.000000e+00> : vector<1x8x8xf32>
    %36 = tpu.matmul %31, %33, %cst_13 {dimension_numbers = #tpu.dot_dimension_numbers<[2], [2], [1], [1], [0, 0, 0, 1, 1, 1], [0], [0]>} : vector<1x8x8xbf16>, vector<1x8x8xbf16>, vector<1x8x8xf32> -> vector<1x8x8xf32>
    "tpu.trace_stop"() : () -> ()
    %cst_14 = arith.constant dense<0xFF800000> : vector<1x8xf32>
    %37 = vector.multi_reduction <maximumf>, %36, %cst_14 [2] : vector<1x8x8xf32> to vector<1x8xf32>
    %38 = vector.shape_cast %37 : vector<1x8xf32> to vector<1x8x1xf32>
    %39 = vector.broadcast %38 : vector<1x8x1xf32> to vector<1x8x8xf32>
    %40 = arith.subf %36, %39 : vector<1x8x8xf32>
    %41 = math.exp %40 : vector<1x8x8xf32>
    %cst_15 = arith.constant dense<0.000000e+00> : vector<1x8xf32>
    %42 = vector.multi_reduction <add>, %41, %cst_15 [2] : vector<1x8x8xf32> to vector<1x8xf32>
    %43 = vector.shape_cast %42 : vector<1x8xf32> to vector<1x8x1xf32>
    %44 = arith.truncf %41 : vector<1x8x8xf32> to vector<1x8x8xbf16>
    "tpu.trace_start"() <{level = 10 : i32, message = "bnm,bmd->bnd"}> : () -> ()
    %cst_16 = arith.constant dense<0.000000e+00> : vector<1x8x8xf32>
    %45 = tpu.matmul %44, %35, %cst_16 {dimension_numbers = #tpu.dot_dimension_numbers<[2], [1], [1], [2], [0, 0, 0, 1, 1, 2], [0], [0]>} : vector<1x8x8xbf16>, vector<1x8x8xbf16>, vector<1x8x8xf32> -> vector<1x8x8xf32>
    "tpu.trace_stop"() : () -> ()
    %46 = tpu.reciprocal %43 {approx = true} : vector<1x8x1xf32> -> vector<1x8x1xf32>
    %47 = vector.broadcast %46 : vector<1x8x1xf32> to vector<1x8x8xf32>
    %48 = arith.mulf %45, %47 : vector<1x8x8xf32>
    %49 = vector.extract_strided_slice %29 {offsets = [0, 8], sizes = [8, 8], strides = [1, 1]} : vector<8x96xbf16> to vector<8x8xbf16>
    %50 = vector.shape_cast %49 : vector<8x8xbf16> to vector<1x8x8xbf16>
    %51 = vector.extract_strided_slice %29 {offsets = [0, 40], sizes = [8, 8], strides = [1, 1]} : vector<8x96xbf16> to vector<8x8xbf16>
    %52 = vector.shape_cast %51 : vector<8x8xbf16> to vector<1x8x8xbf16>
    %53 = vector.extract_strided_slice %29 {offsets = [0, 72], sizes = [8, 8], strides = [1, 1]} : vector<8x96xbf16> to vector<8x8xbf16>
    %54 = vector.shape_cast %53 : vector<8x8xbf16> to vector<1x8x8xbf16>
    "tpu.trace_start"() <{level = 10 : i32, message = "bnd,bmd->bnm"}> : () -> ()
    %cst_17 = arith.constant dense<0.000000e+00> : vector<1x8x8xf32>
    %55 = tpu.matmul %50, %52, %cst_17 {dimension_numbers = #tpu.dot_dimension_numbers<[2], [2], [1], [1], [0, 0, 0, 1, 1, 1], [0], [0]>} : vector<1x8x8xbf16>, vector<1x8x8xbf16>, vector<1x8x8xf32> -> vector<1x8x8xf32>
    "tpu.trace_stop"() : () -> ()
    %cst_18 = arith.constant dense<0xFF800000> : vector<1x8xf32>
    %56 = vector.multi_reduction <maximumf>, %55, %cst_18 [2] : vector<1x8x8xf32> to vector<1x8xf32>
    %57 = vector.shape_cast %56 : vector<1x8xf32> to vector<1x8x1xf32>
    %58 = vector.broadcast %57 : vector<1x8x1xf32> to vector<1x8x8xf32>
    %59 = arith.subf %55, %58 : vector<1x8x8xf32>
    %60 = math.exp %59 : vector<1x8x8xf32>
    %cst_19 = arith.constant dense<0.000000e+00> : vector<1x8xf32>
    %61 = vector.multi_reduction <add>, %60, %cst_19 [2] : vector<1x8x8xf32> to vector<1x8xf32>
    %62 = vector.shape_cast %61 : vector<1x8xf32> to vector<1x8x1xf32>
    %63 = arith.truncf %60 : vector<1x8x8xf32> to vector<1x8x8xbf16>
    "tpu.trace_start"() <{level = 10 : i32, message = "bnm,bmd->bnd"}> : () -> ()
    %cst_20 = arith.constant dense<0.000000e+00> : vector<1x8x8xf32>
    %64 = tpu.matmul %63, %54, %cst_20 {dimension_numbers = #tpu.dot_dimension_numbers<[2], [1], [1], [2], [0, 0, 0, 1, 1, 2], [0], [0]>} : vector<1x8x8xbf16>, vector<1x8x8xbf16>, vector<1x8x8xf32> -> vector<1x8x8xf32>
    "tpu.trace_stop"() : () -> ()
    %65 = tpu.reciprocal %62 {approx = true} : vector<1x8x1xf32> -> vector<1x8x1xf32>
    %66 = vector.broadcast %65 : vector<1x8x1xf32> to vector<1x8x8xf32>
    %67 = arith.mulf %64, %66 : vector<1x8x8xf32>
    %68 = vector.extract_strided_slice %29 {offsets = [0, 16], sizes = [8, 8], strides = [1, 1]} : vector<8x96xbf16> to vector<8x8xbf16>
    %69 = vector.shape_cast %68 : vector<8x8xbf16> to vector<1x8x8xbf16>
    %70 = vector.extract_strided_slice %29 {offsets = [0, 48], sizes = [8, 8], strides = [1, 1]} : vector<8x96xbf16> to vector<8x8xbf16>
    %71 = vector.shape_cast %70 : vector<8x8xbf16> to vector<1x8x8xbf16>
    %72 = vector.extract_strided_slice %29 {offsets = [0, 80], sizes = [8, 8], strides = [1, 1]} : vector<8x96xbf16> to vector<8x8xbf16>
    %73 = vector.shape_cast %72 : vector<8x8xbf16> to vector<1x8x8xbf16>
    "tpu.trace_start"() <{level = 10 : i32, message = "bnd,bmd->bnm"}> : () -> ()
    %cst_21 = arith.constant dense<0.000000e+00> : vector<1x8x8xf32>
    %74 = tpu.matmul %69, %71, %cst_21 {dimension_numbers = #tpu.dot_dimension_numbers<[2], [2], [1], [1], [0, 0, 0, 1, 1, 1], [0], [0]>} : vector<1x8x8xbf16>, vector<1x8x8xbf16>, vector<1x8x8xf32> -> vector<1x8x8xf32>
    "tpu.trace_stop"() : () -> ()
    %cst_22 = arith.constant dense<0xFF800000> : vector<1x8xf32>
    %75 = vector.multi_reduction <maximumf>, %74, %cst_22 [2] : vector<1x8x8xf32> to vector<1x8xf32>
    %76 = vector.shape_cast %75 : vector<1x8xf32> to vector<1x8x1xf32>
    %77 = vector.broadcast %76 : vector<1x8x1xf32> to vector<1x8x8xf32>
    %78 = arith.subf %74, %77 : vector<1x8x8xf32>
    %79 = math.exp %78 : vector<1x8x8xf32>
    %cst_23 = arith.constant dense<0.000000e+00> : vector<1x8xf32>
    %80 = vector.multi_reduction <add>, %79, %cst_23 [2] : vector<1x8x8xf32> to vector<1x8xf32>
    %81 = vector.shape_cast %80 : vector<1x8xf32> to vector<1x8x1xf32>
    %82 = arith.truncf %79 : vector<1x8x8xf32> to vector<1x8x8xbf16>
    "tpu.trace_start"() <{level = 10 : i32, message = "bnm,bmd->bnd"}> : () -> ()
    %cst_24 = arith.constant dense<0.000000e+00> : vector<1x8x8xf32>
    %83 = tpu.matmul %82, %73, %cst_24 {dimension_numbers = #tpu.dot_dimension_numbers<[2], [1], [1], [2], [0, 0, 0, 1, 1, 2], [0], [0]>} : vector<1x8x8xbf16>, vector<1x8x8xbf16>, vector<1x8x8xf32> -> vector<1x8x8xf32>
    "tpu.trace_stop"() : () -> ()
    %84 = tpu.reciprocal %81 {approx = true} : vector<1x8x1xf32> -> vector<1x8x1xf32>
    %85 = vector.broadcast %84 : vector<1x8x1xf32> to vector<1x8x8xf32>
    %86 = arith.mulf %83, %85 : vector<1x8x8xf32>
    %87 = vector.extract_strided_slice %29 {offsets = [0, 24], sizes = [8, 8], strides = [1, 1]} : vector<8x96xbf16> to vector<8x8xbf16>
    %88 = vector.shape_cast %87 : vector<8x8xbf16> to vector<1x8x8xbf16>
    %89 = vector.extract_strided_slice %29 {offsets = [0, 56], sizes = [8, 8], strides = [1, 1]} : vector<8x96xbf16> to vector<8x8xbf16>
    %90 = vector.shape_cast %89 : vector<8x8xbf16> to vector<1x8x8xbf16>
    %91 = vector.extract_strided_slice %29 {offsets = [0, 88], sizes = [8, 8], strides = [1, 1]} : vector<8x96xbf16> to vector<8x8xbf16>
    %92 = vector.shape_cast %91 : vector<8x8xbf16> to vector<1x8x8xbf16>
    "tpu.trace_start"() <{level = 10 : i32, message = "bnd,bmd->bnm"}> : () -> ()
    %cst_25 = arith.constant dense<0.000000e+00> : vector<1x8x8xf32>
    %93 = tpu.matmul %88, %90, %cst_25 {dimension_numbers = #tpu.dot_dimension_numbers<[2], [2], [1], [1], [0, 0, 0, 1, 1, 1], [0], [0]>} : vector<1x8x8xbf16>, vector<1x8x8xbf16>, vector<1x8x8xf32> -> vector<1x8x8xf32>
    "tpu.trace_stop"() : () -> ()
    %cst_26 = arith.constant dense<0xFF800000> : vector<1x8xf32>
    %94 = vector.multi_reduction <maximumf>, %93, %cst_26 [2] : vector<1x8x8xf32> to vector<1x8xf32>
    %95 = vector.shape_cast %94 : vector<1x8xf32> to vector<1x8x1xf32>
    %96 = vector.broadcast %95 : vector<1x8x1xf32> to vector<1x8x8xf32>
    %97 = arith.subf %93, %96 : vector<1x8x8xf32>
    %98 = math.exp %97 : vector<1x8x8xf32>
    %cst_27 = arith.constant dense<0.000000e+00> : vector<1x8xf32>
    %99 = vector.multi_reduction <add>, %98, %cst_27 [2] : vector<1x8x8xf32> to vector<1x8xf32>
    %100 = vector.shape_cast %99 : vector<1x8xf32> to vector<1x8x1xf32>
    %101 = arith.truncf %98 : vector<1x8x8xf32> to vector<1x8x8xbf16>
    "tpu.trace_start"() <{level = 10 : i32, message = "bnm,bmd->bnd"}> : () -> ()
    %cst_28 = arith.constant dense<0.000000e+00> : vector<1x8x8xf32>
    %102 = tpu.matmul %101, %92, %cst_28 {dimension_numbers = #tpu.dot_dimension_numbers<[2], [1], [1], [2], [0, 0, 0, 1, 1, 2], [0], [0]>} : vector<1x8x8xbf16>, vector<1x8x8xbf16>, vector<1x8x8xf32> -> vector<1x8x8xf32>
    "tpu.trace_stop"() : () -> ()
    %103 = tpu.reciprocal %100 {approx = true} : vector<1x8x1xf32> -> vector<1x8x1xf32>
    %104 = vector.broadcast %103 : vector<1x8x1xf32> to vector<1x8x8xf32>
    %105 = arith.mulf %102, %104 : vector<1x8x8xf32>
    %106 = tpu.concatenate %48, %67, %86, %105 in 2 : vector<1x8x8xf32>, vector<1x8x8xf32>, vector<1x8x8xf32>, vector<1x8x8xf32> -> vector<1x8x32xf32>
    %107 = vector.shape_cast %106 : vector<1x8x32xf32> to vector<8x32xf32>
    %108 = arith.truncf %107 : vector<8x32xf32> to vector<8x32xbf16>
    %c0_29 = arith.constant 0 : index
    %c0_30 = arith.constant 0 : index
    %109 = vector.load %arg5[%c0_29, %c0_30] : memref<32x32xbf16, #tpu.memory_space<vmem>>, vector<32x32xbf16>
    %cst_31 = arith.constant dense<0.000000e+00> : vector<8x32xf32>
    %110 = tpu.matmul %108, %109, %cst_31 {dimension_numbers = #tpu.dot_dimension_numbers<[1], [0], [0], [1], [0, 0, 1, 1], [], []>} : vector<8x32xbf16>, vector<32x32xbf16>, vector<8x32xf32> -> vector<8x32xf32>
    %c0_32 = arith.constant 0 : index
    %c0_33 = arith.constant 0 : index
    %111 = vector.load %arg6[%c0_32, %c0_33] : memref<1x32xf32, #tpu.memory_space<vmem>>, vector<1x32xf32>
    %112 = vector.broadcast %111 : vector<1x32xf32> to vector<8x32xf32>
    %113 = arith.addf %110, %112 : vector<8x32xf32>
    %114 = arith.addf %1, %113 : vector<8x32xf32>
    %cst_34 = arith.constant dense<0.000000e+00> : vector<8xf32>
    %115 = vector.multi_reduction <add>, %114, %cst_34 [1] : vector<8x32xf32> to vector<8xf32>
    %116 = vector.shape_cast %115 : vector<8xf32> to vector<8x1xf32>
    %cst_35 = arith.constant 3.200000e+01 : f32
    %117 = vector.broadcast %cst_35 : f32 to vector<8x1xf32>
    %118 = arith.divf %116, %117 : vector<8x1xf32>
    %119 = vector.broadcast %118 : vector<8x1xf32> to vector<8x32xf32>
    %120 = arith.subf %114, %119 : vector<8x32xf32>
    %121 = arith.mulf %120, %120 : vector<8x32xf32>
    %cst_36 = arith.constant dense<0.000000e+00> : vector<8xf32>
    %122 = vector.multi_reduction <add>, %121, %cst_36 [1] : vector<8x32xf32> to vector<8xf32>
    %123 = vector.shape_cast %122 : vector<8xf32> to vector<8x1xf32>
    %cst_37 = arith.constant 3.200000e+01 : f32
    %124 = vector.broadcast %cst_37 : f32 to vector<8x1xf32>
    %125 = arith.divf %123, %124 : vector<8x1xf32>
    %126 = vector.broadcast %118 : vector<8x1xf32> to vector<8x32xf32>
    %127 = arith.subf %114, %126 : vector<8x32xf32>
    %cst_38 = arith.constant 9.99999974E-6 : f32
    %128 = vector.broadcast %cst_38 : f32 to vector<8x1xf32>
    %129 = arith.addf %125, %128 : vector<8x1xf32>
    %130 = math.rsqrt %129 : vector<8x1xf32>
    %131 = vector.broadcast %130 : vector<8x1xf32> to vector<8x32xf32>
    %132 = arith.mulf %127, %131 : vector<8x32xf32>
    %c0_39 = arith.constant 0 : index
    %c0_40 = arith.constant 0 : index
    %133 = vector.load %arg7[%c0_39, %c0_40] : memref<1x32xf32, #tpu.memory_space<vmem>>, vector<1x32xf32>
    %134 = vector.broadcast %133 : vector<1x32xf32> to vector<8x32xf32>
    %135 = arith.mulf %132, %134 : vector<8x32xf32>
    %c0_41 = arith.constant 0 : index
    %c0_42 = arith.constant 0 : index
    %136 = vector.load %arg8[%c0_41, %c0_42] : memref<1x32xf32, #tpu.memory_space<vmem>>, vector<1x32xf32>
    %137 = vector.broadcast %136 : vector<1x32xf32> to vector<8x32xf32>
    %138 = arith.addf %135, %137 : vector<8x32xf32>
    %139 = arith.truncf %138 : vector<8x32xf32> to vector<8x32xbf16>
    %c0_43 = arith.constant 0 : index
    %c0_44 = arith.constant 0 : index
    %140 = vector.load %arg9[%c0_43, %c0_44] : memref<32x128xbf16, #tpu.memory_space<vmem>>, vector<32x128xbf16>
    %cst_45 = arith.constant dense<0.000000e+00> : vector<8x128xf32>
    %141 = tpu.matmul %139, %140, %cst_45 {dimension_numbers = #tpu.dot_dimension_numbers<[1], [0], [0], [1], [0, 0, 1, 1], [], []>} : vector<8x32xbf16>, vector<32x128xbf16>, vector<8x128xf32> -> vector<8x128xf32>
    %c0_46 = arith.constant 0 : index
    %c0_47 = arith.constant 0 : index
    %142 = vector.load %arg10[%c0_46, %c0_47] : memref<1x128xf32, #tpu.memory_space<vmem>>, vector<1x128xf32>
    %143 = vector.broadcast %142 : vector<1x128xf32> to vector<8x128xf32>
    %144 = arith.addf %141, %143 : vector<8x128xf32>
    %cst_48 = arith.constant 5.000000e-01 : f32
    %145 = vector.broadcast %cst_48 : f32 to vector<8x128xf32>
    %146 = arith.mulf %145, %144 : vector<8x128xf32>
    %cst_49 = arith.constant 0.707106769 : f32
    %147 = vector.broadcast %cst_49 : f32 to vector<8x128xf32>
    %148 = arith.mulf %144, %147 : vector<8x128xf32>
    %149 = math.absf %148 : vector<8x128xf32>
    %cst_50 = arith.constant 0.327591091 : f32
    %150 = vector.broadcast %cst_50 : f32 to vector<8x128xf32>
    %151 = arith.mulf %150, %149 : vector<8x128xf32>
    %cst_51 = arith.constant 1.000000e+00 : f32
    %152 = vector.broadcast %cst_51 : f32 to vector<8x128xf32>
    %153 = arith.addf %152, %151 : vector<8x128xf32>
    %154 = tpu.reciprocal %153 {approx = true} : vector<8x128xf32> -> vector<8x128xf32>
    %cst_52 = arith.constant 1.06140542 : f32
    %155 = vector.broadcast %cst_52 : f32 to vector<8x128xf32>
    %156 = arith.mulf %155, %154 : vector<8x128xf32>
    %cst_53 = arith.constant -1.45315206 : f32
    %157 = vector.broadcast %cst_53 : f32 to vector<8x128xf32>
    %158 = arith.addf %156, %157 : vector<8x128xf32>
    %159 = arith.mulf %158, %154 : vector<8x128xf32>
    %cst_54 = arith.constant 1.42141378 : f32
    %160 = vector.broadcast %cst_54 : f32 to vector<8x128xf32>
    %161 = arith.addf %159, %160 : vector<8x128xf32>
    %162 = arith.mulf %161, %154 : vector<8x128xf32>
    %cst_55 = arith.constant -0.284496725 : f32
    %163 = vector.broadcast %cst_55 : f32 to vector<8x128xf32>
    %164 = arith.addf %162, %163 : vector<8x128xf32>
    %165 = arith.mulf %164, %154 : vector<8x128xf32>
    %cst_56 = arith.constant 0.254829586 : f32
    %166 = vector.broadcast %cst_56 : f32 to vector<8x128xf32>
    %167 = arith.addf %165, %166 : vector<8x128xf32>
    %168 = arith.mulf %167, %154 : vector<8x128xf32>
    %cst_57 = arith.constant 0.000000e+00 : f32
    %169 = vector.broadcast %cst_57 : f32 to vector<8x128xf32>
    %170 = arith.subf %169, %149 : vector<8x128xf32>
    %171 = arith.mulf %170, %149 : vector<8x128xf32>
    %172 = math.exp %171 : vector<8x128xf32>
    %173 = arith.mulf %168, %172 : vector<8x128xf32>
    %cst_58 = arith.constant 1.000000e+00 : f32
    %174 = vector.broadcast %cst_58 : f32 to vector<8x128xf32>
    %175 = arith.subf %174, %173 : vector<8x128xf32>
    %cst_59 = arith.constant 0.000000e+00 : f32
    %176 = vector.broadcast %cst_59 : f32 to vector<8x128xf32>
    %177 = arith.cmpf oge, %148, %176 : vector<8x128xf32>
    %cst_60 = arith.constant 0.000000e+00 : f32
    %178 = vector.broadcast %cst_60 : f32 to vector<8x128xf32>
    %179 = arith.subf %178, %175 : vector<8x128xf32>
    %180 = arith.select %177, %175, %179 : vector<8x128xi1>, vector<8x128xf32>
    %cst_61 = arith.constant 1.000000e+00 : f32
    %181 = vector.broadcast %cst_61 : f32 to vector<8x128xf32>
    %182 = arith.addf %181, %180 : vector<8x128xf32>
    %183 = arith.mulf %146, %182 : vector<8x128xf32>
    %184 = arith.truncf %183 : vector<8x128xf32> to vector<8x128xbf16>
    %c0_62 = arith.constant 0 : index
    %c0_63 = arith.constant 0 : index
    %185 = vector.load %arg11[%c0_62, %c0_63] : memref<128x32xbf16, #tpu.memory_space<vmem>>, vector<128x32xbf16>
    %cst_64 = arith.constant dense<0.000000e+00> : vector<8x32xf32>
    %186 = tpu.matmul %184, %185, %cst_64 {dimension_numbers = #tpu.dot_dimension_numbers<[1], [0], [0], [1], [0, 0, 1, 1], [], []>} : vector<8x128xbf16>, vector<128x32xbf16>, vector<8x32xf32> -> vector<8x32xf32>
    %c0_65 = arith.constant 0 : index
    %c0_66 = arith.constant 0 : index
    %187 = vector.load %arg12[%c0_65, %c0_66] : memref<1x32xf32, #tpu.memory_space<vmem>>, vector<1x32xf32>
    %188 = vector.broadcast %187 : vector<1x32xf32> to vector<8x32xf32>
    %189 = arith.addf %186, %188 : vector<8x32xf32>
    %190 = arith.addf %114, %189 : vector<8x32xf32>
    %c0_67 = arith.constant 0 : index
    %c0_68 = arith.constant 0 : index
    %c0_69 = arith.constant 0 : index
    %191 = vector.load %arg13[%c0_67, %c0_68, %c0_69] : memref<1x8x32xf32, #tpu.memory_space<vmem>>, vector<1x8x32xf32>
    %192 = vector.shape_cast %191 : vector<1x8x32xf32> to vector<8x32xf32>
    %193 = vector.shape_cast %190 : vector<8x32xf32> to vector<1x8x32xf32>
    tpu.vector_store %arg13[%c0_67, %c0_68, %c0_69], %193 {strides = array<i32>} : memref<1x8x32xf32, #tpu.memory_space<vmem>>, vector<1x8x32xf32>,
    return
  }
  func.func @transform_0(%arg0: i32) -> (i32, i32, i32) {
    %c0_i32 = arith.constant 0 : i32
    %c0_i32_0 = arith.constant 0 : i32
    %c0_i32_1 = arith.constant 0 : i32
    return %arg0, %c0_i32, %c0_i32_0 : i32, i32, i32
  }
  func.func @transform_1(%arg0: i32) -> (i32, i32) {
    %c0_i32 = arith.constant 0 : i32
    %c0_i32_0 = arith.constant 0 : i32
    %c0_i32_1 = arith.constant 0 : i32
    return %c0_i32, %c0_i32_0 : i32, i32
  }
  func.func @transform_2(%arg0: i32) -> (i32, i32) {
    %c0_i32 = arith.constant 0 : i32
    %c0_i32_0 = arith.constant 0 : i32
    %c0_i32_1 = arith.constant 0 : i32
    return %c0_i32, %c0_i32_0 : i32, i32
  }
  func.func @transform_3(%arg0: i32) -> (i32, i32) {
    %c0_i32 = arith.constant 0 : i32
    %c0_i32_0 = arith.constant 0 : i32
    %c0_i32_1 = arith.constant 0 : i32
    return %c0_i32, %c0_i32_0 : i32, i32
  }
  func.func @transform_4(%arg0: i32) -> (i32, i32) {
    %c0_i32 = arith.constant 0 : i32
    %c0_i32_0 = arith.constant 0 : i32
    %c0_i32_1 = arith.constant 0 : i32
    return %c0_i32, %c0_i32_0 : i32, i32
  }
  func.func @transform_5(%arg0: i32) -> (i32, i32) {
    %c0_i32 = arith.constant 0 : i32
    %c0_i32_0 = arith.constant 0 : i32
    %c0_i32_1 = arith.constant 0 : i32
    return %c0_i32, %c0_i32_0 : i32, i32
  }
  func.func @transform_6(%arg0: i32) -> (i32, i32) {
    %c0_i32 = arith.constant 0 : i32
    %c0_i32_0 = arith.constant 0 : i32
    %c0_i32_1 = arith.constant 0 : i32
    return %c0_i32, %c0_i32_0 : i32, i32
  }
  func.func @transform_7(%arg0: i32) -> (i32, i32) {
    %c0_i32 = arith.constant 0 : i32
    %c0_i32_0 = arith.constant 0 : i32
    %c0_i32_1 = arith.constant 0 : i32
    return %c0_i32, %c0_i32_0 : i32, i32
  }
  func.func @transform_8(%arg0: i32) -> (i32, i32) {
    %c0_i32 = arith.constant 0 : i32
    %c0_i32_0 = arith.constant 0 : i32
    %c0_i32_1 = arith.constant 0 : i32
    return %c0_i32, %c0_i32_0 : i32, i32
  }
  func.func @transform_9(%arg0: i32) -> (i32, i32) {
    %c0_i32 = arith.constant 0 : i32
    %c0_i32_0 = arith.constant 0 : i32
    %c0_i32_1 = arith.constant 0 : i32
    return %c0_i32, %c0_i32_0 : i32, i32
  }
  func.func @transform_10(%arg0: i32) -> (i32, i32) {
    %c0_i32 = arith.constant 0 : i32
    %c0_i32_0 = arith.constant 0 : i32
    %c0_i32_1 = arith.constant 0 : i32
    return %c0_i32, %c0_i32_0 : i32, i32
  }
  func.func @transform_11(%arg0: i32) -> (i32, i32) {
    %c0_i32 = arith.constant 0 : i32
    %c0_i32_0 = arith.constant 0 : i32
    %c0_i32_1 = arith.constant 0 : i32
    return %c0_i32, %c0_i32_0 : i32, i32
  }
  func.func @transform_12(%arg0: i32) -> (i32, i32, i32) {
    %c0_i32 = arith.constant 0 : i32
    %c0_i32_0 = arith.constant 0 : i32
    %c0_i32_1 = arith.constant 0 : i32
    return %arg0, %c0_i32, %c0_i32_0 : i32, i32, i32
  }
}

</mosaic_0001>

<llo_original>
// kernel: tpu_custom_call.1
$region0: #{tpu_custom_call.1}
  #allocation0 [shape = 'u32[]', space=smem, size = 0x4, offset = 0x4, fixed_abs, tag = 'smem constant byte address 0x4 - core index']
  #allocation1 [shape = 'u32[144,128]{1,0:T(1,128)}', space=vmem, size = 0x12000, scoped, tag = 'internal scratch']
  %s0 = inlined_call_operand.vmem [shape: f32[2,8,32], index: 0, kind: input, shape index: {}]
  %s1 = inlined_call_operand.vmem [shape: f32[1,32], index: 1, kind: input, shape index: {}]
  %s2 = inlined_call_operand.vmem [shape: f32[1,32], index: 2, kind: input, shape index: {}]
  %s3 = inlined_call_operand.vmem [shape: bf16[32,96], index: 3, kind: input, shape index: {}]
  %s4 = inlined_call_operand.vmem [shape: bf16[32,32], index: 4, kind: input, shape index: {}]
  %s5 = inlined_call_operand.vmem [shape: f32[1,32], index: 5, kind: input, shape index: {}]
  %s6 = inlined_call_operand.vmem [shape: f32[1,32], index: 6, kind: input, shape index: {}]
  %s7 = inlined_call_operand.vmem [shape: f32[1,32], index: 7, kind: input, shape index: {}]
  %s8 = inlined_call_operand.vmem [shape: bf16[32,128], index: 8, kind: input, shape index: {}]
  %s9 = inlined_call_operand.vmem [shape: f32[1,128], index: 9, kind: input, shape index: {}]
  %s10 = inlined_call_operand.vmem [shape: bf16[128,32], index: 10, kind: input, shape index: {}]
  %s11 = inlined_call_operand.vmem [shape: f32[1,32], index: 11, kind: input, shape index: {}]
  %s12 = inlined_call_operand.hbm [shape: f32[2,8,32], index: 12, kind: output, shape index: {}]
  %s13 = sld [smem:[#allocation0]]
  $region81: #{tpu_custom_call.1} parent=0
    _
  %s15 = ssub.s32 1, %s13
  %s16 = scalar_select 0, %s15, %s13
  $region1: #{tpu_custom_call.1} parent=0
    #allocation2 [shape = 'u8[8192]{0}', space=vmem, size = 0x2000, scoped, tag = 'output window, operand 0']
    #allocation3 [shape = 's32[2]{0}', space=sflag, size = 0x8, scoped, tag = 'scoped memory for tpu_custom_call.1']
    %17 = vsyncpa [#allocation3], 0
    %s18 = scalar_lea.sflag [#allocation3], 1
    %19 = vsyncpa %s18, 0
    loop: start=0, step=1, limit=4
    $region2: #{tpu_custom_call.1} parent=1 // loop_pre_header
      _
    $region3: #{tpu_custom_call.1} parent=1 // loop_header
      %s21 = sphi 0, %s25
      %p22 = scmp.ge.s32.totalorder %s21, 4
      %s31 = sphi 0, %s33
      %s34 = sphi 0, %s31
      %s35 = sphi 0, %s34
      %s51 = sphi 0, %s35
      %s55 = sphi 0, %s55
      %s57 = sphi 0, %s55
      %s58 = sphi 0, %s57
      %s72 = sphi 0, %s58
      %s76 = sphi 0, %s76
      %s78 = sphi 0, %s76
      %s79 = sphi 0, %s78
      %s93 = sphi 0, %s79
      %s97 = sphi 0, %s97
      %s99 = sphi 0, %s97
      %s100 = sphi 0, %s99
      %s114 = sphi 0, %s100
      %s118 = sphi 0, %s118
      %s120 = sphi 0, %s118
      %s121 = sphi 0, %s120
      %s135 = sphi 0, %s121
      %s139 = sphi 0, %s139
      %s141 = sphi 0, %s139
      %s142 = sphi 0, %s141
      %s156 = sphi 0, %s142
      %s160 = sphi 0, %s160
      %s162 = sphi 0, %s160
      %s163 = sphi 0, %s162
      %s177 = sphi 0, %s163
      %s181 = sphi 0, %s181
      %s183 = sphi 0, %s181
      %s184 = sphi 0, %s183
      %s198 = sphi 0, %s184
      %s202 = sphi 0, %s202
      %s204 = sphi 0, %s202
      %s205 = sphi 0, %s204
      %s219 = sphi 0, %s205
      %s223 = sphi 0, %s223
      %s225 = sphi 0, %s223
      %s226 = sphi 0, %s225
      %s240 = sphi 0, %s226
      %s244 = sphi 0, %s244
      %s246 = sphi 0, %s244
      %s247 = sphi 0, %s246
      %s261 = sphi 0, %s247
      %s265 = sphi 0, %s265
      %s267 = sphi 0, %s265
      %s268 = sphi 0, %s267
      %s282 = sphi 0, %s268
      %s288 = sphi 0, %s290
      %s291 = sphi 0, %s288
      %s292 = sphi 0, %s291
      %s308 = sphi 0, %s292
    $region4: #{tpu_custom_call.1} parent=1 // loop_header_branch
      %24 = sbr.rel (%p22) target = $region8
    $region5: #{tpu_custom_call.1} parent=1 // loop_body
      %s26 = ssub.s32 %s21, 1
      %s27 = ssub.s32 %s21, 2
      %s28 = sadd.s32 %s21, 1
      %s29 = ssub.s32 %s21, %s28
      %p30 = scmp.eq.s32.totalorder %s29, 0
      %s32 = sadd.s32 %s31, 1
      %s33 = scalar_select %p30, %s31, %s32
      %p36 = pneg %p30
      %p37 = scmp.eq.s32.totalorder %s21, 1
      %p38 = por %p36, %p37
      %p39 = scmp.ne.s32.totalorder %s31, %s34
      %p40 = scmp.eq.s32.totalorder %s21, 0
      %p41 = por %p39, %p40
      %p42 = scmp.ne.s32.totalorder %s31, %s34
      %p43 = scmp.eq.s32.totalorder %s26, 1
      %p44 = por %p42, %p43
      %p45 = scmp.ne.s32.totalorder %s34, %s35
      %p46 = scmp.eq.s32.totalorder %s26, 0
      %p47 = por %p45, %p46
      %p48 = scmp.ne.s32.totalorder %s34, %s35
      %p49 = scmp.eq.s32.totalorder %s27, 1
      %p50 = por %p48, %p49
      %p52 = scmp.ne.s32.totalorder %s35, %s51
      %p53 = scmp.eq.s32.totalorder %s27, 0
      %p54 = por %p52, %p53
      %s56 = sadd.s32 %s55, 1
      %p59 = scmp.eq.s32.totalorder %s21, 1
      %p60 = scmp.ne.s32.totalorder %s55, %s57
      %p61 = scmp.eq.s32.totalorder %s21, 0
      %p62 = por %p60, %p61
      %p63 = scmp.ne.s32.totalorder %s55, %s57
      %p64 = scmp.eq.s32.totalorder %s26, 1
      %p65 = por %p63, %p64
      %p66 = scmp.ne.s32.totalorder %s57, %s58
      %p67 = scmp.eq.s32.totalorder %s26, 0
      %p68 = por %p66, %p67
      %p69 = scmp.ne.s32.totalorder %s57, %s58
      %p70 = scmp.eq.s32.totalorder %s27, 1
      %p71 = por %p69, %p70
      %p73 = scmp.ne.s32.totalorder %s58, %s72
      %p74 = scmp.eq.s32.totalorder %s27, 0
      %p75 = por %p73, %p74
      %s77 = sadd.s32 %s76, 1
      %p80 = scmp.eq.s32.totalorder %s21, 1
      %p81 = scmp.ne.s32.totalorder %s76, %s78
      %p82 = scmp.eq.s32.totalorder %s21, 0
      %p83 = por %p81, %p82
      %p84 = scmp.ne.s32.totalorder %s76, %s78
      %p85 = scmp.eq.s32.totalorder %s26, 1
      %p86 = por %p84, %p85
      %p87 = scmp.ne.s32.totalorder %s78, %s79
      %p88 = scmp.eq.s32.totalorder %s26, 0
      %p89 = por %p87, %p88
      %p90 = scmp.ne.s32.totalorder %s78, %s79
      %p91 = scmp.eq.s32.totalorder %s27, 1
      %p92 = por %p90, %p91
      %p94 = scmp.ne.s32.totalorder %s79, %s93
      %p95 = scmp.eq.s32.totalorder %s27, 0
      %p96 = por %p94, %p95
      %s98 = sadd.s32 %s97, 1
      %p101 = scmp.eq.s32.totalorder %s21, 1
      %p102 = scmp.ne.s32.totalorder %s97, %s99
      %p103 = scmp.eq.s32.totalorder %s21, 0
      %p104 = por %p102, %p103
      %p105 = scmp.ne.s32.totalorder %s97, %s99
      %p106 = scmp.eq.s32.totalorder %s26, 1
      %p107 = por %p105, %p106
      %p108 = scmp.ne.s32.totalorder %s99, %s100
      %p109 = scmp.eq.s32.totalorder %s26, 0
      %p110 = por %p108, %p109
      %p111 = scmp.ne.s32.totalorder %s99, %s100
      %p112 = scmp.eq.s32.totalorder %s27, 1
      %p113 = por %p111, %p112
      %p115 = scmp.ne.s32.totalorder %s100, %s114
      %p116 = scmp.eq.s32.totalorder %s27, 0
      %p117 = por %p115, %p116
      %s119 = sadd.s32 %s118, 1
      %p122 = scmp.eq.s32.totalorder %s21, 1
      %p123 = scmp.ne.s32.totalorder %s118, %s120
      %p124 = scmp.eq.s32.totalorder %s21, 0
      %p125 = por %p123, %p124
      %p126 = scmp.ne.s32.totalorder %s118, %s120
      %p127 = scmp.eq.s32.totalorder %s26, 1
      %p128 = por %p126, %p127
      %p129 = scmp.ne.s32.totalorder %s120, %s121
      %p130 = scmp.eq.s32.totalorder %s26, 0
      %p131 = por %p129, %p130
      %p132 = scmp.ne.s32.totalorder %s120, %s121
      %p133 = scmp.eq.s32.totalorder %s27, 1
      %p134 = por %p132, %p133
      %p136 = scmp.ne.s32.totalorder %s121, %s135
      %p137 = scmp.eq.s32.totalorder %s27, 0
      %p138 = por %p136, %p137
      %s140 = sadd.s32 %s139, 1
      %p143 = scmp.eq.s32.totalorder %s21, 1
      %p144 = scmp.ne.s32.totalorder %s139, %s141
      %p145 = scmp.eq.s32.totalorder %s21, 0
      %p146 = por %p144, %p145
      %p147 = scmp.ne.s32.totalorder %s139, %s141
      %p148 = scmp.eq.s32.totalorder %s26, 1
      %p149 = por %p147, %p148
      %p150 = scmp.ne.s32.totalorder %s141, %s142
      %p151 = scmp.eq.s32.totalorder %s26, 0
      %p152 = por %p150, %p151
      %p153 = scmp.ne.s32.totalorder %s141, %s142
      %p154 = scmp.eq.s32.totalorder %s27, 1
      %p155 = por %p153, %p154
      %p157 = scmp.ne.s32.totalorder %s142, %s156
      %p158 = scmp.eq.s32.totalorder %s27, 0
      %p159 = por %p157, %p158
      %s161 = sadd.s32 %s160, 1
      %p164 = scmp.eq.s32.totalorder %s21, 1
      %p165 = scmp.ne.s32.totalorder %s160, %s162
      %p166 = scmp.eq.s32.totalorder %s21, 0
      %p167 = por %p165, %p166
      %p168 = scmp.ne.s32.totalorder %s160, %s162
      %p169 = scmp.eq.s32.totalorder %s26, 1
      %p170 = por %p168, %p169
      %p171 = scmp.ne.s32.totalorder %s162, %s163
      %p172 = scmp.eq.s32.totalorder %s26, 0
      %p173 = por %p171, %p172
      %p174 = scmp.ne.s32.totalorder %s162, %s163
      %p175 = scmp.eq.s32.totalorder %s27, 1
      %p176 = por %p174, %p175
      %p178 = scmp.ne.s32.totalorder %s163, %s177
      %p179 = scmp.eq.s32.totalorder %s27, 0
      %p180 = por %p178, %p179
      %s182 = sadd.s32 %s181, 1
      %p185 = scmp.eq.s32.totalorder %s21, 1
      %p186 = scmp.ne.s32.totalorder %s181, %s183
      %p187 = scmp.eq.s32.totalorder %s21, 0
      %p188 = por %p186, %p187
      %p189 = scmp.ne.s32.totalorder %s181, %s183
      %p190 = scmp.eq.s32.totalorder %s26, 1
      %p191 = por %p189, %p190
      %p192 = scmp.ne.s32.totalorder %s183, %s184
      %p193 = scmp.eq.s32.totalorder %s26, 0
      %p194 = por %p192, %p193
      %p195 = scmp.ne.s32.totalorder %s183, %s184
      %p196 = scmp.eq.s32.totalorder %s27, 1
      %p197 = por %p195, %p196
      %p199 = scmp.ne.s32.totalorder %s184, %s198
      %p200 = scmp.eq.s32.totalorder %s27, 0
      %p201 = por %p199, %p200
      %s203 = sadd.s32 %s202, 1
      %p206 = scmp.eq.s32.totalorder %s21, 1
      %p207 = scmp.ne.s32.totalorder %s202, %s204
      %p208 = scmp.eq.s32.totalorder %s21, 0
      %p209 = por %p207, %p208
      %p210 = scmp.ne.s32.totalorder %s202, %s204
      %p211 = scmp.eq.s32.totalorder %s26, 1
      %p212 = por %p210, %p211
      %p213 = scmp.ne.s32.totalorder %s204, %s205
      %p214 = scmp.eq.s32.totalorder %s26, 0
      %p215 = por %p213, %p214
      %p216 = scmp.ne.s32.totalorder %s204, %s205
      %p217 = scmp.eq.s32.totalorder %s27, 1
      %p218 = por %p216, %p217
      %p220 = scmp.ne.s32.totalorder %s205, %s219
      %p221 = scmp.eq.s32.totalorder %s27, 0
      %p222 = por %p220, %p221
      %s224 = sadd.s32 %s223, 1
      %p227 = scmp.eq.s32.totalorder %s21, 1
      %p228 = scmp.ne.s32.totalorder %s223, %s225
      %p229 = scmp.eq.s32.totalorder %s21, 0
      %p230 = por %p228, %p229
      %p231 = scmp.ne.s32.totalorder %s223, %s225
      %p232 = scmp.eq.s32.totalorder %s26, 1
      %p233 = por %p231, %p232
      %p234 = scmp.ne.s32.totalorder %s225, %s226
      %p235 = scmp.eq.s32.totalorder %s26, 0
      %p236 = por %p234, %p235
      %p237 = scmp.ne.s32.totalorder %s225, %s226
      %p238 = scmp.eq.s32.totalorder %s27, 1
      %p239 = por %p237, %p238
      %p241 = scmp.ne.s32.totalorder %s226, %s240
      %p242 = scmp.eq.s32.totalorder %s27, 0
      %p243 = por %p241, %p242
      %s245 = sadd.s32 %s244, 1
      %p248 = scmp.eq.s32.totalorder %s21, 1
      %p249 = scmp.ne.s32.totalorder %s244, %s246
      %p250 = scmp.eq.s32.totalorder %s21, 0
      %p251 = por %p249, %p250
      %p252 = scmp.ne.s32.totalorder %s244, %s246
      %p253 = scmp.eq.s32.totalorder %s26, 1
      %p254 = por %p252, %p253
      %p255 = scmp.ne.s32.totalorder %s246, %s247
      %p256 = scmp.eq.s32.totalorder %s26, 0
      %p257 = por %p255, %p256
      %p258 = scmp.ne.s32.totalorder %s246, %s247
      %p259 = scmp.eq.s32.totalorder %s27, 1
      %p260 = por %p258, %p259
      %p262 = scmp.ne.s32.totalorder %s247, %s261
      %p263 = scmp.eq.s32.totalorder %s27, 0
      %p264 = por %p262, %p263
      %s266 = sadd.s32 %s265, 1
      %p269 = scmp.eq.s32.totalorder %s21, 1
      %p270 = scmp.ne.s32.totalorder %s265, %s267
      %p271 = scmp.eq.s32.totalorder %s21, 0
      %p272 = por %p270, %p271
      %p273 = scmp.ne.s32.totalorder %s265, %s267
      %p274 = scmp.eq.s32.totalorder %s26, 1
      %p275 = por %p273, %p274
      %p276 = scmp.ne.s32.totalorder %s267, %s268
      %p277 = scmp.eq.s32.totalorder %s26, 0
      %p278 = por %p276, %p277
      %p279 = scmp.ne.s32.totalorder %s267, %s268
      %p280 = scmp.eq.s32.totalorder %s27, 1
      %p281 = por %p279, %p280
      %p283 = scmp.ne.s32.totalorder %s268, %s282
      %p284 = scmp.eq.s32.totalorder %s27, 0
      %p285 = por %p283, %p284
      %s286 = ssub.s32 %s21, %s28
      %p287 = scmp.eq.s32.totalorder %s286, 0
      %s289 = sadd.s32 %s288, 1
      %s290 = scalar_select %p287, %s288, %s289
      %p293 = pneg %p287
      %p294 = scmp.eq.s32.totalorder %s21, 1
      %p295 = por %p293, %p294
      %p296 = scmp.ne.s32.totalorder %s288, %s291
      %p297 = scmp.eq.s32.totalorder %s21, 0
      %p298 = por %p296, %p297
      %p299 = scmp.ne.s32.totalorder %s288, %s291
      %p300 = scmp.eq.s32.totalorder %s26, 1
      %p301 = por %p299, %p300
      %p302 = scmp.ne.s32.totalorder %s291, %s292
      %p303 = scmp.eq.s32.totalorder %s26, 0
      %p304 = por %p302, %p303
      %p305 = scmp.ne.s32.totalorder %s291, %s292
      %p306 = scmp.eq.s32.totalorder %s27, 1
      %p307 = por %p305, %p306
      %p309 = scmp.ne.s32.totalorder %s292, %s308
      %p310 = scmp.eq.s32.totalorder %s27, 0
      %p311 = por %p309, %p310
      %p312 = scmp.le.s32.totalorder 1, %s21
      %p313 = scmp.lt.s32.totalorder %s21, 3
      %p314 = pnand %p312, %p313
      %p315 = pneg %p314
      // Predicated region
      $region9: #{tpu_custom_call.1} parent=5 // pred_check
        _
      $region10: #{tpu_custom_call.1} parent=5 // pred_check_branch
        %317 = sbr.rel (%p314) target = $region12
      $region11: #{tpu_custom_call.1} parent=5 // pred_region
        %s318 = ssub.s32 %s21, 1
        // Predicated region
        $region13: #{tpu_custom_call.1} parent=11 // pred_check
          %p319 = pneg %p68
        $region14: #{tpu_custom_call.1} parent=11 // pred_check_branch
          %321 = sbr.rel (%p319) target = $region16
        $region15: #{tpu_custom_call.1} parent=11 // pred_region
          _
        $region16: #{tpu_custom_call.1} parent=11 // pred_fallthru
          _
        // Predicated region
        $region17: #{tpu_custom_call.1} parent=11 // pred_check
          %p322 = pneg %p89
        $region18: #{tpu_custom_call.1} parent=11 // pred_check_branch
          %324 = sbr.rel (%p322) target = $region20
        $region19: #{tpu_custom_call.1} parent=11 // pred_region
          _
        $region20: #{tpu_custom_call.1} parent=11 // pred_fallthru
          _
        // Predicated region
        $region21: #{tpu_custom_call.1} parent=11 // pred_check
          %p325 = pneg %p110
        $region22: #{tpu_custom_call.1} parent=11 // pred_check_branch
          %327 = sbr.rel (%p325) target = $region24
        $region23: #{tpu_custom_call.1} parent=11 // pred_region
          _
        $region24: #{tpu_custom_call.1} parent=11 // pred_fallthru
          _
        // Predicated region
        $region25: #{tpu_custom_call.1} parent=11 // pred_check
          %p328 = pneg %p131
        $region26: #{tpu_custom_call.1} parent=11 // pred_check_branch
          %330 = sbr.rel (%p328) target = $region28
        $region27: #{tpu_custom_call.1} parent=11 // pred_region
          _
        $region28: #{tpu_custom_call.1} parent=11 // pred_fallthru
          _
        // Predicated region
        $region29: #{tpu_custom_call.1} parent=11 // pred_check
          %p331 = pneg %p152
        $region30: #{tpu_custom_call.1} parent=11 // pred_check_branch
          %333 = sbr.rel (%p331) target = $region32
        $region31: #{tpu_custom_call.1} parent=11 // pred_region
          _
        $region32: #{tpu_custom_call.1} parent=11 // pred_fallthru
          _
        // Predicated region
        $region33: #{tpu_custom_call.1} parent=11 // pred_check
          %p334 = pneg %p173
        $region34: #{tpu_custom_call.1} parent=11 // pred_check_branch
          %336 = sbr.rel (%p334) target = $region36
        $region35: #{tpu_custom_call.1} parent=11 // pred_region
          _
        $region36: #{tpu_custom_call.1} parent=11 // pred_fallthru
          _
        // Predicated region
        $region37: #{tpu_custom_call.1} parent=11 // pred_check
          %p337 = pneg %p194
        $region38: #{tpu_custom_call.1} parent=11 // pred_check_branch
          %339 = sbr.rel (%p337) target = $region40
        $region39: #{tpu_custom_call.1} parent=11 // pred_region
          _
        $region40: #{tpu_custom_call.1} parent=11 // pred_fallthru
          _
        // Predicated region
        $region41: #{tpu_custom_call.1} parent=11 // pred_check
          %p340 = pneg %p215
        $region42: #{tpu_custom_call.1} parent=11 // pred_check_branch
          %342 = sbr.rel (%p340) target = $region44
        $region43: #{tpu_custom_call.1} parent=11 // pred_region
          _
        $region44: #{tpu_custom_call.1} parent=11 // pred_fallthru
          _
        // Predicated region
        $region45: #{tpu_custom_call.1} parent=11 // pred_check
          %p343 = pneg %p236
        $region46: #{tpu_custom_call.1} parent=11 // pred_check_branch
          %345 = sbr.rel (%p343) target = $region48
        $region47: #{tpu_custom_call.1} parent=11 // pred_region
          _
        $region48: #{tpu_custom_call.1} parent=11 // pred_fallthru
          _
        // Predicated region
        $region49: #{tpu_custom_call.1} parent=11 // pred_check
          %p346 = pneg %p257
        $region50: #{tpu_custom_call.1} parent=11 // pred_check_branch
          %348 = sbr.rel (%p346) target = $region52
        $region51: #{tpu_custom_call.1} parent=11 // pred_region
          _
        $region52: #{tpu_custom_call.1} parent=11 // pred_fallthru
          _
        // Predicated region
        $region53: #{tpu_custom_call.1} parent=11 // pred_check
          %p349 = pneg %p278
        $region54: #{tpu_custom_call.1} parent=11 // pred_check_branch
          %351 = sbr.rel (%p349) target = $region56
        $region55: #{tpu_custom_call.1} parent=11 // pred_region
          _
        $region56: #{tpu_custom_call.1} parent=11 // pred_fallthru
          _
      $region12: #{tpu_custom_call.1} parent=5 // pred_fallthru
        _
      %p352 = scmp.lt.s32.totalorder %s21, 2
      // Predicated region
      $region57: #{tpu_custom_call.1} parent=5 // pred_check
        %p353 = pneg %p352
      $region58: #{tpu_custom_call.1} parent=5 // pred_check_branch
        %355 = sbr.rel (%p353) target = $region60
      $region59: #{tpu_custom_call.1} parent=5 // pred_region
        // Predicated region
        $region61: #{tpu_custom_call.1} parent=59 // pred_check
          %p356 = pneg %p41
        $region62: #{tpu_custom_call.1} parent=59 // pred_check_branch
          %358 = sbr.rel (%p356) target = $region64
        $region63: #{tpu_custom_call.1} parent=59 // pred_region
          %p359 = scmp.lt.s32.totalorder %s21, 1
          %s360 = scalar_select %p359, %s21, 1
          %s361 = smul.addr %s360, 8
          %s362 = scalar_lea.vmem %s0, %s361
        $region64: #{tpu_custom_call.1} parent=59 // pred_fallthru
          _
      $region60: #{tpu_custom_call.1} parent=5 // pred_fallthru
        _
      %p363 = scmp.le.s32.totalorder 1, %s21
      %p364 = scmp.lt.s32.totalorder %s21, 3
      %p365 = pnand %p363, %p364
      %p366 = pneg %p365
      // Predicated region
      $region65: #{tpu_custom_call.1} parent=5 // pred_check
        _
      $region66: #{tpu_custom_call.1} parent=5 // pred_check_branch
        %368 = sbr.rel (%p365) target = $region68
      $region67: #{tpu_custom_call.1} parent=5 // pred_region
        %s369 = ssub.s32 %s21, 1
        %p370 = scmp.lt.s32.totalorder %s26, 1
        %s371 = scalar_select %p370, %s26, 1
        %s372 = smul.addr %s371, 8
        %s373 = scalar_lea.vmem %s0, %s372
        %p374 = pneg %p47
        %p375 = pneg %p44
        %p376 = pneg %p68
        %p377 = pneg %p65
        %p378 = pneg %p89
        %p379 = pneg %p86
        %p380 = pneg %p110
        %p381 = pneg %p107
        %p382 = pneg %p131
        %p383 = pneg %p128
        %p384 = pneg %p152
        %p385 = pneg %p149
        %p386 = pneg %p173
        %p387 = pneg %p170
        %p388 = pneg %p194
        %p389 = pneg %p191
        %p390 = pneg %p215
        %p391 = pneg %p212
        %p392 = pneg %p236
        %p393 = pneg %p233
        %p394 = pneg %p257
        %p395 = pneg %p254
        %p396 = pneg %p278
        %p397 = pneg %p275
        %p398 = pneg %p304
        %p399 = pneg %p301
        %s400 = sand.u32 %s291, 1
        %s401 = scalar_lea.sflag [#allocation3], %s400
        %s402 = sand.u32 %s291, 1
        %s403 = smul.addr %s402, 8
        %s404 = scalar_lea.vmem [#allocation2], %s403
        %p405 = scmp.lt.s32.totalorder %s26, 1
        %s406 = scalar_select %p405, %s26, 1
        %s407 = smul.addr %s406, 8
        %s408 = scalar_lea.vmem %s0, %s407
        %v410 = vld [vmem:[%s408] sm:$0xff]
        %vm411 = vcmask 261120
        %v412 = vsel %vm411, %v410, 0.0
        %413 = vadd.xlane.f32.xlu0 %v412
        %v414 = vpop.xlane.xlu0 %413
        %v415 = vrcp.pop 32.0
        %v416 = vmul.f32 %v414, %v415
        %v417 = vsub.f32 %v410, %v416
        %v418 = vmul.f32 %v417, %v417
        %v419 = vsel %vm411, %v418, 0.0
        %420 = vadd.xlane.f32.xlu0 %v419
        %v421 = vpop.xlane.xlu0 %420
        %v422 = vmul.f32 %v421, %v415
        %v423 = vadd.f32 %v422, 1e-05
        %v424 = vrsqrt.pop %v423
        %v425 = vmul.f32 %v417, %v424
        %v426 = vld [vmem:[%s1] sm:$0x1]
        %v428 = vlaneseq
        %v429 = vshrl.u32 %v428, 7
        %v430 = vsub.s32 0, %v429
        %v431 = vrot.slane %v426, %v430
        %v433 = vmul.f32 %v425, %v431
        %v434 = vld [vmem:[%s2] sm:$0x1]
        %v436 = vlaneseq
        %v437 = vshrl.u32 %v436, 7
        %v438 = vsub.s32 0, %v437
        %v439 = vrot.slane %v434, %v438
        %v441 = vadd.f32 %v433, %v439
        %v442 = vpack.c.bf16 %v441, %v441
        %v443 = vld [vmem:[%s3] sm:$0xf]
        %v444 = vld [vmem:[%s3 + $0x4] sm:$0xf]
        %v445 = vld [vmem:[%s3 + $0x8] sm:$0xf]
        %v446 = vld [vmem:[%s3 + $0xc] sm:$0xf]
        %v451 = vunpack.c.l.b16 %v443
        %v452 = vunpack.c.l.b16 %v444
        %v453 = vunpack.c.l.b16 %v445
        %v454 = vunpack.c.l.b16 %v446
        %v455 = vpack.c.b16 %v452, %v451
        %v456 = vpack.c.b16 %v454, %v453
        %v460 = vsel %vm411, %v442, 0
        %462 = vmatprep.subr.bf16.mxu0 0
        %463 = vmatpush1.bf16.msra.mxu0 0
        %464 = vmatprep.subr.bf16.mxu0 0
        %465 = vmatpush1.bf16.msra.mxu0 0
        %466 = vmatprep.subr.bf16.mxu0 0
        %467 = vmatpush1.bf16.msra.mxu0 0
        %468 = vmatprep.subr.bf16.mxu0 0
        %469 = vmatpush1.bf16.msra.mxu0 0
        %470 = vmatprep.subr.bf16.mxu0 0
        %471 = vmatpush1.bf16.msra.mxu0 0
        %472 = vmatprep.subr.bf16.mxu0 0
        %473 = vmatpush1.bf16.msra.mxu0 0
        %474 = vmatprep.subr.bf16.mxu0 0
        %475 = vmatpush1.bf16.msra.mxu0 %v456
        %476 = vmatprep.subr.bf16.mxu0 0
        %477 = vmatpush1.bf16.msra.mxu0 %v455
        %478 = vmatprep.subr.bf16.mxu0 0
        %479 = vmatpush2.bf16.msra.mxu0 0
        %480 = vmatprep.subr.bf16.mxu0 0
        %481 = vmatpush2.bf16.msra.mxu0 0
        %482 = vmatprep.subr.bf16.mxu0 0
        %483 = vmatpush2.bf16.msra.mxu0 0
        %484 = vmatprep.subr.bf16.mxu0 0
        %485 = vmatpush2.bf16.msra.mxu0 0
        %486 = vmatprep.subr.bf16.mxu0 0
        %487 = vmatpush2.bf16.msra.mxu0 0
        %488 = vmatprep.subr.bf16.mxu0 0
        %489 = vmatpush2.bf16.msra.mxu0 0
        %490 = vmatprep.subr.bf16.mxu0 0
        %491 = vmatpush2.bf16.msra.mxu0 0
        %492 = vmatprep.subr.bf16.mxu0 0
        %493 = vmatpush2.bf16.msra.mxu0 0
        %494 = vmatprep.mubr.bf16.mxu0 0
        %495 = vmatmul.mubr.bf16.gmra.mxu0 %v460
        %v496 = vpop.f32.mrf.mxu0
        %v497 = vadd.f32 0.0, %v496
        %v498 = vpop.f32.mrf.mxu0
        %v499 = vpop.f32.mrf.mxu0
        %v500 = vpop.f32.mrf.mxu0
        %501 = vdwg.mxu0
        %v502 = vpack.c.bf16 %v497, %v497
        %504 = vrot.lane.b32.xlu0 %v502, 96
        %v505 = vpop.permute.xlu0 %504
        %vm506 = vcmask 64512
        %v508 = vsel %vm506, %v502, 0
        %v511 = vsel %vm506, %v505, 0
        %513 = vmatprep.subr.bf16.mxu0 0
        %514 = vmatpush1.bf16.xpose.msra.mxu0 0
        %515 = vmatprep.subr.bf16.mxu0 0
        %516 = vmatpush1.bf16.xpose.msra.mxu0 0
        %517 = vmatprep.subr.bf16.mxu0 0
        %518 = vmatpush1.bf16.xpose.msra.mxu0 0
        %519 = vmatprep.subr.bf16.mxu0 0
        %520 = vmatpush1.bf16.xpose.msra.mxu0 0
        %521 = vmatprep.subr.bf16.mxu0 0
        %522 = vmatpush1.bf16.xpose.msra.mxu0 0
        %523 = vmatprep.subr.bf16.mxu0 0
        %524 = vmatpush1.bf16.xpose.msra.mxu0 0
        %525 = vmatprep.subr.bf16.mxu0 0
        %526 = vmatpush1.bf16.xpose.msra.mxu0 0
        %527 = vmatprep.subr.bf16.mxu0 0
        %528 = vmatpush1.bf16.xpose.msra.mxu0 %v511
        %529 = vmatprep.subr.bf16.mxu0 0
        %530 = vmatpush2.bf16.xpose.msra.mxu0 0
        %531 = vmatprep.subr.bf16.mxu0 0
        %532 = vmatpush2.bf16.xpose.msra.mxu0 0
        %533 = vmatprep.subr.bf16.mxu0 0
        %534 = vmatpush2.bf16.xpose.msra.mxu0 0
        %535 = vmatprep.subr.bf16.mxu0 0
        %536 = vmatpush2.bf16.xpose.msra.mxu0 0
        %537 = vmatprep.subr.bf16.mxu0 0
        %538 = vmatpush2.bf16.xpose.msra.mxu0 0
        %539 = vmatprep.subr.bf16.mxu0 0
        %540 = vmatpush2.bf16.xpose.msra.mxu0 0
        %541 = vmatprep.subr.bf16.mxu0 0
        %542 = vmatpush2.bf16.xpose.msra.mxu0 0
        %543 = vmatprep.subr.bf16.mxu0 0
        %544 = vmatpush2.bf16.xpose.msra.mxu0 0
        %545 = vmatprep.mubr.bf16.mxu0 0
        %546 = vmatmul.mubr.bf16.gmra.mxu0 %v508
        %v547 = vpop.f32.mrf.mxu0
        %v548 = vadd.f32 0.0, %v547
        %v549 = vpop.f32.mrf.mxu0
        %v550 = vpop.f32.mrf.mxu0
        %v551 = vpop.f32.mrf.mxu0
        %552 = vdwg.mxu0
        %v553 = vsel %vm506, %v548, -inf
        %554 = vmax.xlane.f32.xlu0 %v553
        %v555 = vpop.xlane.xlu0 %554
        %v556 = vsub.f32 %v548, %v555
        %v557 = vmul.f32 %v556, 1.442695
        %v558 = vpow.pop %v557
        %v559 = vsel %vm506, %v558, 0.0
        %560 = vadd.xlane.f32.xlu0 %v559
        %v561 = vpop.xlane.xlu0 %560
        %v562 = vpack.c.bf16 %v558, %v558
        %563 = vrot.lane.b32.xlu0 %v502, 64
        %v564 = vpop.permute.xlu0 %563
        %v566 = vsel %vm506, %v562, 0
        %vm568 = vcmask 1043456
        %v570 = vsel %vm568, %v564, 0
        %572 = vmatprep.subr.bf16.mxu0 0
        %573 = vmatpush1.bf16.msra.mxu0 0
        %574 = vmatprep.subr.bf16.mxu0 0
        %575 = vmatpush1.bf16.msra.mxu0 0
        %576 = vmatprep.subr.bf16.mxu0 0
        %577 = vmatpush1.bf16.msra.mxu0 0
        %578 = vmatprep.subr.bf16.mxu0 0
        %579 = vmatpush1.bf16.msra.mxu0 0
        %580 = vmatprep.subr.bf16.mxu0 0
        %581 = vmatpush1.bf16.msra.mxu0 0
        %582 = vmatprep.subr.bf16.mxu0 0
        %583 = vmatpush1.bf16.msra.mxu0 0
        %584 = vmatprep.subr.bf16.mxu0 0
        %585 = vmatpush1.bf16.msra.mxu0 0
        %586 = vmatprep.subr.bf16.mxu0 0
        %587 = vmatpush1.bf16.msra.mxu0 %v570
        %588 = vmatprep.subr.bf16.mxu0 0
        %589 = vmatpush2.bf16.msra.mxu0 0
        %590 = vmatprep.subr.bf16.mxu0 0
        %591 = vmatpush2.bf16.msra.mxu0 0
        %592 = vmatprep.subr.bf16.mxu0 0
        %593 = vmatpush2.bf16.msra.mxu0 0
        %594 = vmatprep.subr.bf16.mxu0 0
        %595 = vmatpush2.bf16.msra.mxu0 0
        %596 = vmatprep.subr.bf16.mxu0 0
        %597 = vmatpush2.bf16.msra.mxu0 0
        %598 = vmatprep.subr.bf16.mxu0 0
        %599 = vmatpush2.bf16.msra.mxu0 0
        %600 = vmatprep.subr.bf16.mxu0 0
        %601 = vmatpush2.bf16.msra.mxu0 0
        %602 = vmatprep.subr.bf16.mxu0 0
        %603 = vmatpush2.bf16.msra.mxu0 0
        %604 = vmatprep.mubr.bf16.mxu0 0
        %605 = vmatmul.mubr.bf16.gmra.mxu0 %v566
        %v606 = vpop.f32.mrf.mxu0
        %v607 = vadd.f32 0.0, %v606
        %v608 = vpop.f32.mrf.mxu0
        %v609 = vpop.f32.mrf.mxu0
        %v610 = vpop.f32.mrf.mxu0
        %611 = vdwg.mxu0
        %v612 = vrcp.pop %v561
        %v613 = vmul.f32 %v607, %v612
        %614 = vrot.lane.b32.xlu0 %v502, 120
        %v615 = vpop.permute.xlu0 %614
        %616 = vrot.lane.b32.xlu0 %v502, 88
        %v617 = vpop.permute.xlu0 %616
        %v619 = vsel %vm506, %v615, 0
        %v622 = vsel %vm506, %v617, 0
        %624 = vmatprep.subr.bf16.mxu0 0
        %625 = vmatpush1.bf16.xpose.msra.mxu0 0
        %626 = vmatprep.subr.bf16.mxu0 0
        %627 = vmatpush1.bf16.xpose.msra.mxu0 0
        %628 = vmatprep.subr.bf16.mxu0 0
        %629 = vmatpush1.bf16.xpose.msra.mxu0 0
        %630 = vmatprep.subr.bf16.mxu0 0
        %631 = vmatpush1.bf16.xpose.msra.mxu0 0
        %632 = vmatprep.subr.bf16.mxu0 0
        %633 = vmatpush1.bf16.xpose.msra.mxu0 0
        %634 = vmatprep.subr.bf16.mxu0 0
        %635 = vmatpush1.bf16.xpose.msra.mxu0 0
        %636 = vmatprep.subr.bf16.mxu0 0
        %637 = vmatpush1.bf16.xpose.msra.mxu0 0
        %638 = vmatprep.subr.bf16.mxu0 0
        %639 = vmatpush1.bf16.xpose.msra.mxu0 %v622
        %640 = vmatprep.subr.bf16.mxu0 0
        %641 = vmatpush2.bf16.xpose.msra.mxu0 0
        %642 = vmatprep.subr.bf16.mxu0 0
        %643 = vmatpush2.bf16.xpose.msra.mxu0 0
        %644 = vmatprep.subr.bf16.mxu0 0
        %645 = vmatpush2.bf16.xpose.msra.mxu0 0
        %646 = vmatprep.subr.bf16.mxu0 0
        %647 = vmatpush2.bf16.xpose.msra.mxu0 0
        %648 = vmatprep.subr.bf16.mxu0 0
        %649 = vmatpush2.bf16.xpose.msra.mxu0 0
        %650 = vmatprep.subr.bf16.mxu0 0
        %651 = vmatpush2.bf16.xpose.msra.mxu0 0
        %652 = vmatprep.subr.bf16.mxu0 0
        %653 = vmatpush2.bf16.xpose.msra.mxu0 0
        %654 = vmatprep.subr.bf16.mxu0 0
        %655 = vmatpush2.bf16.xpose.msra.mxu0 0
        %656 = vmatprep.mubr.bf16.mxu0 0
        %657 = vmatmul.mubr.bf16.gmra.mxu0 %v619
        %v658 = vpop.f32.mrf.mxu0
        %v659 = vadd.f32 0.0, %v658
        %v660 = vpop.f32.mrf.mxu0
        %v661 = vpop.f32.mrf.mxu0
        %v662 = vpop.f32.mrf.mxu0
        %663 = vdwg.mxu0
        %v664 = vsel %vm506, %v659, -inf
        %665 = vmax.xlane.f32.xlu0 %v664
        %v666 = vpop.xlane.xlu0 %665
        %v667 = vsub.f32 %v659, %v666
        %v668 = vmul.f32 %v667, 1.442695
        %v669 = vpow.pop %v668
        %v670 = vsel %vm506, %v669, 0.0
        %671 = vadd.xlane.f32.xlu0 %v670
        %v672 = vpop.xlane.xlu0 %671
        %v673 = vpack.c.bf16 %v669, %v669
        %674 = vrot.lane.b32.xlu0 %v502, 56
        %v675 = vpop.permute.xlu0 %674
        %v677 = vsel %vm506, %v673, 0
        %v680 = vsel %vm568, %v675, 0
        %682 = vmatprep.subr.bf16.mxu0 0
        %683 = vmatpush1.bf16.msra.mxu0 0
        %684 = vmatprep.subr.bf16.mxu0 0
        %685 = vmatpush1.bf16.msra.mxu0 0
        %686 = vmatprep.subr.bf16.mxu0 0
        %687 = vmatpush1.bf16.msra.mxu0 0
        %688 = vmatprep.subr.bf16.mxu0 0
        %689 = vmatpush1.bf16.msra.mxu0 0
        %690 = vmatprep.subr.bf16.mxu0 0
        %691 = vmatpush1.bf16.msra.mxu0 0
        %692 = vmatprep.subr.bf16.mxu0 0
        %693 = vmatpush1.bf16.msra.mxu0 0
        %694 = vmatprep.subr.bf16.mxu0 0
        %695 = vmatpush1.bf16.msra.mxu0 0
        %696 = vmatprep.subr.bf16.mxu0 0
        %697 = vmatpush1.bf16.msra.mxu0 %v680
        %698 = vmatprep.subr.bf16.mxu0 0
        %699 = vmatpush2.bf16.msra.mxu0 0
        %700 = vmatprep.subr.bf16.mxu0 0
        %701 = vmatpush2.bf16.msra.mxu0 0
        %702 = vmatprep.subr.bf16.mxu0 0
        %703 = vmatpush2.bf16.msra.mxu0 0
        %704 = vmatprep.subr.bf16.mxu0 0
        %705 = vmatpush2.bf16.msra.mxu0 0
        %706 = vmatprep.subr.bf16.mxu0 0
        %707 = vmatpush2.bf16.msra.mxu0 0
        %708 = vmatprep.subr.bf16.mxu0 0
        %709 = vmatpush2.bf16.msra.mxu0 0
        %710 = vmatprep.subr.bf16.mxu0 0
        %711 = vmatpush2.bf16.msra.mxu0 0
        %712 = vmatprep.subr.bf16.mxu0 0
        %713 = vmatpush2.bf16.msra.mxu0 0
        %714 = vmatprep.mubr.bf16.mxu0 0
        %715 = vmatmul.mubr.bf16.gmra.mxu0 %v677
        %v716 = vpop.f32.mrf.mxu0
        %v717 = vadd.f32 0.0, %v716
        %v718 = vpop.f32.mrf.mxu0
        %v719 = vpop.f32.mrf.mxu0
        %v720 = vpop.f32.mrf.mxu0
        %721 = vdwg.mxu0
        %v722 = vrcp.pop %v672
        %v723 = vmul.f32 %v717, %v722
        %724 = vrot.lane.b32.xlu0 %v502, 112
        %v725 = vpop.permute.xlu0 %724
        %726 = vrot.lane.b32.xlu0 %v502, 80
        %v727 = vpop.permute.xlu0 %726
        %v729 = vsel %vm506, %v725, 0
        %v732 = vsel %vm506, %v727, 0
        %734 = vmatprep.subr.bf16.mxu0 0
        %735 = vmatpush1.bf16.xpose.msra.mxu0 0
        %736 = vmatprep.subr.bf16.mxu0 0
        %737 = vmatpush1.bf16.xpose.msra.mxu0 0
        %738 = vmatprep.subr.bf16.mxu0 0
        %739 = vmatpush1.bf16.xpose.msra.mxu0 0
        %740 = vmatprep.subr.bf16.mxu0 0
        %741 = vmatpush1.bf16.xpose.msra.mxu0 0
        %742 = vmatprep.subr.bf16.mxu0 0
        %743 = vmatpush1.bf16.xpose.msra.mxu0 0
        %744 = vmatprep.subr.bf16.mxu0 0
        %745 = vmatpush1.bf16.xpose.msra.mxu0 0
        %746 = vmatprep.subr.bf16.mxu0 0
        %747 = vmatpush1.bf16.xpose.msra.mxu0 0
        %748 = vmatprep.subr.bf16.mxu0 0
        %749 = vmatpush1.bf16.xpose.msra.mxu0 %v732
        %750 = vmatprep.subr.bf16.mxu0 0
        %751 = vmatpush2.bf16.xpose.msra.mxu0 0
        %752 = vmatprep.subr.bf16.mxu0 0
        %753 = vmatpush2.bf16.xpose.msra.mxu0 0
        %754 = vmatprep.subr.bf16.mxu0 0
        %755 = vmatpush2.bf16.xpose.msra.mxu0 0
        %756 = vmatprep.subr.bf16.mxu0 0
        %757 = vmatpush2.bf16.xpose.msra.mxu0 0
        %758 = vmatprep.subr.bf16.mxu0 0
        %759 = vmatpush2.bf16.xpose.msra.mxu0 0
        %760 = vmatprep.subr.bf16.mxu0 0
        %761 = vmatpush2.bf16.xpose.msra.mxu0 0
        %762 = vmatprep.subr.bf16.mxu0 0
        %763 = vmatpush2.bf16.xpose.msra.mxu0 0
        %764 = vmatprep.subr.bf16.mxu0 0
        %765 = vmatpush2.bf16.xpose.msra.mxu0 0
        %766 = vmatprep.mubr.bf16.mxu0 0
        %767 = vmatmul.mubr.bf16.gmra.mxu0 %v729
        %v768 = vpop.f32.mrf.mxu0
        %v769 = vadd.f32 0.0, %v768
        %v770 = vpop.f32.mrf.mxu0
        %v771 = vpop.f32.mrf.mxu0
        %v772 = vpop.f32.mrf.mxu0
        %773 = vdwg.mxu0
        %v774 = vsel %vm506, %v769, -inf
        %775 = vmax.xlane.f32.xlu0 %v774
        %v776 = vpop.xlane.xlu0 %775
        %v777 = vsub.f32 %v769, %v776
        %v778 = vmul.f32 %v777, 1.442695
        %v779 = vpow.pop %v778
        %v780 = vsel %vm506, %v779, 0.0
        %781 = vadd.xlane.f32.xlu0 %v780
        %v782 = vpop.xlane.xlu0 %781
        %v783 = vpack.c.bf16 %v779, %v779
        %784 = vrot.lane.b32.xlu0 %v502, 48
        %v785 = vpop.permute.xlu0 %784
        %v787 = vsel %vm506, %v783, 0
        %v790 = vsel %vm568, %v785, 0
        %792 = vmatprep.subr.bf16.mxu0 0
        %793 = vmatpush1.bf16.msra.mxu0 0
        %794 = vmatprep.subr.bf16.mxu0 0
        %795 = vmatpush1.bf16.msra.mxu0 0
        %796 = vmatprep.subr.bf16.mxu0 0
        %797 = vmatpush1.bf16.msra.mxu0 0
        %798 = vmatprep.subr.bf16.mxu0 0
        %799 = vmatpush1.bf16.msra.mxu0 0
        %800 = vmatprep.subr.bf16.mxu0 0
        %801 = vmatpush1.bf16.msra.mxu0 0
        %802 = vmatprep.subr.bf16.mxu0 0
        %803 = vmatpush1.bf16.msra.mxu0 0
        %804 = vmatprep.subr.bf16.mxu0 0
        %805 = vmatpush1.bf16.msra.mxu0 0
        %806 = vmatprep.subr.bf16.mxu0 0
        %807 = vmatpush1.bf16.msra.mxu0 %v790
        %808 = vmatprep.subr.bf16.mxu0 0
        %809 = vmatpush2.bf16.msra.mxu0 0
        %810 = vmatprep.subr.bf16.mxu0 0
        %811 = vmatpush2.bf16.msra.mxu0 0
        %812 = vmatprep.subr.bf16.mxu0 0
        %813 = vmatpush2.bf16.msra.mxu0 0
        %814 = vmatprep.subr.bf16.mxu0 0
        %815 = vmatpush2.bf16.msra.mxu0 0
        %816 = vmatprep.subr.bf16.mxu0 0
        %817 = vmatpush2.bf16.msra.mxu0 0
        %818 = vmatprep.subr.bf16.mxu0 0
        %819 = vmatpush2.bf16.msra.mxu0 0
        %820 = vmatprep.subr.bf16.mxu0 0
        %821 = vmatpush2.bf16.msra.mxu0 0
        %822 = vmatprep.subr.bf16.mxu0 0
        %823 = vmatpush2.bf16.msra.mxu0 0
        %824 = vmatprep.mubr.bf16.mxu0 0
        %825 = vmatmul.mubr.bf16.gmra.mxu0 %v787
        %v826 = vpop.f32.mrf.mxu0
        %v827 = vadd.f32 0.0, %v826
        %v828 = vpop.f32.mrf.mxu0
        %v829 = vpop.f32.mrf.mxu0
        %v830 = vpop.f32.mrf.mxu0
        %831 = vdwg.mxu0
        %v832 = vrcp.pop %v782
        %v833 = vmul.f32 %v827, %v832
        %834 = vrot.lane.b32.xlu0 %v502, 104
        %v835 = vpop.permute.xlu0 %834
        %836 = vrot.lane.b32.xlu0 %v502, 72
        %v837 = vpop.permute.xlu0 %836
        %v839 = vsel %vm506, %v835, 0
        %v842 = vsel %vm506, %v837, 0
        %844 = vmatprep.subr.bf16.mxu0 0
        %845 = vmatpush1.bf16.xpose.msra.mxu0 0
        %846 = vmatprep.subr.bf16.mxu0 0
        %847 = vmatpush1.bf16.xpose.msra.mxu0 0
        %848 = vmatprep.subr.bf16.mxu0 0
        %849 = vmatpush1.bf16.xpose.msra.mxu0 0
        %850 = vmatprep.subr.bf16.mxu0 0
        %851 = vmatpush1.bf16.xpose.msra.mxu0 0
        %852 = vmatprep.subr.bf16.mxu0 0
        %853 = vmatpush1.bf16.xpose.msra.mxu0 0
        %854 = vmatprep.subr.bf16.mxu0 0
        %855 = vmatpush1.bf16.xpose.msra.mxu0 0
        %856 = vmatprep.subr.bf16.mxu0 0
        %857 = vmatpush1.bf16.xpose.msra.mxu0 0
        %858 = vmatprep.subr.bf16.mxu0 0
        %859 = vmatpush1.bf16.xpose.msra.mxu0 %v842
        %860 = vmatprep.subr.bf16.mxu0 0
        %861 = vmatpush2.bf16.xpose.msra.mxu0 0
        %862 = vmatprep.subr.bf16.mxu0 0
        %863 = vmatpush2.bf16.xpose.msra.mxu0 0
        %864 = vmatprep.subr.bf16.mxu0 0
        %865 = vmatpush2.bf16.xpose.msra.mxu0 0
        %866 = vmatprep.subr.bf16.mxu0 0
        %867 = vmatpush2.bf16.xpose.msra.mxu0 0
        %868 = vmatprep.subr.bf16.mxu0 0
        %869 = vmatpush2.bf16.xpose.msra.mxu0 0
        %870 = vmatprep.subr.bf16.mxu0 0
        %871 = vmatpush2.bf16.xpose.msra.mxu0 0
        %872 = vmatprep.subr.bf16.mxu0 0
        %873 = vmatpush2.bf16.xpose.msra.mxu0 0
        %874 = vmatprep.subr.bf16.mxu0 0
        %875 = vmatpush2.bf16.xpose.msra.mxu0 0
        %876 = vmatprep.mubr.bf16.mxu0 0
        %877 = vmatmul.mubr.bf16.gmra.mxu0 %v839
        %v878 = vpop.f32.mrf.mxu0
        %v879 = vadd.f32 0.0, %v878
        %v880 = vpop.f32.mrf.mxu0
        %v881 = vpop.f32.mrf.mxu0
        %v882 = vpop.f32.mrf.mxu0
        %883 = vdwg.mxu0
        %v884 = vsel %vm506, %v879, -inf
        %885 = vmax.xlane.f32.xlu0 %v884
        %v886 = vpop.xlane.xlu0 %885
        %v887 = vsub.f32 %v879, %v886
        %v888 = vmul.f32 %v887, 1.442695
        %v889 = vpow.pop %v888
        %v890 = vsel %vm506, %v889, 0.0
        %891 = vadd.xlane.f32.xlu0 %v890
        %v892 = vpop.xlane.xlu0 %891
        %v893 = vpack.c.bf16 %v889, %v889
        %894 = vrot.lane.b32.xlu0 %v502, 40
        %v895 = vpop.permute.xlu0 %894
        %v897 = vsel %vm506, %v893, 0
        %v900 = vsel %vm568, %v895, 0
        %902 = vmatprep.subr.bf16.mxu0 0
        %903 = vmatpush1.bf16.msra.mxu0 0
        %904 = vmatprep.subr.bf16.mxu0 0
        %905 = vmatpush1.bf16.msra.mxu0 0
        %906 = vmatprep.subr.bf16.mxu0 0
        %907 = vmatpush1.bf16.msra.mxu0 0
        %908 = vmatprep.subr.bf16.mxu0 0
        %909 = vmatpush1.bf16.msra.mxu0 0
        %910 = vmatprep.subr.bf16.mxu0 0
        %911 = vmatpush1.bf16.msra.mxu0 0
        %912 = vmatprep.subr.bf16.mxu0 0
        %913 = vmatpush1.bf16.msra.mxu0 0
        %914 = vmatprep.subr.bf16.mxu0 0
        %915 = vmatpush1.bf16.msra.mxu0 0
        %916 = vmatprep.subr.bf16.mxu0 0
        %917 = vmatpush1.bf16.msra.mxu0 %v900
        %918 = vmatprep.subr.bf16.mxu0 0
        %919 = vmatpush2.bf16.msra.mxu0 0
        %920 = vmatprep.subr.bf16.mxu0 0
        %921 = vmatpush2.bf16.msra.mxu0 0
        %922 = vmatprep.subr.bf16.mxu0 0
        %923 = vmatpush2.bf16.msra.mxu0 0
        %924 = vmatprep.subr.bf16.mxu0 0
        %925 = vmatpush2.bf16.msra.mxu0 0
        %926 = vmatprep.subr.bf16.mxu0 0
        %927 = vmatpush2.bf16.msra.mxu0 0
        %928 = vmatprep.subr.bf16.mxu0 0
        %929 = vmatpush2.bf16.msra.mxu0 0
        %930 = vmatprep.subr.bf16.mxu0 0
        %931 = vmatpush2.bf16.msra.mxu0 0
        %932 = vmatprep.subr.bf16.mxu0 0
        %933 = vmatpush2.bf16.msra.mxu0 0
        %934 = vmatprep.mubr.bf16.mxu0 0
        %935 = vmatmul.mubr.bf16.gmra.mxu0 %v897
        %v936 = vpop.f32.mrf.mxu0
        %v937 = vadd.f32 0.0, %v936
        %v938 = vpop.f32.mrf.mxu0
        %v939 = vpop.f32.mrf.mxu0
        %v940 = vpop.f32.mrf.mxu0
        %941 = vdwg.mxu0
        %v942 = vrcp.pop %v892
        %v943 = vmul.f32 %v937, %v942
        %945 = vrot.lane.b32.xlu0 %v723, 8
        %v946 = vpop.permute.xlu0 %945
        %949 = vrot.lane.b32.xlu0 %v833, 16
        %v950 = vpop.permute.xlu0 %949
        %953 = vrot.lane.b32.xlu0 %v943, 24
        %v954 = vpop.permute.xlu0 %953
        %v956 = vsel %vm506, %v613, %v946
        %vm957 = vcmask 130048
        %v958 = vsel %vm957, %v956, %v950
        %vm959 = vcmask 195584
        %v960 = vsel %vm959, %v958, %v954
        %v961 = vpack.c.bf16 %v960, %v960
        %v962 = vld [vmem:[%s4] sm:$0xf]
        %v963 = vld [vmem:[%s4 + $0x4] sm:$0xf]
        %v964 = vld [vmem:[%s4 + $0x8] sm:$0xf]
        %v965 = vld [vmem:[%s4 + $0xc] sm:$0xf]
        %v966 = vld [vmem:[%s5] sm:$0x1]
        %v968 = vlaneseq
        %v969 = vshrl.u32 %v968, 7
        %v970 = vsub.s32 0, %v969
        %v971 = vrot.slane %v966, %v970
        %v977 = vunpack.c.l.b16 %v962
        %v978 = vunpack.c.l.b16 %v963
        %v979 = vunpack.c.l.b16 %v964
        %v980 = vunpack.c.l.b16 %v965
        %v981 = vpack.c.b16 %v978, %v977
        %v982 = vpack.c.b16 %v980, %v979
        %v986 = vsel %vm411, %v961, 0
        %988 = vmatprep.subr.bf16.mxu0 0
        %989 = vmatpush1.bf16.msra.mxu0 0
        %990 = vmatprep.subr.bf16.mxu0 0
        %991 = vmatpush1.bf16.msra.mxu0 0
        %992 = vmatprep.subr.bf16.mxu0 0
        %993 = vmatpush1.bf16.msra.mxu0 0
        %994 = vmatprep.subr.bf16.mxu0 0
        %995 = vmatpush1.bf16.msra.mxu0 0
        %996 = vmatprep.subr.bf16.mxu0 0
        %997 = vmatpush1.bf16.msra.mxu0 0
        %998 = vmatprep.subr.bf16.mxu0 0
        %999 = vmatpush1.bf16.msra.mxu0 0
        %1000 = vmatprep.subr.bf16.mxu0 0
        %1001 = vmatpush1.bf16.msra.mxu0 %v982
        %1002 = vmatprep.subr.bf16.mxu0 0
        %1003 = vmatpush1.bf16.msra.mxu0 %v981
        %1004 = vmatprep.subr.bf16.mxu0 0
        %1005 = vmatpush2.bf16.msra.mxu0 0
        %1006 = vmatprep.subr.bf16.mxu0 0
        %1007 = vmatpush2.bf16.msra.mxu0 0
        %1008 = vmatprep.subr.bf16.mxu0 0
        %1009 = vmatpush2.bf16.msra.mxu0 0
        %1010 = vmatprep.subr.bf16.mxu0 0
        %1011 = vmatpush2.bf16.msra.mxu0 0
        %1012 = vmatprep.subr.bf16.mxu0 0
        %1013 = vmatpush2.bf16.msra.mxu0 0
        %1014 = vmatprep.subr.bf16.mxu0 0
        %1015 = vmatpush2.bf16.msra.mxu0 0
        %1016 = vmatprep.subr.bf16.mxu0 0
        %1017 = vmatpush2.bf16.msra.mxu0 0
        %1018 = vmatprep.subr.bf16.mxu0 0
        %1019 = vmatpush2.bf16.msra.mxu0 0
        %1020 = vmatprep.mubr.bf16.mxu0 0
        %1021 = vmatmul.mubr.bf16.gmra.mxu0 %v986
        %v1022 = vpop.f32.mrf.mxu0
        %v1023 = vadd.f32 %v971, %v1022
        %v1024 = vpop.f32.mrf.mxu0
        %v1025 = vpop.f32.mrf.mxu0
        %v1026 = vpop.f32.mrf.mxu0
        %1027 = vdwg.mxu0
        %v1028 = vadd.f32 %v410, %v1023
        %v1029 = vsel %vm411, %v1028, 0.0
        %1030 = vadd.xlane.f32.xlu0 %v1029
        %v1031 = vpop.xlane.xlu0 %1030
        %v1032 = vmul.f32 %v1031, %v415
        %v1033 = vsub.f32 %v1028, %v1032
        %v1034 = vmul.f32 %v1033, %v1033
        %v1035 = vsel %vm411, %v1034, 0.0
        %1036 = vadd.xlane.f32.xlu0 %v1035
        %v1037 = vpop.xlane.xlu0 %1036
        %v1038 = vmul.f32 %v1037, %v415
        %v1039 = vadd.f32 %v1038, 1e-05
        %v1040 = vrsqrt.pop %v1039
        %v1041 = vmul.f32 %v1033, %v1040
        %v1042 = vld [vmem:[%s6] sm:$0x1]
        %v1044 = vlaneseq
        %v1045 = vshrl.u32 %v1044, 7
        %v1046 = vsub.s32 0, %v1045
        %v1047 = vrot.slane %v1042, %v1046
        %v1049 = vmul.f32 %v1041, %v1047
        %v1050 = vld [vmem:[%s7] sm:$0x1]
        %v1052 = vlaneseq
        %v1053 = vshrl.u32 %v1052, 7
        %v1054 = vsub.s32 0, %v1053
        %v1055 = vrot.slane %v1050, %v1054
        %v1057 = vadd.f32 %v1049, %v1055
        %v1058 = vpack.c.bf16 %v1057, %v1057
        %v1059 = vld [vmem:[%s8] sm:$0xf]
        %v1060 = vld [vmem:[%s8 + $0x4] sm:$0xf]
        %v1061 = vld [vmem:[%s8 + $0x8] sm:$0xf]
        %v1062 = vld [vmem:[%s8 + $0xc] sm:$0xf]
        %v1063 = vld [vmem:[%s9] sm:$0x1]
        %v1065 = vlaneseq
        %v1066 = vshrl.u32 %v1065, 7
        %v1067 = vsub.s32 0, %v1066
        %v1068 = vrot.slane %v1063, %v1067
        %v1074 = vunpack.c.l.b16 %v1059
        %v1075 = vunpack.c.l.b16 %v1060
        %v1076 = vunpack.c.l.b16 %v1061
        %v1077 = vunpack.c.l.b16 %v1062
        %v1078 = vpack.c.b16 %v1075, %v1074
        %v1079 = vpack.c.b16 %v1077, %v1076
        %v1083 = vsel %vm411, %v1058, 0
        %1085 = vmatprep.subr.bf16.mxu0 0
        %1086 = vmatpush1.bf16.msra.mxu0 0
        %1087 = vmatprep.subr.bf16.mxu0 0
        %1088 = vmatpush1.bf16.msra.mxu0 0
        %1089 = vmatprep.subr.bf16.mxu0 0
        %1090 = vmatpush1.bf16.msra.mxu0 0
        %1091 = vmatprep.subr.bf16.mxu0 0
        %1092 = vmatpush1.bf16.msra.mxu0 0
        %1093 = vmatprep.subr.bf16.mxu0 0
        %1094 = vmatpush1.bf16.msra.mxu0 0
        %1095 = vmatprep.subr.bf16.mxu0 0
        %1096 = vmatpush1.bf16.msra.mxu0 0
        %1097 = vmatprep.subr.bf16.mxu0 0
        %1098 = vmatpush1.bf16.msra.mxu0 %v1079
        %1099 = vmatprep.subr.bf16.mxu0 0
        %1100 = vmatpush1.bf16.msra.mxu0 %v1078
        %1101 = vmatprep.subr.bf16.mxu0 0
        %1102 = vmatpush2.bf16.msra.mxu0 0
        %1103 = vmatprep.subr.bf16.mxu0 0
        %1104 = vmatpush2.bf16.msra.mxu0 0
        %1105 = vmatprep.subr.bf16.mxu0 0
        %1106 = vmatpush2.bf16.msra.mxu0 0
        %1107 = vmatprep.subr.bf16.mxu0 0
        %1108 = vmatpush2.bf16.msra.mxu0 0
        %1109 = vmatprep.subr.bf16.mxu0 0
        %1110 = vmatpush2.bf16.msra.mxu0 0
        %1111 = vmatprep.subr.bf16.mxu0 0
        %1112 = vmatpush2.bf16.msra.mxu0 0
        %1113 = vmatprep.subr.bf16.mxu0 0
        %1114 = vmatpush2.bf16.msra.mxu0 0
        %1115 = vmatprep.subr.bf16.mxu0 0
        %1116 = vmatpush2.bf16.msra.mxu0 0
        %1117 = vmatprep.mubr.bf16.mxu0 0
        %1118 = vmatmul.mubr.bf16.gmra.mxu0 %v1083
        %v1119 = vpop.f32.mrf.mxu0
        %v1120 = vadd.f32 %v1068, %v1119
        %v1121 = vpop.f32.mrf.mxu0
        %v1122 = vpop.f32.mrf.mxu0
        %v1123 = vpop.f32.mrf.mxu0
        %1124 = vdwg.mxu0
        %v1125 = vmul.f32 %v1120, 0.5
        %v1126 = vmul.f32 %v1120, 0.70710677
        %v1127 = vand.u32 2147483647, %v1126
        %v1128 = vmul.f32 %v1127, 0.3275911
        %v1129 = vadd.f32 %v1128, 1.0
        %v1130 = vrcp.pop %v1129
        %v1131 = vmul.f32 %v1130, 1.0614054
        %v1132 = vadd.f32 %v1131, -1.4531521
        %v1133 = vmul.f32 %v1132, %v1130
        %v1134 = vadd.f32 %v1133, 1.4214138
        %v1135 = vmul.f32 %v1134, %v1130
        %v1136 = vadd.f32 %v1135, -0.28449672
        %v1137 = vmul.f32 %v1136, %v1130
        %v1138 = vadd.f32 %v1137, 0.2548296
        %v1139 = vmul.f32 %v1138, %v1130
        %v1140 = vsub.f32 0.0, %v1127
        %v1141 = vmul.f32 %v1140, %v1127
        %v1142 = vmul.f32 %v1141, 1.442695
        %v1143 = vpow.pop %v1142
        %v1144 = vmul.f32 %v1139, %v1143
        %v1145 = vsub.f32 1.0, %v1144
        %vm1146 = vcmp.ge.f32.partialorder %v1126, 0.0
        %v1147 = vsub.f32 0.0, %v1145
        %v1148 = vsel %vm1146, %v1145, %v1147
        %v1149 = vadd.f32 %v1148, 1.0
        %v1150 = vmul.f32 %v1125, %v1149
        %v1151 = vpack.c.bf16 %v1150, %v1150
        %v1152 = vld [vmem:[%s10] sm:$0xf]
        %v1153 = vld [vmem:[%s10 + $0x4] sm:$0xf]
        %v1154 = vld [vmem:[%s10 + $0x8] sm:$0xf]
        %v1155 = vld [vmem:[%s10 + $0xc] sm:$0xf]
        %v1156 = vld [vmem:[%s10 + $0x10] sm:$0xf]
        %v1157 = vld [vmem:[%s10 + $0x14] sm:$0xf]
        %v1158 = vld [vmem:[%s10 + $0x18] sm:$0xf]
        %v1159 = vld [vmem:[%s10 + $0x1c] sm:$0xf]
        %v1160 = vld [vmem:[%s10 + $0x20] sm:$0xf]
        %v1161 = vld [vmem:[%s10 + $0x24] sm:$0xf]
        %v1162 = vld [vmem:[%s10 + $0x28] sm:$0xf]
        %v1163 = vld [vmem:[%s10 + $0x2c] sm:$0xf]
        %v1164 = vld [vmem:[%s10 + $0x30] sm:$0xf]
        %v1165 = vld [vmem:[%s10 + $0x34] sm:$0xf]
        %v1166 = vld [vmem:[%s10 + $0x38] sm:$0xf]
        %v1167 = vld [vmem:[%s10 + $0x3c] sm:$0xf]
        %v1168 = vld [vmem:[%s11] sm:$0x1]
        %v1170 = vlaneseq
        %v1171 = vshrl.u32 %v1170, 7
        %v1172 = vsub.s32 0, %v1171
        %v1173 = vrot.slane %v1168, %v1172
        %v1191 = vunpack.c.l.b16 %v1152
        %v1192 = vunpack.c.l.b16 %v1153
        %v1193 = vunpack.c.l.b16 %v1154
        %v1194 = vunpack.c.l.b16 %v1155
        %v1195 = vunpack.c.l.b16 %v1156
        %v1196 = vunpack.c.l.b16 %v1157
        %v1197 = vunpack.c.l.b16 %v1158
        %v1198 = vunpack.c.l.b16 %v1159
        %v1199 = vunpack.c.l.b16 %v1160
        %v1200 = vunpack.c.l.b16 %v1161
        %v1201 = vunpack.c.l.b16 %v1162
        %v1202 = vunpack.c.l.b16 %v1163
        %v1203 = vunpack.c.l.b16 %v1164
        %v1204 = vunpack.c.l.b16 %v1165
        %v1205 = vunpack.c.l.b16 %v1166
        %v1206 = vunpack.c.l.b16 %v1167
        %v1207 = vpack.c.b16 %v1192, %v1191
        %v1208 = vpack.c.b16 %v1194, %v1193
        %v1209 = vpack.c.b16 %v1196, %v1195
        %v1210 = vpack.c.b16 %v1198, %v1197
        %v1211 = vpack.c.b16 %v1200, %v1199
        %v1212 = vpack.c.b16 %v1202, %v1201
        %v1213 = vpack.c.b16 %v1204, %v1203
        %v1214 = vpack.c.b16 %v1206, %v1205
        %1223 = vmatprep.subr.bf16.mxu0 0
        %1224 = vmatpush1.bf16.msra.mxu0 %v1214
        %1225 = vmatprep.subr.bf16.mxu0 0
        %1226 = vmatpush1.bf16.msra.mxu0 %v1213
        %1227 = vmatprep.subr.bf16.mxu0 0
        %1228 = vmatpush1.bf16.msra.mxu0 %v1212
        %1229 = vmatprep.subr.bf16.mxu0 0
        %1230 = vmatpush1.bf16.msra.mxu0 %v1211
        %1231 = vmatprep.subr.bf16.mxu0 0
        %1232 = vmatpush1.bf16.msra.mxu0 %v1210
        %1233 = vmatprep.subr.bf16.mxu0 0
        %1234 = vmatpush1.bf16.msra.mxu0 %v1209
        %1235 = vmatprep.subr.bf16.mxu0 0
        %1236 = vmatpush1.bf16.msra.mxu0 %v1208
        %1237 = vmatprep.subr.bf16.mxu0 0
        %1238 = vmatpush1.bf16.msra.mxu0 %v1207
        %1239 = vmatprep.subr.bf16.mxu0 0
        %1240 = vmatpush2.bf16.msra.mxu0 0
        %1241 = vmatprep.subr.bf16.mxu0 0
        %1242 = vmatpush2.bf16.msra.mxu0 0
        %1243 = vmatprep.subr.bf16.mxu0 0
        %1244 = vmatpush2.bf16.msra.mxu0 0
        %1245 = vmatprep.subr.bf16.mxu0 0
        %1246 = vmatpush2.bf16.msra.mxu0 0
        %1247 = vmatprep.subr.bf16.mxu0 0
        %1248 = vmatpush2.bf16.msra.mxu0 0
        %1249 = vmatprep.subr.bf16.mxu0 0
        %1250 = vmatpush2.bf16.msra.mxu0 0
        %1251 = vmatprep.subr.bf16.mxu0 0
        %1252 = vmatpush2.bf16.msra.mxu0 0
        %1253 = vmatprep.subr.bf16.mxu0 0
        %1254 = vmatpush2.bf16.msra.mxu0 0
        %1255 = vmatprep.mubr.bf16.mxu0 0
        %1256 = vmatmul.mubr.bf16.gmra.mxu0 %v1151
        %v1257 = vpop.f32.mrf.mxu0
        %v1258 = vadd.f32 %v1173, %v1257
        %v1259 = vpop.f32.mrf.mxu0
        %v1260 = vpop.f32.mrf.mxu0
        %v1261 = vpop.f32.mrf.mxu0
        %1262 = vdwg.mxu0
        %v1263 = vadd.f32 %v1028, %v1258
        %1264 = vst.msk [vmem:[%s404] sm:$0xff] %vm411, %v1263
        %s1265 = sand.u32 %s291, 1
        %s1266 = scalar_lea.sflag [#allocation3], %s1265
        %s1267 = sand.u32 %s291, 1
        %s1268 = smul.addr %s1267, 8
        %s1269 = scalar_lea.vmem [#allocation2], %s1268
        // Predicated region
        $region69: #{tpu_custom_call.1} parent=67 // pred_check
          %p1270 = pneg %p301
        $region70: #{tpu_custom_call.1} parent=67 // pred_check_branch
          %1272 = sbr.rel (%p1270) target = $region72
        $region71: #{tpu_custom_call.1} parent=67 // pred_region
          %s1274 = ssub.s32 128, 128
          %1275 = vsyncadd %s1266, %s1274
          %s1276 = smul.addr %s26, 128
          %s1277 = scalar_lea.hbm %s12, %s1276
          %s1279 = sshll.u32 %s1269, 4
          %s1280 = int_to_ptr.vmem [resolvable:$true] %s1279
          %1282 = dma.vmem_to_hbm [thread:$0]  %s1280, 128, %s1277, %s1266
        $region72: #{tpu_custom_call.1} parent=67 // pred_fallthru
          _
      $region68: #{tpu_custom_call.1} parent=5 // pred_fallthru
        _
      %p1283 = scmp.le.s32.totalorder 2, %s21
      // Predicated region
      $region73: #{tpu_custom_call.1} parent=5 // pred_check
        %p1284 = pneg %p1283
      $region74: #{tpu_custom_call.1} parent=5 // pred_check_branch
        %1286 = sbr.rel (%p1284) target = $region76
      $region75: #{tpu_custom_call.1} parent=5 // pred_region
        %s1287 = ssub.s32 %s21, 2
        // Predicated region
        $region77: #{tpu_custom_call.1} parent=75 // pred_check
          %p1288 = pneg %p307
        $region78: #{tpu_custom_call.1} parent=75 // pred_check_branch
          %1290 = sbr.rel (%p1288) target = $region80
        $region79: #{tpu_custom_call.1} parent=75 // pred_region
          %s1291 = sand.u32 %s292, 1
          %s1292 = scalar_lea.sflag [#allocation3], %s1291
          %s1293 = sand.u32 %s292, 1
          %s1294 = smul.addr %s1293, 8
          %s1295 = scalar_lea.vmem [#allocation2], %s1294
          %1296 = dma.done %s1292, 128
        $region80: #{tpu_custom_call.1} parent=75 // pred_fallthru
          _
      $region76: #{tpu_custom_call.1} parent=5 // pred_fallthru
        _
    $region6: #{tpu_custom_call.1} parent=1 // loop_footer
      %s25 = sadd.s32 1, %s21
    $region7: #{tpu_custom_call.1} parent=1 // loop_footer_branch
      %20 = sbr.rel target = $region3
    $region8: #{tpu_custom_call.1} parent=1 // loop_exit
      _
    %1297 = vsyncpa [#allocation3], 1
    %s1298 = scalar_lea.sflag [#allocation3], 1
    %1299 = vsyncpa %s1298, 1

// kernel: tpu_custom_call.1
$region0: #{tpu_custom_call.1}
  #allocation0 [shape = 'u32[]', space=smem, size = 0x4, offset = 0x4, fixed_abs, tag = 'smem constant byte address 0x4 - core index']
  #allocation1 [shape = 'u32[144,128]{1,0:T(1,128)}', space=vmem, size = 0x12000, scoped, tag = 'internal scratch']
  %s0 = inlined_call_operand.vmem [shape: f32[2,8,32], index: 0, kind: input, shape index: {}]
  %s1 = inlined_call_operand.vmem [shape: f32[1,32], index: 1, kind: input, shape index: {}]
  %s2 = inlined_call_operand.vmem [shape: f32[1,32], index: 2, kind: input, shape index: {}]
  %s3 = inlined_call_operand.vmem [shape: bf16[32,96], index: 3, kind: input, shape index: {}]
  %s4 = inlined_call_operand.vmem [shape: bf16[32,32], index: 4, kind: input, shape index: {}]
  %s5 = inlined_call_operand.vmem [shape: f32[1,32], index: 5, kind: input, shape index: {}]
  %s6 = inlined_call_operand.vmem [shape: f32[1,32], index: 6, kind: input, shape index: {}]
  %s7 = inlined_call_operand.vmem [shape: f32[1,32], index: 7, kind: input, shape index: {}]
  %s8 = inlined_call_operand.vmem [shape: bf16[32,128], index: 8, kind: input, shape index: {}]
  %s9 = inlined_call_operand.vmem [shape: f32[1,128], index: 9, kind: input, shape index: {}]
  %s10 = inlined_call_operand.vmem [shape: bf16[128,32], index: 10, kind: input, shape index: {}]
  %s11 = inlined_call_operand.vmem [shape: f32[1,32], index: 11, kind: input, shape index: {}]
  %s12 = inlined_call_operand.hbm [shape: f32[2,8,32], index: 12, kind: output, shape index: {}]
  %s13 = sld [smem:[#allocation0]]
  $region81: #{tpu_custom_call.1} parent=0
    _
  %s15 = ssub.s32 1, %s13
  %s16 = scalar_select 0, %s15, %s13
  $region1: #{tpu_custom_call.1} parent=0
    #allocation2 [shape = 'u8[8192]{0}', space=vmem, size = 0x2000, scoped, tag = 'output window, operand 0']
    #allocation3 [shape = 's32[2]{0}', space=sflag, size = 0x8, scoped, tag = 'scoped memory for tpu_custom_call.1']
    %17 = vsyncpa [#allocation3], 0
    %s18 = scalar_lea.sflag [#allocation3], 1
    %19 = vsyncpa %s18, 0
    loop: start=0, step=1, limit=4
    $region2: #{tpu_custom_call.1} parent=1 // loop_pre_header
      _
    $region3: #{tpu_custom_call.1} parent=1 // loop_header
      %s21 = sphi 0, %s25
      %p22 = scmp.ge.s32.totalorder %s21, 4
      %s31 = sphi 0, %s33
      %s34 = sphi 0, %s31
      %s35 = sphi 0, %s34
      %s51 = sphi 0, %s35
      %s55 = sphi 0, %s55
      %s57 = sphi 0, %s55
      %s58 = sphi 0, %s57
      %s72 = sphi 0, %s58
      %s76 = sphi 0, %s76
      %s78 = sphi 0, %s76
      %s79 = sphi 0, %s78
      %s93 = sphi 0, %s79
      %s97 = sphi 0, %s97
      %s99 = sphi 0, %s97
      %s100 = sphi 0, %s99
      %s114 = sphi 0, %s100
      %s118 = sphi 0, %s118
      %s120 = sphi 0, %s118
      %s121 = sphi 0, %s120
      %s135 = sphi 0, %s121
      %s139 = sphi 0, %s139
      %s141 = sphi 0, %s139
      %s142 = sphi 0, %s141
      %s156 = sphi 0, %s142
      %s160 = sphi 0, %s160
      %s162 = sphi 0, %s160
      %s163 = sphi 0, %s162
      %s177 = sphi 0, %s163
      %s181 = sphi 0, %s181
      %s183 = sphi 0, %s181
      %s184 = sphi 0, %s183
      %s198 = sphi 0, %s184
      %s202 = sphi 0, %s202
      %s204 = sphi 0, %s202
      %s205 = sphi 0, %s204
      %s219 = sphi 0, %s205
      %s223 = sphi 0, %s223
      %s225 = sphi 0, %s223
      %s226 = sphi 0, %s225
      %s240 = sphi 0, %s226
      %s244 = sphi 0, %s244
      %s246 = sphi 0, %s244
      %s247 = sphi 0, %s246
      %s261 = sphi 0, %s247
      %s265 = sphi 0, %s265
      %s267 = sphi 0, %s265
      %s268 = sphi 0, %s267
      %s282 = sphi 0, %s268
      %s288 = sphi 0, %s290
      %s291 = sphi 0, %s288
      %s292 = sphi 0, %s291
      %s308 = sphi 0, %s292
    $region4: #{tpu_custom_call.1} parent=1 // loop_header_branch
      %24 = sbr.rel (%p22) target = $region8
    $region5: #{tpu_custom_call.1} parent=1 // loop_body
      %s26 = ssub.s32 %s21, 1
      %s27 = ssub.s32 %s21, 2
      %s28 = sadd.s32 %s21, 1
      %s29 = ssub.s32 %s21, %s28
      %p30 = scmp.eq.s32.totalorder %s29, 0
      %s32 = sadd.s32 %s31, 1
      %s33 = scalar_select %p30, %s31, %s32
      %p36 = pneg %p30
      %p37 = scmp.eq.s32.totalorder %s21, 1
      %p38 = por %p36, %p37
      %p39 = scmp.ne.s32.totalorder %s31, %s34
      %p40 = scmp.eq.s32.totalorder %s21, 0
      %p41 = por %p39, %p40
      %p42 = scmp.ne.s32.totalorder %s31, %s34
      %p43 = scmp.eq.s32.totalorder %s26, 1
      %p44 = por %p42, %p43
      %p45 = scmp.ne.s32.totalorder %s34, %s35
      %p46 = scmp.eq.s32.totalorder %s26, 0
      %p47 = por %p45, %p46
      %p48 = scmp.ne.s32.totalorder %s34, %s35
      %p49 = scmp.eq.s32.totalorder %s27, 1
      %p50 = por %p48, %p49
      %p52 = scmp.ne.s32.totalorder %s35, %s51
      %p53 = scmp.eq.s32.totalorder %s27, 0
      %p54 = por %p52, %p53
      %s56 = sadd.s32 %s55, 1
      %p59 = scmp.eq.s32.totalorder %s21, 1
      %p60 = scmp.ne.s32.totalorder %s55, %s57
      %p61 = scmp.eq.s32.totalorder %s21, 0
      %p62 = por %p60, %p61
      %p63 = scmp.ne.s32.totalorder %s55, %s57
      %p64 = scmp.eq.s32.totalorder %s26, 1
      %p65 = por %p63, %p64
      %p66 = scmp.ne.s32.totalorder %s57, %s58
      %p67 = scmp.eq.s32.totalorder %s26, 0
      %p68 = por %p66, %p67
      %p69 = scmp.ne.s32.totalorder %s57, %s58
      %p70 = scmp.eq.s32.totalorder %s27, 1
      %p71 = por %p69, %p70
      %p73 = scmp.ne.s32.totalorder %s58, %s72
      %p74 = scmp.eq.s32.totalorder %s27, 0
      %p75 = por %p73, %p74
      %s77 = sadd.s32 %s76, 1
      %p80 = scmp.eq.s32.totalorder %s21, 1
      %p81 = scmp.ne.s32.totalorder %s76, %s78
      %p82 = scmp.eq.s32.totalorder %s21, 0
      %p83 = por %p81, %p82
      %p84 = scmp.ne.s32.totalorder %s76, %s78
      %p85 = scmp.eq.s32.totalorder %s26, 1
      %p86 = por %p84, %p85
      %p87 = scmp.ne.s32.totalorder %s78, %s79
      %p88 = scmp.eq.s32.totalorder %s26, 0
      %p89 = por %p87, %p88
      %p90 = scmp.ne.s32.totalorder %s78, %s79
      %p91 = scmp.eq.s32.totalorder %s27, 1
      %p92 = por %p90, %p91
      %p94 = scmp.ne.s32.totalorder %s79, %s93
      %p95 = scmp.eq.s32.totalorder %s27, 0
      %p96 = por %p94, %p95
      %s98 = sadd.s32 %s97, 1
      %p101 = scmp.eq.s32.totalorder %s21, 1
      %p102 = scmp.ne.s32.totalorder %s97, %s99
      %p103 = scmp.eq.s32.totalorder %s21, 0
      %p104 = por %p102, %p103
      %p105 = scmp.ne.s32.totalorder %s97, %s99
      %p106 = scmp.eq.s32.totalorder %s26, 1
      %p107 = por %p105, %p106
      %p108 = scmp.ne.s32.totalorder %s99, %s100
      %p109 = scmp.eq.s32.totalorder %s26, 0
      %p110 = por %p108, %p109
      %p111 = scmp.ne.s32.totalorder %s99, %s100
      %p112 = scmp.eq.s32.totalorder %s27, 1
      %p113 = por %p111, %p112
      %p115 = scmp.ne.s32.totalorder %s100, %s114
      %p116 = scmp.eq.s32.totalorder %s27, 0
      %p117 = por %p115, %p116
      %s119 = sadd.s32 %s118, 1
      %p122 = scmp.eq.s32.totalorder %s21, 1
      %p123 = scmp.ne.s32.totalorder %s118, %s120
      %p124 = scmp.eq.s32.totalorder %s21, 0
      %p125 = por %p123, %p124
      %p126 = scmp.ne.s32.totalorder %s118, %s120
      %p127 = scmp.eq.s32.totalorder %s26, 1
      %p128 = por %p126, %p127
      %p129 = scmp.ne.s32.totalorder %s120, %s121
      %p130 = scmp.eq.s32.totalorder %s26, 0
      %p131 = por %p129, %p130
      %p132 = scmp.ne.s32.totalorder %s120, %s121
      %p133 = scmp.eq.s32.totalorder %s27, 1
      %p134 = por %p132, %p133
      %p136 = scmp.ne.s32.totalorder %s121, %s135
      %p137 = scmp.eq.s32.totalorder %s27, 0
      %p138 = por %p136, %p137
      %s140 = sadd.s32 %s139, 1
      %p143 = scmp.eq.s32.totalorder %s21, 1
      %p144 = scmp.ne.s32.totalorder %s139, %s141
      %p145 = scmp.eq.s32.totalorder %s21, 0
      %p146 = por %p144, %p145
      %p147 = scmp.ne.s32.totalorder %s139, %s141
      %p148 = scmp.eq.s32.totalorder %s26, 1
      %p149 = por %p147, %p148
      %p150 = scmp.ne.s32.totalorder %s141, %s142
      %p151 = scmp.eq.s32.totalorder %s26, 0
      %p152 = por %p150, %p151
      %p153 = scmp.ne.s32.totalorder %s141, %s142
      %p154 = scmp.eq.s32.totalorder %s27, 1
      %p155 = por %p153, %p154
      %p157 = scmp.ne.s32.totalorder %s142, %s156
      %p158 = scmp.eq.s32.totalorder %s27, 0
      %p159 = por %p157, %p158
      %s161 = sadd.s32 %s160, 1
      %p164 = scmp.eq.s32.totalorder %s21, 1
      %p165 = scmp.ne.s32.totalorder %s160, %s162
      %p166 = scmp.eq.s32.totalorder %s21, 0
      %p167 = por %p165, %p166
      %p168 = scmp.ne.s32.totalorder %s160, %s162
      %p169 = scmp.eq.s32.totalorder %s26, 1
      %p170 = por %p168, %p169
      %p171 = scmp.ne.s32.totalorder %s162, %s163
      %p172 = scmp.eq.s32.totalorder %s26, 0
      %p173 = por %p171, %p172
      %p174 = scmp.ne.s32.totalorder %s162, %s163
      %p175 = scmp.eq.s32.totalorder %s27, 1
      %p176 = por %p174, %p175
      %p178 = scmp.ne.s32.totalorder %s163, %s177
      %p179 = scmp.eq.s32.totalorder %s27, 0
      %p180 = por %p178, %p179
      %s182 = sadd.s32 %s181, 1
      %p185 = scmp.eq.s32.totalorder %s21, 1
      %p186 = scmp.ne.s32.totalorder %s181, %s183
      %p187 = scmp.eq.s32.totalorder %s21, 0
      %p188 = por %p186, %p187
      %p189 = scmp.ne.s32.totalorder %s181, %s183
      %p190 = scmp.eq.s32.totalorder %s26, 1
      %p191 = por %p189, %p190
      %p192 = scmp.ne.s32.totalorder %s183, %s184
      %p193 = scmp.eq.s32.totalorder %s26, 0
      %p194 = por %p192, %p193
      %p195 = scmp.ne.s32.totalorder %s183, %s184
      %p196 = scmp.eq.s32.totalorder %s27, 1
      %p197 = por %p195, %p196
      %p199 = scmp.ne.s32.totalorder %s184, %s198
      %p200 = scmp.eq.s32.totalorder %s27, 0
      %p201 = por %p199, %p200
      %s203 = sadd.s32 %s202, 1
      %p206 = scmp.eq.s32.totalorder %s21, 1
      %p207 = scmp.ne.s32.totalorder %s202, %s204
      %p208 = scmp.eq.s32.totalorder %s21, 0
      %p209 = por %p207, %p208
      %p210 = scmp.ne.s32.totalorder %s202, %s204
      %p211 = scmp.eq.s32.totalorder %s26, 1
      %p212 = por %p210, %p211
      %p213 = scmp.ne.s32.totalorder %s204, %s205
      %p214 = scmp.eq.s32.totalorder %s26, 0
      %p215 = por %p213, %p214
      %p216 = scmp.ne.s32.totalorder %s204, %s205
      %p217 = scmp.eq.s32.totalorder %s27, 1
      %p218 = por %p216, %p217
      %p220 = scmp.ne.s32.totalorder %s205, %s219
      %p221 = scmp.eq.s32.totalorder %s27, 0
      %p222 = por %p220, %p221
      %s224 = sadd.s32 %s223, 1
      %p227 = scmp.eq.s32.totalorder %s21, 1
      %p228 = scmp.ne.s32.totalorder %s223, %s225
      %p229 = scmp.eq.s32.totalorder %s21, 0
      %p230 = por %p228, %p229
      %p231 = scmp.ne.s32.totalorder %s223, %s225
      %p232 = scmp.eq.s32.totalorder %s26, 1
      %p233 = por %p231, %p232
      %p234 = scmp.ne.s32.totalorder %s225, %s226
      %p235 = scmp.eq.s32.totalorder %s26, 0
      %p236 = por %p234, %p235
      %p237 = scmp.ne.s32.totalorder %s225, %s226
      %p238 = scmp.eq.s32.totalorder %s27, 1
      %p239 = por %p237, %p238
      %p241 = scmp.ne.s32.totalorder %s226, %s240
      %p242 = scmp.eq.s32.totalorder %s27, 0
      %p243 = por %p241, %p242
      %s245 = sadd.s32 %s244, 1
      %p248 = scmp.eq.s32.totalorder %s21, 1
      %p249 = scmp.ne.s32.totalorder %s244, %s246
      %p250 = scmp.eq.s32.totalorder %s21, 0
      %p251 = por %p249, %p250
      %p252 = scmp.ne.s32.totalorder %s244, %s246
      %p253 = scmp.eq.s32.totalorder %s26, 1
      %p254 = por %p252, %p253
      %p255 = scmp.ne.s32.totalorder %s246, %s247
      %p256 = scmp.eq.s32.totalorder %s26, 0
      %p257 = por %p255, %p256
      %p258 = scmp.ne.s32.totalorder %s246, %s247
      %p259 = scmp.eq.s32.totalorder %s27, 1
      %p260 = por %p258, %p259
      %p262 = scmp.ne.s32.totalorder %s247, %s261
      %p263 = scmp.eq.s32.totalorder %s27, 0
      %p264 = por %p262, %p263
      %s266 = sadd.s32 %s265, 1
      %p269 = scmp.eq.s32.totalorder %s21, 1
      %p270 = scmp.ne.s32.totalorder %s265, %s267
      %p271 = scmp.eq.s32.totalorder %s21, 0
      %p272 = por %p270, %p271
      %p273 = scmp.ne.s32.totalorder %s265, %s267
      %p274 = scmp.eq.s32.totalorder %s26, 1
      %p275 = por %p273, %p274
      %p276 = scmp.ne.s32.totalorder %s267, %s268
      %p277 = scmp.eq.s32.totalorder %s26, 0
      %p278 = por %p276, %p277
      %p279 = scmp.ne.s32.totalorder %s267, %s268
      %p280 = scmp.eq.s32.totalorder %s27, 1
      %p281 = por %p279, %p280
      %p283 = scmp.ne.s32.totalorder %s268, %s282
      %p284 = scmp.eq.s32.totalorder %s27, 0
      %p285 = por %p283, %p284
      %s286 = ssub.s32 %s21, %s28
      %p287 = scmp.eq.s32.totalorder %s286, 0
      %s289 = sadd.s32 %s288, 1
      %s290 = scalar_select %p287, %s288, %s289
      %p293 = pneg %p287
      %p294 = scmp.eq.s32.totalorder %s21, 1
      %p295 = por %p293, %p294
      %p296 = scmp.ne.s32.totalorder %s288, %s291
      %p297 = scmp.eq.s32.totalorder %s21, 0
      %p298 = por %p296, %p297
      %p299 = scmp.ne.s32.totalorder %s288, %s291
      %p300 = scmp.eq.s32.totalorder %s26, 1
      %p301 = por %p299, %p300
      %p302 = scmp.ne.s32.totalorder %s291, %s292
      %p303 = scmp.eq.s32.totalorder %s26, 0
      %p304 = por %p302, %p303
      %p305 = scmp.ne.s32.totalorder %s291, %s292
      %p306 = scmp.eq.s32.totalorder %s27, 1
      %p307 = por %p305, %p306
      %p309 = scmp.ne.s32.totalorder %s292, %s308
      %p310 = scmp.eq.s32.totalorder %s27, 0
      %p311 = por %p309, %p310
      %p312 = scmp.le.s32.totalorder 1, %s21
      %p313 = scmp.lt.s32.totalorder %s21, 3
      %p314 = pnand %p312, %p313
      %p315 = pneg %p314
      // Predicated region
      $region9: #{tpu_custom_call.1} parent=5 // pred_check
        _
      $region10: #{tpu_custom_call.1} parent=5 // pred_check_branch
        %317 = sbr.rel (%p314) target = $region12
      $region11: #{tpu_custom_call.1} parent=5 // pred_region
        %s318 = ssub.s32 %s21, 1
        // Predicated region
        $region13: #{tpu_custom_call.1} parent=11 // pred_check
          %p319 = pneg %p68
        $region14: #{tpu_custom_call.1} parent=11 // pred_check_branch
          %321 = sbr.rel (%p319) target = $region16
        $region15: #{tpu_custom_call.1} parent=11 // pred_region
          _
        $region16: #{tpu_custom_call.1} parent=11 // pred_fallthru
          _
        // Predicated region
        $region17: #{tpu_custom_call.1} parent=11 // pred_check
          %p322 = pneg %p89
        $region18: #{tpu_custom_call.1} parent=11 // pred_check_branch
          %324 = sbr.rel (%p322) target = $region20
        $region19: #{tpu_custom_call.1} parent=11 // pred_region
          _
        $region20: #{tpu_custom_call.1} parent=11 // pred_fallthru
          _
        // Predicated region
        $region21: #{tpu_custom_call.1} parent=11 // pred_check
          %p325 = pneg %p110
        $region22: #{tpu_custom_call.1} parent=11 // pred_check_branch
          %327 = sbr.rel (%p325) target = $region24
        $region23: #{tpu_custom_call.1} parent=11 // pred_region
          _
        $region24: #{tpu_custom_call.1} parent=11 // pred_fallthru
          _
        // Predicated region
        $region25: #{tpu_custom_call.1} parent=11 // pred_check
          %p328 = pneg %p131
        $region26: #{tpu_custom_call.1} parent=11 // pred_check_branch
          %330 = sbr.rel (%p328) target = $region28
        $region27: #{tpu_custom_call.1} parent=11 // pred_region
          _
        $region28: #{tpu_custom_call.1} parent=11 // pred_fallthru
          _
        // Predicated region
        $region29: #{tpu_custom_call.1} parent=11 // pred_check
          %p331 = pneg %p152
        $region30: #{tpu_custom_call.1} parent=11 // pred_check_branch
          %333 = sbr.rel (%p331) target = $region32
        $region31: #{tpu_custom_call.1} parent=11 // pred_region
          _
        $region32: #{tpu_custom_call.1} parent=11 // pred_fallthru
          _
        // Predicated region
        $region33: #{tpu_custom_call.1} parent=11 // pred_check
          %p334 = pneg %p173
        $region34: #{tpu_custom_call.1} parent=11 // pred_check_branch
          %336 = sbr.rel (%p334) target = $region36
        $region35: #{tpu_custom_call.1} parent=11 // pred_region
          _
        $region36: #{tpu_custom_call.1} parent=11 // pred_fallthru
          _
        // Predicated region
        $region37: #{tpu_custom_call.1} parent=11 // pred_check
          %p337 = pneg %p194
        $region38: #{tpu_custom_call.1} parent=11 // pred_check_branch
          %339 = sbr.rel (%p337) target = $region40
        $region39: #{tpu_custom_call.1} parent=11 // pred_region
          _
        $region40: #{tpu_custom_call.1} parent=11 // pred_fallthru
          _
        // Predicated region
        $region41: #{tpu_custom_call.1} parent=11 // pred_check
          %p340 = pneg %p215
        $region42: #{tpu_custom_call.1} parent=11 // pred_check_branch
          %342 = sbr.rel (%p340) target = $region44
        $region43: #{tpu_custom_call.1} parent=11 // pred_region
          _
        $region44: #{tpu_custom_call.1} parent=11 // pred_fallthru
          _
        // Predicated region
        $region45: #{tpu_custom_call.1} parent=11 // pred_check
          %p343 = pneg %p236
        $region46: #{tpu_custom_call.1} parent=11 // pred_check_branch
          %345 = sbr.rel (%p343) target = $region48
        $region47: #{tpu_custom_call.1} parent=11 // pred_region
          _
        $region48: #{tpu_custom_call.1} parent=11 // pred_fallthru
          _
        // Predicated region
        $region49: #{tpu_custom_call.1} parent=11 // pred_check
          %p346 = pneg %p257
        $region50: #{tpu_custom_call.1} parent=11 // pred_check_branch
          %348 = sbr.rel (%p346) target = $region52
        $region51: #{tpu_custom_call.1} parent=11 // pred_region
          _
        $region52: #{tpu_custom_call.1} parent=11 // pred_fallthru
          _
        // Predicated region
        $region53: #{tpu_custom_call.1} parent=11 // pred_check
          %p349 = pneg %p278
        $region54: #{tpu_custom_call.1} parent=11 // pred_check_branch
          %351 = sbr.rel (%p349) target = $region56
        $region55: #{tpu_custom_call.1} parent=11 // pred_region
          _
        $region56: #{tpu_custom_call.1} parent=11 // pred_fallthru
          _
      $region12: #{tpu_custom_call.1} parent=5 // pred_fallthru
        _
      %p352 = scmp.lt.s32.totalorder %s21, 2
      // Predicated region
      $region57: #{tpu_custom_call.1} parent=5 // pred_check
        %p353 = pneg %p352
      $region58: #{tpu_custom_call.1} parent=5 // pred_check_branch
        %355 = sbr.rel (%p353) target = $region60
      $region59: #{tpu_custom_call.1} parent=5 // pred_region
        // Predicated region
        $region61: #{tpu_custom_call.1} parent=59 // pred_check
          %p356 = pneg %p41
        $region62: #{tpu_custom_call.1} parent=59 // pred_check_branch
          %358 = sbr.rel (%p356) target = $region64
        $region63: #{tpu_custom_call.1} parent=59 // pred_region
          %p359 = scmp.lt.s32.totalorder %s21, 1
          %s360 = scalar_select %p359, %s21, 1
          %s361 = smul.addr %s360, 8
          %s362 = scalar_lea.vmem %s0, %s361
        $region64: #{tpu_custom_call.1} parent=59 // pred_fallthru
          _
      $region60: #{tpu_custom_call.1} parent=5 // pred_fallthru
        _
      %p363 = scmp.le.s32.totalorder 1, %s21
      %p364 = scmp.lt.s32.totalorder %s21, 3
      %p365 = pnand %p363, %p364
      %p366 = pneg %p365
      // Predicated region
      $region65: #{tpu_custom_call.1} parent=5 // pred_check
        _
      $region66: #{tpu_custom_call.1} parent=5 // pred_check_branch
        %368 = sbr.rel (%p365) target = $region68
      $region67: #{tpu_custom_call.1} parent=5 // pred_region
        %s369 = ssub.s32 %s21, 1
        %p370 = scmp.lt.s32.totalorder %s26, 1
        %s371 = scalar_select %p370, %s26, 1
        %s372 = smul.addr %s371, 8
        %s373 = scalar_lea.vmem %s0, %s372
        %p374 = pneg %p47
        %p375 = pneg %p44
        %p376 = pneg %p68
        %p377 = pneg %p65
        %p378 = pneg %p89
        %p379 = pneg %p86
        %p380 = pneg %p110
        %p381 = pneg %p107
        %p382 = pneg %p131
        %p383 = pneg %p128
        %p384 = pneg %p152
        %p385 = pneg %p149
        %p386 = pneg %p173
        %p387 = pneg %p170
        %p388 = pneg %p194
        %p389 = pneg %p191
        %p390 = pneg %p215
        %p391 = pneg %p212
        %p392 = pneg %p236
        %p393 = pneg %p233
        %p394 = pneg %p257
        %p395 = pneg %p254
        %p396 = pneg %p278
        %p397 = pneg %p275
        %p398 = pneg %p304
        %p399 = pneg %p301
        %s400 = sand.u32 %s291, 1
        %s401 = scalar_lea.sflag [#allocation3], %s400
        %s402 = sand.u32 %s291, 1
        %s403 = smul.addr %s402, 8
        %s404 = scalar_lea.vmem [#allocation2], %s403
        %p405 = scmp.lt.s32.totalorder %s26, 1
        %s406 = scalar_select %p405, %s26, 1
        %s407 = smul.addr %s406, 8
        %s408 = scalar_lea.vmem %s0, %s407
        %v410 = vld [vmem:[%s408] sm:$0xff]
        %vm411 = vcmask 261120
        %v412 = vsel %vm411, %v410, 0.0
        %413 = vadd.xlane.f32.xlu0 %v412
        %v414 = vpop.xlane.xlu0 %413
        %v415 = vrcp.pop 32.0
        %v416 = vmul.f32 %v414, %v415
        %v417 = vsub.f32 %v410, %v416
        %v418 = vmul.f32 %v417, %v417
        %v419 = vsel %vm411, %v418, 0.0
        %420 = vadd.xlane.f32.xlu0 %v419
        %v421 = vpop.xlane.xlu0 %420
        %v422 = vmul.f32 %v421, %v415
        %v423 = vadd.f32 %v422, 1e-05
        %v424 = vrsqrt.pop %v423
        %v425 = vmul.f32 %v417, %v424
        %v426 = vld [vmem:[%s1] sm:$0x1]
        %v428 = vlaneseq
        %v429 = vshrl.u32 %v428, 7
        %v430 = vsub.s32 0, %v429
        %v431 = vrot.slane %v426, %v430
        %v433 = vmul.f32 %v425, %v431
        %v434 = vld [vmem:[%s2] sm:$0x1]
        %v436 = vlaneseq
        %v437 = vshrl.u32 %v436, 7
        %v438 = vsub.s32 0, %v437
        %v439 = vrot.slane %v434, %v438
        %v441 = vadd.f32 %v433, %v439
        %v442 = vpack.c.bf16 %v441, %v441
        %v443 = vld [vmem:[%s3] sm:$0xf]
        %v444 = vld [vmem:[%s3 + $0x4] sm:$0xf]
        %v445 = vld [vmem:[%s3 + $0x8] sm:$0xf]
        %v446 = vld [vmem:[%s3 + $0xc] sm:$0xf]
        %v451 = vunpack.c.l.b16 %v443
        %v452 = vunpack.c.l.b16 %v444
        %v453 = vunpack.c.l.b16 %v445
        %v454 = vunpack.c.l.b16 %v446
        %v455 = vpack.c.b16 %v452, %v451
        %v456 = vpack.c.b16 %v454, %v453
        %v460 = vsel %vm411, %v442, 0
        %462 = vmatprep.subr.bf16.mxu0 0
        %463 = vmatpush1.bf16.msra.mxu0 0
        %464 = vmatprep.subr.bf16.mxu0 0
        %465 = vmatpush1.bf16.msra.mxu0 0
        %466 = vmatprep.subr.bf16.mxu0 0
        %467 = vmatpush1.bf16.msra.mxu0 0
        %468 = vmatprep.subr.bf16.mxu0 0
        %469 = vmatpush1.bf16.msra.mxu0 0
        %470 = vmatprep.subr.bf16.mxu0 0
        %471 = vmatpush1.bf16.msra.mxu0 0
        %472 = vmatprep.subr.bf16.mxu0 0
        %473 = vmatpush1.bf16.msra.mxu0 0
        %474 = vmatprep.subr.bf16.mxu0 0
        %475 = vmatpush1.bf16.msra.mxu0 %v456
        %476 = vmatprep.subr.bf16.mxu0 0
        %477 = vmatpush1.bf16.msra.mxu0 %v455
        %478 = vmatprep.subr.bf16.mxu0 0
        %479 = vmatpush2.bf16.msra.mxu0 0
        %480 = vmatprep.subr.bf16.mxu0 0
        %481 = vmatpush2.bf16.msra.mxu0 0
        %482 = vmatprep.subr.bf16.mxu0 0
        %483 = vmatpush2.bf16.msra.mxu0 0
        %484 = vmatprep.subr.bf16.mxu0 0
        %485 = vmatpush2.bf16.msra.mxu0 0
        %486 = vmatprep.subr.bf16.mxu0 0
        %487 = vmatpush2.bf16.msra.mxu0 0
        %488 = vmatprep.subr.bf16.mxu0 0
        %489 = vmatpush2.bf16.msra.mxu0 0
        %490 = vmatprep.subr.bf16.mxu0 0
        %491 = vmatpush2.bf16.msra.mxu0 0
        %492 = vmatprep.subr.bf16.mxu0 0
        %493 = vmatpush2.bf16.msra.mxu0 0
        %494 = vmatprep.mubr.bf16.mxu0 0
        %495 = vmatmul.mubr.bf16.gmra.mxu0 %v460
        %v496 = vpop.f32.mrf.mxu0
        %v497 = vadd.f32 0.0, %v496
        %v498 = vpop.f32.mrf.mxu0
        %v499 = vpop.f32.mrf.mxu0
        %v500 = vpop.f32.mrf.mxu0
        %501 = vdwg.mxu0
        %v502 = vpack.c.bf16 %v497, %v497
        %504 = vrot.lane.b32.xlu0 %v502, 96
        %v505 = vpop.permute.xlu0 %504
        %vm506 = vcmask 64512
        %v508 = vsel %vm506, %v502, 0
        %v511 = vsel %vm506, %v505, 0
        %513 = vmatprep.subr.bf16.mxu0 0
        %514 = vmatpush1.bf16.xpose.msra.mxu0 0
        %515 = vmatprep.subr.bf16.mxu0 0
        %516 = vmatpush1.bf16.xpose.msra.mxu0 0
        %517 = vmatprep.subr.bf16.mxu0 0
        %518 = vmatpush1.bf16.xpose.msra.mxu0 0
        %519 = vmatprep.subr.bf16.mxu0 0
        %520 = vmatpush1.bf16.xpose.msra.mxu0 0
        %521 = vmatprep.subr.bf16.mxu0 0
        %522 = vmatpush1.bf16.xpose.msra.mxu0 0
        %523 = vmatprep.subr.bf16.mxu0 0
        %524 = vmatpush1.bf16.xpose.msra.mxu0 0
        %525 = vmatprep.subr.bf16.mxu0 0
        %526 = vmatpush1.bf16.xpose.msra.mxu0 0
        %527 = vmatprep.subr.bf16.mxu0 0
        %528 = vmatpush1.bf16.xpose.msra.mxu0 %v511
        %529 = vmatprep.subr.bf16.mxu0 0
        %530 = vmatpush2.bf16.xpose.msra.mxu0 0
        %531 = vmatprep.subr.bf16.mxu0 0
        %532 = vmatpush2.bf16.xpose.msra.mxu0 0
        %533 = vmatprep.subr.bf16.mxu0 0
        %534 = vmatpush2.bf16.xpose.msra.mxu0 0
        %535 = vmatprep.subr.bf16.mxu0 0
        %536 = vmatpush2.bf16.xpose.msra.mxu0 0
        %537 = vmatprep.subr.bf16.mxu0 0
        %538 = vmatpush2.bf16.xpose.msra.mxu0 0
        %539 = vmatprep.subr.bf16.mxu0 0
        %540 = vmatpush2.bf16.xpose.msra.mxu0 0
        %541 = vmatprep.subr.bf16.mxu0 0
        %542 = vmatpush2.bf16.xpose.msra.mxu0 0
        %543 = vmatprep.subr.bf16.mxu0 0
        %544 = vmatpush2.bf16.xpose.msra.mxu0 0
        %545 = vmatprep.mubr.bf16.mxu0 0
        %546 = vmatmul.mubr.bf16.gmra.mxu0 %v508
        %v547 = vpop.f32.mrf.mxu0
        %v548 = vadd.f32 0.0, %v547
        %v549 = vpop.f32.mrf.mxu0
        %v550 = vpop.f32.mrf.mxu0
        %v551 = vpop.f32.mrf.mxu0
        %552 = vdwg.mxu0
        %v553 = vsel %vm506, %v548, -inf
        %554 = vmax.xlane.f32.xlu0 %v553
        %v555 = vpop.xlane.xlu0 %554
        %v556 = vsub.f32 %v548, %v555
        %v557 = vmul.f32 %v556, 1.442695
        %v558 = vpow.pop %v557
        %v559 = vsel %vm506, %v558, 0.0
        %560 = vadd.xlane.f32.xlu0 %v559
        %v561 = vpop.xlane.xlu0 %560
        %v562 = vpack.c.bf16 %v558, %v558
        %563 = vrot.lane.b32.xlu0 %v502, 64
        %v564 = vpop.permute.xlu0 %563
        %v566 = vsel %vm506, %v562, 0
        %vm568 = vcmask 1043456
        %v570 = vsel %vm568, %v564, 0
        %572 = vmatprep.subr.bf16.mxu0 0
        %573 = vmatpush1.bf16.msra.mxu0 0
        %574 = vmatprep.subr.bf16.mxu0 0
        %575 = vmatpush1.bf16.msra.mxu0 0
        %576 = vmatprep.subr.bf16.mxu0 0
        %577 = vmatpush1.bf16.msra.mxu0 0
        %578 = vmatprep.subr.bf16.mxu0 0
        %579 = vmatpush1.bf16.msra.mxu0 0
        %580 = vmatprep.subr.bf16.mxu0 0
        %581 = vmatpush1.bf16.msra.mxu0 0
        %582 = vmatprep.subr.bf16.mxu0 0
        %583 = vmatpush1.bf16.msra.mxu0 0
        %584 = vmatprep.subr.bf16.mxu0 0
        %585 = vmatpush1.bf16.msra.mxu0 0
        %586 = vmatprep.subr.bf16.mxu0 0
        %587 = vmatpush1.bf16.msra.mxu0 %v570
        %588 = vmatprep.subr.bf16.mxu0 0
        %589 = vmatpush2.bf16.msra.mxu0 0
        %590 = vmatprep.subr.bf16.mxu0 0
        %591 = vmatpush2.bf16.msra.mxu0 0
        %592 = vmatprep.subr.bf16.mxu0 0
        %593 = vmatpush2.bf16.msra.mxu0 0
        %594 = vmatprep.subr.bf16.mxu0 0
        %595 = vmatpush2.bf16.msra.mxu0 0
        %596 = vmatprep.subr.bf16.mxu0 0
        %597 = vmatpush2.bf16.msra.mxu0 0
        %598 = vmatprep.subr.bf16.mxu0 0
        %599 = vmatpush2.bf16.msra.mxu0 0
        %600 = vmatprep.subr.bf16.mxu0 0
        %601 = vmatpush2.bf16.msra.mxu0 0
        %602 = vmatprep.subr.bf16.mxu0 0
        %603 = vmatpush2.bf16.msra.mxu0 0
        %604 = vmatprep.mubr.bf16.mxu0 0
        %605 = vmatmul.mubr.bf16.gmra.mxu0 %v566
        %v606 = vpop.f32.mrf.mxu0
        %v607 = vadd.f32 0.0, %v606
        %v608 = vpop.f32.mrf.mxu0
        %v609 = vpop.f32.mrf.mxu0
        %v610 = vpop.f32.mrf.mxu0
        %611 = vdwg.mxu0
        %v612 = vrcp.pop %v561
        %v613 = vmul.f32 %v607, %v612
        %614 = vrot.lane.b32.xlu0 %v502, 120
        %v615 = vpop.permute.xlu0 %614
        %616 = vrot.lane.b32.xlu0 %v502, 88
        %v617 = vpop.permute.xlu0 %616
        %v619 = vsel %vm506, %v615, 0
        %v622 = vsel %vm506, %v617, 0
        %624 = vmatprep.subr.bf16.mxu0 0
        %625 = vmatpush1.bf16.xpose.msra.mxu0 0
        %626 = vmatprep.subr.bf16.mxu0 0
        %627 = vmatpush1.bf16.xpose.msra.mxu0 0
        %628 = vmatprep.subr.bf16.mxu0 0
        %629 = vmatpush1.bf16.xpose.msra.mxu0 0
        %630 = vmatprep.subr.bf16.mxu0 0
        %631 = vmatpush1.bf16.xpose.msra.mxu0 0
        %632 = vmatprep.subr.bf16.mxu0 0
        %633 = vmatpush1.bf16.xpose.msra.mxu0 0
        %634 = vmatprep.subr.bf16.mxu0 0
        %635 = vmatpush1.bf16.xpose.msra.mxu0 0
        %636 = vmatprep.subr.bf16.mxu0 0
        %637 = vmatpush1.bf16.xpose.msra.mxu0 0
        %638 = vmatprep.subr.bf16.mxu0 0
        %639 = vmatpush1.bf16.xpose.msra.mxu0 %v622
        %640 = vmatprep.subr.bf16.mxu0 0
        %641 = vmatpush2.bf16.xpose.msra.mxu0 0
        %642 = vmatprep.subr.bf16.mxu0 0
        %643 = vmatpush2.bf16.xpose.msra.mxu0 0
        %644 = vmatprep.subr.bf16.mxu0 0
        %645 = vmatpush2.bf16.xpose.msra.mxu0 0
        %646 = vmatprep.subr.bf16.mxu0 0
        %647 = vmatpush2.bf16.xpose.msra.mxu0 0
        %648 = vmatprep.subr.bf16.mxu0 0
        %649 = vmatpush2.bf16.xpose.msra.mxu0 0
        %650 = vmatprep.subr.bf16.mxu0 0
        %651 = vmatpush2.bf16.xpose.msra.mxu0 0
        %652 = vmatprep.subr.bf16.mxu0 0
        %653 = vmatpush2.bf16.xpose.msra.mxu0 0
        %654 = vmatprep.subr.bf16.mxu0 0
        %655 = vmatpush2.bf16.xpose.msra.mxu0 0
        %656 = vmatprep.mubr.bf16.mxu0 0
        %657 = vmatmul.mubr.bf16.gmra.mxu0 %v619
        %v658 = vpop.f32.mrf.mxu0
        %v659 = vadd.f32 0.0, %v658
        %v660 = vpop.f32.mrf.mxu0
        %v661 = vpop.f32.mrf.mxu0
        %v662 = vpop.f32.mrf.mxu0
        %663 = vdwg.mxu0
        %v664 = vsel %vm506, %v659, -inf
        %665 = vmax.xlane.f32.xlu0 %v664
        %v666 = vpop.xlane.xlu0 %665
        %v667 = vsub.f32 %v659, %v666
        %v668 = vmul.f32 %v667, 1.442695
        %v669 = vpow.pop %v668
        %v670 = vsel %vm506, %v669, 0.0
        %671 = vadd.xlane.f32.xlu0 %v670
        %v672 = vpop.xlane.xlu0 %671
        %v673 = vpack.c.bf16 %v669, %v669
        %674 = vrot.lane.b32.xlu0 %v502, 56
        %v675 = vpop.permute.xlu0 %674
        %v677 = vsel %vm506, %v673, 0
        %v680 = vsel %vm568, %v675, 0
        %682 = vmatprep.subr.bf16.mxu0 0
        %683 = vmatpush1.bf16.msra.mxu0 0
        %684 = vmatprep.subr.bf16.mxu0 0
        %685 = vmatpush1.bf16.msra.mxu0 0
        %686 = vmatprep.subr.bf16.mxu0 0
        %687 = vmatpush1.bf16.msra.mxu0 0
        %688 = vmatprep.subr.bf16.mxu0 0
        %689 = vmatpush1.bf16.msra.mxu0 0
        %690 = vmatprep.subr.bf16.mxu0 0
        %691 = vmatpush1.bf16.msra.mxu0 0
        %692 = vmatprep.subr.bf16.mxu0 0
        %693 = vmatpush1.bf16.msra.mxu0 0
        %694 = vmatprep.subr.bf16.mxu0 0
        %695 = vmatpush1.bf16.msra.mxu0 0
        %696 = vmatprep.subr.bf16.mxu0 0
        %697 = vmatpush1.bf16.msra.mxu0 %v680
        %698 = vmatprep.subr.bf16.mxu0 0
        %699 = vmatpush2.bf16.msra.mxu0 0
        %700 = vmatprep.subr.bf16.mxu0 0
        %701 = vmatpush2.bf16.msra.mxu0 0
        %702 = vmatprep.subr.bf16.mxu0 0
        %703 = vmatpush2.bf16.msra.mxu0 0
        %704 = vmatprep.subr.bf16.mxu0 0
        %705 = vmatpush2.bf16.msra.mxu0 0
        %706 = vmatprep.subr.bf16.mxu0 0
        %707 = vmatpush2.bf16.msra.mxu0 0
        %708 = vmatprep.subr.bf16.mxu0 0
        %709 = vmatpush2.bf16.msra.mxu0 0
        %710 = vmatprep.subr.bf16.mxu0 0
        %711 = vmatpush2.bf16.msra.mxu0 0
        %712 = vmatprep.subr.bf16.mxu0 0
        %713 = vmatpush2.bf16.msra.mxu0 0
        %714 = vmatprep.mubr.bf16.mxu0 0
        %715 = vmatmul.mubr.bf16.gmra.mxu0 %v677
        %v716 = vpop.f32.mrf.mxu0
        %v717 = vadd.f32 0.0, %v716
        %v718 = vpop.f32.mrf.mxu0
        %v719 = vpop.f32.mrf.mxu0
        %v720 = vpop.f32.mrf.mxu0
        %721 = vdwg.mxu0
        %v722 = vrcp.pop %v672
        %v723 = vmul.f32 %v717, %v722
        %724 = vrot.lane.b32.xlu0 %v502, 112
        %v725 = vpop.permute.xlu0 %724
        %726 = vrot.lane.b32.xlu0 %v502, 80
        %v727 = vpop.permute.xlu0 %726
        %v729 = vsel %vm506, %v725, 0
        %v732 = vsel %vm506, %v727, 0
        %734 = vmatprep.subr.bf16.mxu0 0
        %735 = vmatpush1.bf16.xpose.msra.mxu0 0
        %736 = vmatprep.subr.bf16.mxu0 0
        %737 = vmatpush1.bf16.xpose.msra.mxu0 0
        %738 = vmatprep.subr.bf16.mxu0 0
        %739 = vmatpush1.bf16.xpose.msra.mxu0 0
        %740 = vmatprep.subr.bf16.mxu0 0
        %741 = vmatpush1.bf16.xpose.msra.mxu0 0
        %742 = vmatprep.subr.bf16.mxu0 0
        %743 = vmatpush1.bf16.xpose.msra.mxu0 0
        %744 = vmatprep.subr.bf16.mxu0 0
        %745 = vmatpush1.bf16.xpose.msra.mxu0 0
        %746 = vmatprep.subr.bf16.mxu0 0
        %747 = vmatpush1.bf16.xpose.msra.mxu0 0
        %748 = vmatprep.subr.bf16.mxu0 0
        %749 = vmatpush1.bf16.xpose.msra.mxu0 %v732
        %750 = vmatprep.subr.bf16.mxu0 0
        %751 = vmatpush2.bf16.xpose.msra.mxu0 0
        %752 = vmatprep.subr.bf16.mxu0 0
        %753 = vmatpush2.bf16.xpose.msra.mxu0 0
        %754 = vmatprep.subr.bf16.mxu0 0
        %755 = vmatpush2.bf16.xpose.msra.mxu0 0
        %756 = vmatprep.subr.bf16.mxu0 0
        %757 = vmatpush2.bf16.xpose.msra.mxu0 0
        %758 = vmatprep.subr.bf16.mxu0 0
        %759 = vmatpush2.bf16.xpose.msra.mxu0 0
        %760 = vmatprep.subr.bf16.mxu0 0
        %761 = vmatpush2.bf16.xpose.msra.mxu0 0
        %762 = vmatprep.subr.bf16.mxu0 0
        %763 = vmatpush2.bf16.xpose.msra.mxu0 0
        %764 = vmatprep.subr.bf16.mxu0 0
        %765 = vmatpush2.bf16.xpose.msra.mxu0 0
        %766 = vmatprep.mubr.bf16.mxu0 0
        %767 = vmatmul.mubr.bf16.gmra.mxu0 %v729
        %v768 = vpop.f32.mrf.mxu0
        %v769 = vadd.f32 0.0, %v768
        %v770 = vpop.f32.mrf.mxu0
        %v771 = vpop.f32.mrf.mxu0
        %v772 = vpop.f32.mrf.mxu0
        %773 = vdwg.mxu0
        %v774 = vsel %vm506, %v769, -inf
        %775 = vmax.xlane.f32.xlu0 %v774
        %v776 = vpop.xlane.xlu0 %775
        %v777 = vsub.f32 %v769, %v776
        %v778 = vmul.f32 %v777, 1.442695
        %v779 = vpow.pop %v778
        %v780 = vsel %vm506, %v779, 0.0
        %781 = vadd.xlane.f32.xlu0 %v780
        %v782 = vpop.xlane.xlu0 %781
        %v783 = vpack.c.bf16 %v779, %v779
        %784 = vrot.lane.b32.xlu0 %v502, 48
        %v785 = vpop.permute.xlu0 %784
        %v787 = vsel %vm506, %v783, 0
        %v790 = vsel %vm568, %v785, 0
        %792 = vmatprep.subr.bf16.mxu0 0
        %793 = vmatpush1.bf16.msra.mxu0 0
        %794 = vmatprep.subr.bf16.mxu0 0
        %795 = vmatpush1.bf16.msra.mxu0 0
        %796 = vmatprep.subr.bf16.mxu0 0
        %797 = vmatpush1.bf16.msra.mxu0 0
        %798 = vmatprep.subr.bf16.mxu0 0
        %799 = vmatpush1.bf16.msra.mxu0 0
        %800 = vmatprep.subr.bf16.mxu0 0
        %801 = vmatpush1.bf16.msra.mxu0 0
        %802 = vmatprep.subr.bf16.mxu0 0
        %803 = vmatpush1.bf16.msra.mxu0 0
        %804 = vmatprep.subr.bf16.mxu0 0
        %805 = vmatpush1.bf16.msra.mxu0 0
        %806 = vmatprep.subr.bf16.mxu0 0
        %807 = vmatpush1.bf16.msra.mxu0 %v790
        %808 = vmatprep.subr.bf16.mxu0 0
        %809 = vmatpush2.bf16.msra.mxu0 0
        %810 = vmatprep.subr.bf16.mxu0 0
        %811 = vmatpush2.bf16.msra.mxu0 0
        %812 = vmatprep.subr.bf16.mxu0 0
        %813 = vmatpush2.bf16.msra.mxu0 0
        %814 = vmatprep.subr.bf16.mxu0 0
        %815 = vmatpush2.bf16.msra.mxu0 0
        %816 = vmatprep.subr.bf16.mxu0 0
        %817 = vmatpush2.bf16.msra.mxu0 0
        %818 = vmatprep.subr.bf16.mxu0 0
        %819 = vmatpush2.bf16.msra.mxu0 0
        %820 = vmatprep.subr.bf16.mxu0 0
        %821 = vmatpush2.bf16.msra.mxu0 0
        %822 = vmatprep.subr.bf16.mxu0 0
        %823 = vmatpush2.bf16.msra.mxu0 0
        %824 = vmatprep.mubr.bf16.mxu0 0
        %825 = vmatmul.mubr.bf16.gmra.mxu0 %v787
        %v826 = vpop.f32.mrf.mxu0
        %v827 = vadd.f32 0.0, %v826
        %v828 = vpop.f32.mrf.mxu0
        %v829 = vpop.f32.mrf.mxu0
        %v830 = vpop.f32.mrf.mxu0
        %831 = vdwg.mxu0
        %v832 = vrcp.pop %v782
        %v833 = vmul.f32 %v827, %v832
        %834 = vrot.lane.b32.xlu0 %v502, 104
        %v835 = vpop.permute.xlu0 %834
        %836 = vrot.lane.b32.xlu0 %v502, 72
        %v837 = vpop.permute.xlu0 %836
        %v839 = vsel %vm506, %v835, 0
        %v842 = vsel %vm506, %v837, 0
        %844 = vmatprep.subr.bf16.mxu0 0
        %845 = vmatpush1.bf16.xpose.msra.mxu0 0
        %846 = vmatprep.subr.bf16.mxu0 0
        %847 = vmatpush1.bf16.xpose.msra.mxu0 0
        %848 = vmatprep.subr.bf16.mxu0 0
        %849 = vmatpush1.bf16.xpose.msra.mxu0 0
        %850 = vmatprep.subr.bf16.mxu0 0
        %851 = vmatpush1.bf16.xpose.msra.mxu0 0
        %852 = vmatprep.subr.bf16.mxu0 0
        %853 = vmatpush1.bf16.xpose.msra.mxu0 0
        %854 = vmatprep.subr.bf16.mxu0 0
        %855 = vmatpush1.bf16.xpose.msra.mxu0 0
        %856 = vmatprep.subr.bf16.mxu0 0
        %857 = vmatpush1.bf16.xpose.msra.mxu0 0
        %858 = vmatprep.subr.bf16.mxu0 0
        %859 = vmatpush1.bf16.xpose.msra.mxu0 %v842
        %860 = vmatprep.subr.bf16.mxu0 0
        %861 = vmatpush2.bf16.xpose.msra.mxu0 0
        %862 = vmatprep.subr.bf16.mxu0 0
        %863 = vmatpush2.bf16.xpose.msra.mxu0 0
        %864 = vmatprep.subr.bf16.mxu0 0
        %865 = vmatpush2.bf16.xpose.msra.mxu0 0
        %866 = vmatprep.subr.bf16.mxu0 0
        %867 = vmatpush2.bf16.xpose.msra.mxu0 0
        %868 = vmatprep.subr.bf16.mxu0 0
        %869 = vmatpush2.bf16.xpose.msra.mxu0 0
        %870 = vmatprep.subr.bf16.mxu0 0
        %871 = vmatpush2.bf16.xpose.msra.mxu0 0
        %872 = vmatprep.subr.bf16.mxu0 0
        %873 = vmatpush2.bf16.xpose.msra.mxu0 0
        %874 = vmatprep.subr.bf16.mxu0 0
        %875 = vmatpush2.bf16.xpose.msra.mxu0 0
        %876 = vmatprep.mubr.bf16.mxu0 0
        %877 = vmatmul.mubr.bf16.gmra.mxu0 %v839
        %v878 = vpop.f32.mrf.mxu0
        %v879 = vadd.f32 0.0, %v878
        %v880 = vpop.f32.mrf.mxu0
        %v881 = vpop.f32.mrf.mxu0
        %v882 = vpop.f32.mrf.mxu0
        %883 = vdwg.mxu0
        %v884 = vsel %vm506, %v879, -inf
        %885 = vmax.xlane.f32.xlu0 %v884
        %v886 = vpop.xlane.xlu0 %885
        %v887 = vsub.f32 %v879, %v886
        %v888 = vmul.f32 %v887, 1.442695
        %v889 = vpow.pop %v888
        %v890 = vsel %vm506, %v889, 0.0
        %891 = vadd.xlane.f32.xlu0 %v890
        %v892 = vpop.xlane.xlu0 %891
        %v893 = vpack.c.bf16 %v889, %v889
        %894 = vrot.lane.b32.xlu0 %v502, 40
        %v895 = vpop.permute.xlu0 %894
        %v897 = vsel %vm506, %v893, 0
        %v900 = vsel %vm568, %v895, 0
        %902 = vmatprep.subr.bf16.mxu0 0
        %903 = vmatpush1.bf16.msra.mxu0 0
        %904 = vmatprep.subr.bf16.mxu0 0
        %905 = vmatpush1.bf16.msra.mxu0 0
        %906 = vmatprep.subr.bf16.mxu0 0
        %907 = vmatpush1.bf16.msra.mxu0 0
        %908 = vmatprep.subr.bf16.mxu0 0
        %909 = vmatpush1.bf16.msra.mxu0 0
        %910 = vmatprep.subr.bf16.mxu0 0
        %911 = vmatpush1.bf16.msra.mxu0 0
        %912 = vmatprep.subr.bf16.mxu0 0
        %913 = vmatpush1.bf16.msra.mxu0 0
        %914 = vmatprep.subr.bf16.mxu0 0
        %915 = vmatpush1.bf16.msra.mxu0 0
        %916 = vmatprep.subr.bf16.mxu0 0
        %917 = vmatpush1.bf16.msra.mxu0 %v900
        %918 = vmatprep.subr.bf16.mxu0 0
        %919 = vmatpush2.bf16.msra.mxu0 0
        %920 = vmatprep.subr.bf16.mxu0 0
        %921 = vmatpush2.bf16.msra.mxu0 0
        %922 = vmatprep.subr.bf16.mxu0 0
        %923 = vmatpush2.bf16.msra.mxu0 0
        %924 = vmatprep.subr.bf16.mxu0 0
        %925 = vmatpush2.bf16.msra.mxu0 0
        %926 = vmatprep.subr.bf16.mxu0 0
        %927 = vmatpush2.bf16.msra.mxu0 0
        %928 = vmatprep.subr.bf16.mxu0 0
        %929 = vmatpush2.bf16.msra.mxu0 0
        %930 = vmatprep.subr.bf16.mxu0 0
        %931 = vmatpush2.bf16.msra.mxu0 0
        %932 = vmatprep.subr.bf16.mxu0 0
        %933 = vmatpush2.bf16.msra.mxu0 0
        %934 = vmatprep.mubr.bf16.mxu0 0
        %935 = vmatmul.mubr.bf16.gmra.mxu0 %v897
        %v936 = vpop.f32.mrf.mxu0
        %v937 = vadd.f32 0.0, %v936
        %v938 = vpop.f32.mrf.mxu0
        %v939 = vpop.f32.mrf.mxu0
        %v940 = vpop.f32.mrf.mxu0
        %941 = vdwg.mxu0
        %v942 = vrcp.pop %v892
        %v943 = vmul.f32 %v937, %v942
        %945 = vrot.lane.b32.xlu0 %v723, 8
        %v946 = vpop.permute.xlu0 %945
        %949 = vrot.lane.b32.xlu0 %v833, 16
        %v950 = vpop.permute.xlu0 %949
        %953 = vrot.lane.b32.xlu0 %v943, 24
        %v954 = vpop.permute.xlu0 %953
        %v956 = vsel %vm506, %v613, %v946
        %vm957 = vcmask 130048
        %v958 = vsel %vm957, %v956, %v950
        %vm959 = vcmask 195584
        %v960 = vsel %vm959, %v958, %v954
        %v961 = vpack.c.bf16 %v960, %v960
        %v962 = vld [vmem:[%s4] sm:$0xf]
        %v963 = vld [vmem:[%s4 + $0x4] sm:$0xf]
        %v964 = vld [vmem:[%s4 + $0x8] sm:$0xf]
        %v965 = vld [vmem:[%s4 + $0xc] sm:$0xf]
        %v966 = vld [vmem:[%s5] sm:$0x1]
        %v968 = vlaneseq
        %v969 = vshrl.u32 %v968, 7
        %v970 = vsub.s32 0, %v969
        %v971 = vrot.slane %v966, %v970
        %v977 = vunpack.c.l.b16 %v962
        %v978 = vunpack.c.l.b16 %v963
        %v979 = vunpack.c.l.b16 %v964
        %v980 = vunpack.c.l.b16 %v965
        %v981 = vpack.c.b16 %v978, %v977
        %v982 = vpack.c.b16 %v980, %v979
        %v986 = vsel %vm411, %v961, 0
        %988 = vmatprep.subr.bf16.mxu0 0
        %989 = vmatpush1.bf16.msra.mxu0 0
        %990 = vmatprep.subr.bf16.mxu0 0
        %991 = vmatpush1.bf16.msra.mxu0 0
        %992 = vmatprep.subr.bf16.mxu0 0
        %993 = vmatpush1.bf16.msra.mxu0 0
        %994 = vmatprep.subr.bf16.mxu0 0
        %995 = vmatpush1.bf16.msra.mxu0 0
        %996 = vmatprep.subr.bf16.mxu0 0
        %997 = vmatpush1.bf16.msra.mxu0 0
        %998 = vmatprep.subr.bf16.mxu0 0
        %999 = vmatpush1.bf16.msra.mxu0 0
        %1000 = vmatprep.subr.bf16.mxu0 0
        %1001 = vmatpush1.bf16.msra.mxu0 %v982
        %1002 = vmatprep.subr.bf16.mxu0 0
        %1003 = vmatpush1.bf16.msra.mxu0 %v981
        %1004 = vmatprep.subr.bf16.mxu0 0
        %1005 = vmatpush2.bf16.msra.mxu0 0
        %1006 = vmatprep.subr.bf16.mxu0 0
        %1007 = vmatpush2.bf16.msra.mxu0 0
        %1008 = vmatprep.subr.bf16.mxu0 0
        %1009 = vmatpush2.bf16.msra.mxu0 0
        %1010 = vmatprep.subr.bf16.mxu0 0
        %1011 = vmatpush2.bf16.msra.mxu0 0
        %1012 = vmatprep.subr.bf16.mxu0 0
        %1013 = vmatpush2.bf16.msra.mxu0 0
        %1014 = vmatprep.subr.bf16.mxu0 0
        %1015 = vmatpush2.bf16.msra.mxu0 0
        %1016 = vmatprep.subr.bf16.mxu0 0
        %1017 = vmatpush2.bf16.msra.mxu0 0
        %1018 = vmatprep.subr.bf16.mxu0 0
        %1019 = vmatpush2.bf16.msra.mxu0 0
        %1020 = vmatprep.mubr.bf16.mxu0 0
        %1021 = vmatmul.mubr.bf16.gmra.mxu0 %v986
        %v1022 = vpop.f32.mrf.mxu0
        %v1023 = vadd.f32 %v971, %v1022
        %v1024 = vpop.f32.mrf.mxu0
        %v1025 = vpop.f32.mrf.mxu0
        %v1026 = vpop.f32.mrf.mxu0
        %1027 = vdwg.mxu0
        %v1028 = vadd.f32 %v410, %v1023
        %v1029 = vsel %vm411, %v1028, 0.0
        %1030 = vadd.xlane.f32.xlu0 %v1029
        %v1031 = vpop.xlane.xlu0 %1030
        %v1032 = vmul.f32 %v1031, %v415
        %v1033 = vsub.f32 %v1028, %v1032
        %v1034 = vmul.f32 %v1033, %v1033
        %v1035 = vsel %vm411, %v1034, 0.0
        %1036 = vadd.xlane.f32.xlu0 %v1035
        %v1037 = vpop.xlane.xlu0 %1036
        %v1038 = vmul.f32 %v1037, %v415
        %v1039 = vadd.f32 %v1038, 1e-05
        %v1040 = vrsqrt.pop %v1039
        %v1041 = vmul.f32 %v1033, %v1040
        %v1042 = vld [vmem:[%s6] sm:$0x1]
        %v1044 = vlaneseq
        %v1045 = vshrl.u32 %v1044, 7
        %v1046 = vsub.s32 0, %v1045
        %v1047 = vrot.slane %v1042, %v1046
        %v1049 = vmul.f32 %v1041, %v1047
        %v1050 = vld [vmem:[%s7] sm:$0x1]
        %v1052 = vlaneseq
        %v1053 = vshrl.u32 %v1052, 7
        %v1054 = vsub.s32 0, %v1053
        %v1055 = vrot.slane %v1050, %v1054
        %v1057 = vadd.f32 %v1049, %v1055
        %v1058 = vpack.c.bf16 %v1057, %v1057
        %v1059 = vld [vmem:[%s8] sm:$0xf]
        %v1060 = vld [vmem:[%s8 + $0x4] sm:$0xf]
        %v1061 = vld [vmem:[%s8 + $0x8] sm:$0xf]
        %v1062 = vld [vmem:[%s8 + $0xc] sm:$0xf]
        %v1063 = vld [vmem:[%s9] sm:$0x1]
        %v1065 = vlaneseq
        %v1066 = vshrl.u32 %v1065, 7
        %v1067 = vsub.s32 0, %v1066
        %v1068 = vrot.slane %v1063, %v1067
        %v1074 = vunpack.c.l.b16 %v1059
        %v1075 = vunpack.c.l.b16 %v1060
        %v1076 = vunpack.c.l.b16 %v1061
        %v1077 = vunpack.c.l.b16 %v1062
        %v1078 = vpack.c.b16 %v1075, %v1074
        %v1079 = vpack.c.b16 %v1077, %v1076
        %v1083 = vsel %vm411, %v1058, 0
        %1085 = vmatprep.subr.bf16.mxu0 0
        %1086 = vmatpush1.bf16.msra.mxu0 0
        %1087 = vmatprep.subr.bf16.mxu0 0
        %1088 = vmatpush1.bf16.msra.mxu0 0
        %1089 = vmatprep.subr.bf16.mxu0 0
        %1090 = vmatpush1.bf16.msra.mxu0 0
        %1091 = vmatprep.subr.bf16.mxu0 0
        %1092 = vmatpush1.bf16.msra.mxu0 0
        %1093 = vmatprep.subr.bf16.mxu0 0
        %1094 = vmatpush1.bf16.msra.mxu0 0
        %1095 = vmatprep.subr.bf16.mxu0 0
        %1096 = vmatpush1.bf16.msra.mxu0 0
        %1097 = vmatprep.subr.bf16.mxu0 0
        %1098 = vmatpush1.bf16.msra.mxu0 %v1079
        %1099 = vmatprep.subr.bf16.mxu0 0
        %1100 = vmatpush1.bf16.msra.mxu0 %v1078
        %1101 = vmatprep.subr.bf16.mxu0 0
        %1102 = vmatpush2.bf16.msra.mxu0 0
        %1103 = vmatprep.subr.bf16.mxu0 0
        %1104 = vmatpush2.bf16.msra.mxu0 0
        %1105 = vmatprep.subr.bf16.mxu0 0
        %1106 = vmatpush2.bf16.msra.mxu0 0
        %1107 = vmatprep.subr.bf16.mxu0 0
        %1108 = vmatpush2.bf16.msra.mxu0 0
        %1109 = vmatprep.subr.bf16.mxu0 0
        %1110 = vmatpush2.bf16.msra.mxu0 0
        %1111 = vmatprep.subr.bf16.mxu0 0
        %1112 = vmatpush2.bf16.msra.mxu0 0
        %1113 = vmatprep.subr.bf16.mxu0 0
        %1114 = vmatpush2.bf16.msra.mxu0 0
        %1115 = vmatprep.subr.bf16.mxu0 0
        %1116 = vmatpush2.bf16.msra.mxu0 0
        %1117 = vmatprep.mubr.bf16.mxu0 0
        %1118 = vmatmul.mubr.bf16.gmra.mxu0 %v1083
        %v1119 = vpop.f32.mrf.mxu0
        %v1120 = vadd.f32 %v1068, %v1119
        %v1121 = vpop.f32.mrf.mxu0
        %v1122 = vpop.f32.mrf.mxu0
        %v1123 = vpop.f32.mrf.mxu0
        %1124 = vdwg.mxu0
        %v1125 = vmul.f32 %v1120, 0.5
        %v1126 = vmul.f32 %v1120, 0.70710677
        %v1127 = vand.u32 2147483647, %v1126
        %v1128 = vmul.f32 %v1127, 0.3275911
        %v1129 = vadd.f32 %v1128, 1.0
        %v1130 = vrcp.pop %v1129
        %v1131 = vmul.f32 %v1130, 1.0614054
        %v1132 = vadd.f32 %v1131, -1.4531521
        %v1133 = vmul.f32 %v1132, %v1130
        %v1134 = vadd.f32 %v1133, 1.4214138
        %v1135 = vmul.f32 %v1134, %v1130
        %v1136 = vadd.f32 %v1135, -0.28449672
        %v1137 = vmul.f32 %v1136, %v1130
        %v1138 = vadd.f32 %v1137, 0.2548296
        %v1139 = vmul.f32 %v1138, %v1130
        %v1140 = vsub.f32 0.0, %v1127
        %v1141 = vmul.f32 %v1140, %v1127
        %v1142 = vmul.f32 %v1141, 1.442695
        %v1143 = vpow.pop %v1142
        %v1144 = vmul.f32 %v1139, %v1143
        %v1145 = vsub.f32 1.0, %v1144
        %vm1146 = vcmp.ge.f32.partialorder %v1126, 0.0
        %v1147 = vsub.f32 0.0, %v1145
        %v1148 = vsel %vm1146, %v1145, %v1147
        %v1149 = vadd.f32 %v1148, 1.0
        %v1150 = vmul.f32 %v1125, %v1149
        %v1151 = vpack.c.bf16 %v1150, %v1150
        %v1152 = vld [vmem:[%s10] sm:$0xf]
        %v1153 = vld [vmem:[%s10 + $0x4] sm:$0xf]
        %v1154 = vld [vmem:[%s10 + $0x8] sm:$0xf]
        %v1155 = vld [vmem:[%s10 + $0xc] sm:$0xf]
        %v1156 = vld [vmem:[%s10 + $0x10] sm:$0xf]
        %v1157 = vld [vmem:[%s10 + $0x14] sm:$0xf]
        %v1158 = vld [vmem:[%s10 + $0x18] sm:$0xf]
        %v1159 = vld [vmem:[%s10 + $0x1c] sm:$0xf]
        %v1160 = vld [vmem:[%s10 + $0x20] sm:$0xf]
        %v1161 = vld [vmem:[%s10 + $0x24] sm:$0xf]
        %v1162 = vld [vmem:[%s10 + $0x28] sm:$0xf]
        %v1163 = vld [vmem:[%s10 + $0x2c] sm:$0xf]
        %v1164 = vld [vmem:[%s10 + $0x30] sm:$0xf]
        %v1165 = vld [vmem:[%s10 + $0x34] sm:$0xf]
        %v1166 = vld [vmem:[%s10 + $0x38] sm:$0xf]
        %v1167 = vld [vmem:[%s10 + $0x3c] sm:$0xf]
        %v1168 = vld [vmem:[%s11] sm:$0x1]
        %v1170 = vlaneseq
        %v1171 = vshrl.u32 %v1170, 7
        %v1172 = vsub.s32 0, %v1171
        %v1173 = vrot.slane %v1168, %v1172
        %v1191 = vunpack.c.l.b16 %v1152
        %v1192 = vunpack.c.l.b16 %v1153
        %v1193 = vunpack.c.l.b16 %v1154
        %v1194 = vunpack.c.l.b16 %v1155
        %v1195 = vunpack.c.l.b16 %v1156
        %v1196 = vunpack.c.l.b16 %v1157
        %v1197 = vunpack.c.l.b16 %v1158
        %v1198 = vunpack.c.l.b16 %v1159
        %v1199 = vunpack.c.l.b16 %v1160
        %v1200 = vunpack.c.l.b16 %v1161
        %v1201 = vunpack.c.l.b16 %v1162
        %v1202 = vunpack.c.l.b16 %v1163
        %v1203 = vunpack.c.l.b16 %v1164
        %v1204 = vunpack.c.l.b16 %v1165
        %v1205 = vunpack.c.l.b16 %v1166
        %v1206 = vunpack.c.l.b16 %v1167
        %v1207 = vpack.c.b16 %v1192, %v1191
        %v1208 = vpack.c.b16 %v1194, %v1193
        %v1209 = vpack.c.b16 %v1196, %v1195
        %v1210 = vpack.c.b16 %v1198, %v1197
        %v1211 = vpack.c.b16 %v1200, %v1199
        %v1212 = vpack.c.b16 %v1202, %v1201
        %v1213 = vpack.c.b16 %v1204, %v1203
        %v1214 = vpack.c.b16 %v1206, %v1205
        %1223 = vmatprep.subr.bf16.mxu0 0
        %1224 = vmatpush1.bf16.msra.mxu0 %v1214
        %1225 = vmatprep.subr.bf16.mxu0 0
        %1226 = vmatpush1.bf16.msra.mxu0 %v1213
        %1227 = vmatprep.subr.bf16.mxu0 0
        %1228 = vmatpush1.bf16.msra.mxu0 %v1212
        %1229 = vmatprep.subr.bf16.mxu0 0
        %1230 = vmatpush1.bf16.msra.mxu0 %v1211
        %1231 = vmatprep.subr.bf16.mxu0 0
        %1232 = vmatpush1.bf16.msra.mxu0 %v1210
        %1233 = vmatprep.subr.bf16.mxu0 0
        %1234 = vmatpush1.bf16.msra.mxu0 %v1209
        %1235 = vmatprep.subr.bf16.mxu0 0
        %1236 = vmatpush1.bf16.msra.mxu0 %v1208
        %1237 = vmatprep.subr.bf16.mxu0 0
        %1238 = vmatpush1.bf16.msra.mxu0 %v1207
        %1239 = vmatprep.subr.bf16.mxu0 0
        %1240 = vmatpush2.bf16.msra.mxu0 0
        %1241 = vmatprep.subr.bf16.mxu0 0
        %1242 = vmatpush2.bf16.msra.mxu0 0
        %1243 = vmatprep.subr.bf16.mxu0 0
        %1244 = vmatpush2.bf16.msra.mxu0 0
        %1245 = vmatprep.subr.bf16.mxu0 0
        %1246 = vmatpush2.bf16.msra.mxu0 0
        %1247 = vmatprep.subr.bf16.mxu0 0
        %1248 = vmatpush2.bf16.msra.mxu0 0
        %1249 = vmatprep.subr.bf16.mxu0 0
        %1250 = vmatpush2.bf16.msra.mxu0 0
        %1251 = vmatprep.subr.bf16.mxu0 0
        %1252 = vmatpush2.bf16.msra.mxu0 0
        %1253 = vmatprep.subr.bf16.mxu0 0
        %1254 = vmatpush2.bf16.msra.mxu0 0
        %1255 = vmatprep.mubr.bf16.mxu0 0
        %1256 = vmatmul.mubr.bf16.gmra.mxu0 %v1151
        %v1257 = vpop.f32.mrf.mxu0
        %v1258 = vadd.f32 %v1173, %v1257
        %v1259 = vpop.f32.mrf.mxu0
        %v1260 = vpop.f32.mrf.mxu0
        %v1261 = vpop.f32.mrf.mxu0
        %1262 = vdwg.mxu0
        %v1263 = vadd.f32 %v1028, %v1258
        %1264 = vst.msk [vmem:[%s404] sm:$0xff] %vm411, %v1263
        %s1265 = sand.u32 %s291, 1
        %s1266 = scalar_lea.sflag [#allocation3], %s1265
        %s1267 = sand.u32 %s291, 1
        %s1268 = smul.addr %s1267, 8
        %s1269 = scalar_lea.vmem [#allocation2], %s1268
        // Predicated region
        $region69: #{tpu_custom_call.1} parent=67 // pred_check
          %p1270 = pneg %p301
        $region70: #{tpu_custom_call.1} parent=67 // pred_check_branch
          %1272 = sbr.rel (%p1270) target = $region72
        $region71: #{tpu_custom_call.1} parent=67 // pred_region
          %s1274 = ssub.s32 128, 128
          %1275 = vsyncadd %s1266, %s1274
          %s1276 = smul.addr %s26, 128
          %s1277 = scalar_lea.hbm %s12, %s1276
          %s1279 = sshll.u32 %s1269, 4
          %s1280 = int_to_ptr.vmem [resolvable:$true] %s1279
          %1282 = dma.vmem_to_hbm [thread:$0]  %s1280, 128, %s1277, %s1266
        $region72: #{tpu_custom_call.1} parent=67 // pred_fallthru
          _
      $region68: #{tpu_custom_call.1} parent=5 // pred_fallthru
        _
      %p1283 = scmp.le.s32.totalorder 2, %s21
      // Predicated region
      $region73: #{tpu_custom_call.1} parent=5 // pred_check
        %p1284 = pneg %p1283
      $region74: #{tpu_custom_call.1} parent=5 // pred_check_branch
        %1286 = sbr.rel (%p1284) target = $region76
      $region75: #{tpu_custom_call.1} parent=5 // pred_region
        %s1287 = ssub.s32 %s21, 2
        // Predicated region
        $region77: #{tpu_custom_call.1} parent=75 // pred_check
          %p1288 = pneg %p307
        $region78: #{tpu_custom_call.1} parent=75 // pred_check_branch
          %1290 = sbr.rel (%p1288) target = $region80
        $region79: #{tpu_custom_call.1} parent=75 // pred_region
          %s1291 = sand.u32 %s292, 1
          %s1292 = scalar_lea.sflag [#allocation3], %s1291
          %s1293 = sand.u32 %s292, 1
          %s1294 = smul.addr %s1293, 8
          %s1295 = scalar_lea.vmem [#allocation2], %s1294
          %1296 = dma.done %s1292, 128
        $region80: #{tpu_custom_call.1} parent=75 // pred_fallthru
          _
      $region76: #{tpu_custom_call.1} parent=5 // pred_fallthru
        _
    $region6: #{tpu_custom_call.1} parent=1 // loop_footer
      %s25 = sadd.s32 1, %s21
    $region7: #{tpu_custom_call.1} parent=1 // loop_footer_branch
      %20 = sbr.rel target = $region3
    $region8: #{tpu_custom_call.1} parent=1 // loop_exit
      _
    %1297 = vsyncpa [#allocation3], 1
    %s1298 = scalar_lea.sflag [#allocation3], 1
    %1299 = vsyncpa %s1298, 1

</llo_original>
